<compile_context>
chip_gen: v7x
topology: tpu7x:2x2x1
jax: 0.10.0
libtpu: 0.0.40
codegen_flags: <defaults>
</compile_context>

<pallas_src>
import jax
import jax.numpy as jnp
from jax import lax
from jax.experimental import pallas as pl
from jax.experimental.pallas import tpu as pltpu


# ---------------------------------------------------------------------------
# Pallas kernel: whole multi-layer LSTM recurrence + output projection.
# ---------------------------------------------------------------------------
def mnist_lstm_kernel(x_ref,          # (T, Bp, 1)   raw input (feature dim = 1)
                      w_ih0_ref,      # (1, 4H)      layer-0 input weights (transposed)
                      w_ih_rest_ref,  # (L-1, H, 4H) input weights of layers 1..L-1
                      w_hh_ref,       # (L, H, 4H)   hidden->gates weights (transposed)
                      b_ref,          # (L, 1, 4H)   combined bias (b_ih + b_hh)
                      h0_ref,         # (L, Bp, H)
                      c0_ref,         # (L, Bp, H)
                      w_out_ref,      # (H, O)       output Linear weight (transposed)
                      b_out_ref,      # (1, O)
                      logits_ref,     # (T*Bp, O)    output (flattened, lane-dense)
                      hn_ref,         # (L, Bp, H)   output
                      cn_ref,         # (L, Bp, H)   output
                      gx0_ref,        # (T, Bp, 4H)  VMEM scratch: layer-0 gates_x (+bias)
                      seq_ref):       # (T*Bp, H)    VMEM scratch: last layer's outputs
    L = h0_ref.shape[0]
    H = h0_ref.shape[2]
    T = x_ref.shape[0]
    Bp = x_ref.shape[1]
    G = 4 * H

    # --- constants hoisted out of all loops -------------------------------
    # Lane mask selecting the "g" gate lanes [2H, 3H).
    lane = lax.broadcasted_iota(jnp.int32, (Bp, G), 1)
    g_mask = (lane >= 2 * H) & (lane < 3 * H)
    # Single-tanh activation: sigmoid(x) = 0.5*tanh(x/2) + 0.5, tanh(x) = tanh(x)
    #   act = tanh(gates * gate_scale) * gate_scale + gate_beta
    gate_scale = jnp.where(g_mask, 1.0, 0.5).astype(jnp.float32)
    gate_beta = jnp.where(g_mask, 0.0, 0.5).astype(jnp.float32)

    # --- layer-0 input projection: rank-1 VPU broadcast-multiply ----------
    # (input feature dim == 1), bias folded in here, fully off the recurrence.
    gx0_ref[...] = x_ref[...] * w_ih0_ref[...] + b_ref[0]

    # --- wavefront recurrence over diagonals d = l + t ---------------------
    h = [h0_ref[l] for l in range(L)]       # (Bp, H) per layer
    c = [c0_ref[l] for l in range(L)]       # (Bp, H) per layer

    for d in range(L + T - 1):               # static, fully unrolled (10 diagonals)
        h_in = list(h)                       # snapshot: all reads use pre-diagonal values
        for l in range(L):                   # up to L independent cells per diagonal
            t = d - l
            if not (0 <= t < T):
                continue
            if l == 0:
                gx = gx0_ref[t]              # (Bp, 4H), bias already folded in
            else:
                # Input projection from the layer below (independent of W_hh dot).
                gx = (jnp.dot(h_in[l - 1], w_ih_rest_ref[l - 1],
                              preferred_element_type=jnp.float32)
                      + b_ref[l])
            gates = gx + jnp.dot(h_in[l], w_hh_ref[l],
                                 preferred_element_type=jnp.float32)
            # ONE full-(8,128) tanh pass for all four gates.
            act = jnp.tanh(gates * gate_scale) * gate_scale + gate_beta
            i_g = act[:, 0 * H:1 * H]
            f_g = act[:, 1 * H:2 * H]
            g_g = act[:, 2 * H:3 * H]
            o_g = act[:, 3 * H:4 * H]
            c_new = f_g * c[l] + i_g * g_g
            h_new = o_g * jnp.tanh(c_new)
            c[l] = c_new
            h[l] = h_new
            if l == L - 1:
                # Stored sublane-aligned for the single head matmul below.
                seq_ref[t * Bp:(t + 1) * Bp, :] = h_new

    for l in range(L):
        hn_ref[l] = h[l]
        cn_ref[l] = c[l]

    # --- output head: ONE lane-dense 2-D matmul (T*Bp, H) @ (H, O) + b -----
    logits_ref[...] = (
        jnp.dot(seq_ref[...], w_out_ref[...], preferred_element_type=jnp.float32)
        + b_out_ref[...])


# ---------------------------------------------------------------------------
# Wrapper: batch padding to a sublane tile + pallas_call.
# ---------------------------------------------------------------------------
def mnist_lstm_forward(x, hidden, params):
    """x: (B, T, 1) f32.  hidden: (h0, c0) each (L, B, H) f32.

    Returns (logits (B, T, O), (h_n, c_n)) matching the PyTorch module.
    """
    h0, c0 = hidden
    B, T, _ = x.shape
    L, _, H = h0.shape
    w_ih0, w_ih_rest, w_hh, b, w_out_t, b_out = params
    O = w_out_t.shape[1]

    # Pad batch to a full sublane tile -> unmasked full-vreg VPU ops.
    Bp = ((B + 7) // 8) * 8
    pad_b = Bp - B

    x_tm = jnp.transpose(x, (1, 0, 2))                        # (T, B, 1) time-major
    x_p = jnp.pad(x_tm, ((0, 0), (0, pad_b), (0, 0)))         # (T, Bp, 1)
    h0_p = jnp.pad(h0, ((0, 0), (0, pad_b), (0, 0)))          # (L, Bp, H)
    c0_p = jnp.pad(c0, ((0, 0), (0, pad_b), (0, 0)))          # (L, Bp, H)

    vspec = pl.BlockSpec(memory_space=pltpu.MemorySpace.VMEM)

    logits_flat, hn_p, cn_p = pl.pallas_call(
        mnist_lstm_kernel,
        out_shape=(
            jax.ShapeDtypeStruct((T * Bp, O), jnp.float32),
            jax.ShapeDtypeStruct((L, Bp, H), jnp.float32),
            jax.ShapeDtypeStruct((L, Bp, H), jnp.float32),
        ),
        in_specs=[vspec] * 9,
        out_specs=(vspec, vspec, vspec),
        scratch_shapes=[
            pltpu.VMEM((T, Bp, 4 * H), jnp.float32),   # layer-0 gates_x (+bias)
            pltpu.VMEM((T * Bp, H), jnp.float32),      # last layer's sequence
        ],
    )(x_p, w_ih0, w_ih_rest, w_hh, b, h0_p, c0_p, w_out_t, b_out)

    logits = logits_flat.reshape(T, Bp, O)[:, :B, :]          # strip batch padding
    logits = jnp.transpose(logits, (1, 0, 2))                 # back to (B, T, O)
    return logits, (hn_p[:, :B, :], cn_p[:, :B, :])


# ---------------------------------------------------------------------------
# Deterministic parameter init (torch.nn.LSTM / Linear shapes, uniform init).
# ---------------------------------------------------------------------------
def init_params(key, input_size, hidden_size, num_layers, output_size):
    H, L = hidden_size, num_layers
    k = 1.0 / jnp.sqrt(H)
    keys = jax.random.split(key, 4 * L + 2)

    w_ih_list, w_hh_list, b_list = [], [], []
    for l in range(L):
        in_dim = input_size if l == 0 else H
        w_ih_l = jax.random.uniform(keys[4 * l + 0], (4 * H, in_dim), jnp.float32, -k, k)
        w_hh_l = jax.random.uniform(keys[4 * l + 1], (4 * H, H), jnp.float32, -k, k)
        b_ih_l = jax.random.uniform(keys[4 * l + 2], (4 * H,), jnp.float32, -k, k)
        b_hh_l = jax.random.uniform(keys[4 * l + 3], (4 * H,), jnp.float32, -k, k)
        w_ih_list.append(w_ih_l.T)                     # (in_dim, 4H)
        w_hh_list.append(w_hh_l.T)                     # (H, 4H)
        b_list.append((b_ih_l + b_hh_l)[None, :])      # (1, 4H)

    w_out = jax.random.uniform(keys[-2], (output_size, H), jnp.float32, -k, k)
    b_out = jax.random.uniform(keys[-1], (output_size,), jnp.float32, -k, k)

    return (w_ih_list[0],               # (1, 4H)      layer-0 input weights
            jnp.stack(w_ih_list[1:]),   # (L-1, H, 4H) layers 1..L-1 input weights
            jnp.stack(w_hh_list),       # (L, H, 4H)
            jnp.stack(b_list),          # (L, 1, 4H)
            w_out.T,                    # (H, O)
            b_out[None, :])             # (1, O)


# ---------------------------------------------------------------------------
# Pure-JAX reference (mirrors torch.nn.LSTM batch_first + Linear).
# ---------------------------------------------------------------------------
def reference_forward(x, hidden, params):
    h0, c0 = hidden
    w_ih0, w_ih_rest, w_hh, b, w_out_t, b_out = params
    B, T, _ = x.shape
    L, _, H = h0.shape
    seq = jnp.transpose(x, (1, 0, 2))               # (T, B, in_dim)
    hn, cn = [], []
    for l in range(L):
        h, c = h0[l], c0[l]
        w_in = w_ih0 if l == 0 else w_ih_rest[l - 1]
        outs = []
        for t in range(T):
            g = seq[t] @ w_in + h @ w_hh[l] + b[l]
            i = jax.nn.sigmoid(g[:, 0 * H:1 * H])
            f = jax.nn.sigmoid(g[:, 1 * H:2 * H])
            gg = jnp.tanh(g[:, 2 * H:3 * H])
            o = jax.nn.sigmoid(g[:, 3 * H:4 * H])
            c = f * c + i * gg
            h = o * jnp.tanh(c)
            outs.append(h)
        seq = jnp.stack(outs)
        hn.append(h)
        cn.append(c)
    logits = jnp.einsum("tbh,ho->tbo", seq, w_out_t) + b_out
    return jnp.transpose(logits, (1, 0, 2)), (jnp.stack(hn), jnp.stack(cn))


if __name__ == "__main__":
    # Small shapes consistent with the module's forward semantics.
    B, T = 2, 8
    INPUT_SIZE, HIDDEN, LAYERS, OUTPUT = 1, 32, 3, 256

    key = jax.random.PRNGKey(0)
    k_p, k_x = jax.random.split(key)

    params = init_params(k_p, INPUT_SIZE, HIDDEN, LAYERS, OUTPUT)
    x = jax.random.normal(k_x, (B, T, INPUT_SIZE), dtype=jnp.float32)
    # get_init_hidden equivalent:
    h0 = jnp.zeros((LAYERS, B, HIDDEN), dtype=jnp.float32)
    c0 = jnp.zeros((LAYERS, B, HIDDEN), dtype=jnp.float32)

    logits, (h_n, c_n) = mnist_lstm_forward(x, (h0, c0), params)
    jax.block_until_ready((logits, h_n, c_n))

    # Correctness check against pure-JAX reference.
    ref_logits, (ref_h, ref_c) = reference_forward(x, (h0, c0), params)
    assert logits.shape == (B, T, OUTPUT)
    assert h_n.shape == (LAYERS, B, HIDDEN) and c_n.shape == (LAYERS, B, HIDDEN)
    assert jnp.allclose(logits, ref_logits, rtol=1e-4, atol=1e-4)
    assert jnp.allclose(h_n, ref_h, rtol=1e-4, atol=1e-4)
    assert jnp.allclose(c_n, ref_c, rtol=1e-4, atol=1e-4)

    print("KERNEL_OK")
</pallas_src>

<mosaic_0001>
module attributes {stable_mosaic.version = 11 : i64} {
  func.func @mnist_lstm_kernel(%arg0: memref<8x8x1xf32, #tpu.memory_space<vmem>>, %arg1: memref<1x128xf32, #tpu.memory_space<vmem>>, %arg2: memref<2x32x128xf32, #tpu.memory_space<vmem>>, %arg3: memref<3x32x128xf32, #tpu.memory_space<vmem>>, %arg4: memref<3x1x128xf32, #tpu.memory_space<vmem>>, %arg5: memref<3x8x32xf32, #tpu.memory_space<vmem>>, %arg6: memref<3x8x32xf32, #tpu.memory_space<vmem>>, %arg7: memref<32x256xf32, #tpu.memory_space<vmem>>, %arg8: memref<1x256xf32, #tpu.memory_space<vmem>>, %arg9: memref<64x256xf32, #tpu.memory_space<vmem>>, %arg10: memref<3x8x32xf32, #tpu.memory_space<vmem>>, %arg11: memref<3x8x32xf32, #tpu.memory_space<vmem>>, %arg12: memref<8x8x128xf32, #tpu.memory_space<vmem>>, %arg13: memref<64x32xf32, #tpu.memory_space<vmem>>) attributes {dimension_semantics = [], scalar_prefetch = 0 : i64, scratch_operands = 2 : i64, tpu.core_type = #tpu.core_type<tc>} {
    %0 = tpu.iota {dimensions = array<i32: 1>} : vector<8x128xi32>
    %c64_i32 = arith.constant 64 : i32
    %1 = vector.broadcast %c64_i32 : i32 to vector<8x128xi32>
    %2 = arith.cmpi sge, %0, %1 : vector<8x128xi32>
    %c96_i32 = arith.constant 96 : i32
    %3 = vector.broadcast %c96_i32 : i32 to vector<8x128xi32>
    %4 = arith.cmpi slt, %0, %3 : vector<8x128xi32>
    %5 = arith.andi %2, %4 : vector<8x128xi1>
    %cst = arith.constant 1.000000e+00 : f32
    %cst_0 = arith.constant 5.000000e-01 : f32
    %6 = vector.broadcast %cst : f32 to vector<8x128xf32>
    %7 = vector.broadcast %cst_0 : f32 to vector<8x128xf32>
    %8 = arith.select %5, %6, %7 : vector<8x128xi1>, vector<8x128xf32>
    %cst_1 = arith.constant 0.000000e+00 : f32
    %cst_2 = arith.constant 5.000000e-01 : f32
    %9 = vector.broadcast %cst_1 : f32 to vector<8x128xf32>
    %10 = vector.broadcast %cst_2 : f32 to vector<8x128xf32>
    %11 = arith.select %5, %9, %10 : vector<8x128xi1>, vector<8x128xf32>
    %c0 = arith.constant 0 : index
    %c0_3 = arith.constant 0 : index
    %c0_4 = arith.constant 0 : index
    %12 = vector.load %arg0[%c0, %c0_3, %c0_4] : memref<8x8x1xf32, #tpu.memory_space<vmem>>, vector<8x8x1xf32>
    %c0_5 = arith.constant 0 : index
    %c0_6 = arith.constant 0 : index
    %13 = vector.load %arg1[%c0_5, %c0_6] : memref<1x128xf32, #tpu.memory_space<vmem>>, vector<1x128xf32>
    %14 = vector.shape_cast %13 : vector<1x128xf32> to vector<1x1x128xf32>
    %15 = vector.broadcast %12 : vector<8x8x1xf32> to vector<8x8x128xf32>
    %16 = vector.broadcast %14 : vector<1x1x128xf32> to vector<8x8x128xf32>
    %17 = arith.mulf %15, %16 : vector<8x8x128xf32>
    %c0_7 = arith.constant 0 : index
    %c0_8 = arith.constant 0 : index
    %c0_9 = arith.constant 0 : index
    %18 = vector.load %arg4[%c0_7, %c0_8, %c0_9] : memref<3x1x128xf32, #tpu.memory_space<vmem>>, vector<1x1x128xf32>
    %19 = vector.shape_cast %18 : vector<1x1x128xf32> to vector<1x128xf32>
    %20 = vector.shape_cast %19 : vector<1x128xf32> to vector<1x1x128xf32>
    %21 = vector.broadcast %20 : vector<1x1x128xf32> to vector<8x8x128xf32>
    %22 = arith.addf %17, %21 : vector<8x8x128xf32>
    %c0_10 = arith.constant 0 : index
    %c0_11 = arith.constant 0 : index
    %c0_12 = arith.constant 0 : index
    %23 = vector.load %arg12[%c0_10, %c0_11, %c0_12] : memref<8x8x128xf32, #tpu.memory_space<vmem>>, vector<8x8x128xf32>
    tpu.vector_store %arg12[%c0_10, %c0_11, %c0_12], %22 {strides = array<i32>} : memref<8x8x128xf32, #tpu.memory_space<vmem>>, vector<8x8x128xf32>,
    %c0_13 = arith.constant 0 : index
    %c0_14 = arith.constant 0 : index
    %c0_15 = arith.constant 0 : index
    %24 = vector.load %arg5[%c0_13, %c0_14, %c0_15] : memref<3x8x32xf32, #tpu.memory_space<vmem>>, vector<1x8x32xf32>
    %25 = vector.shape_cast %24 : vector<1x8x32xf32> to vector<8x32xf32>
    %c1 = arith.constant 1 : index
    %c0_16 = arith.constant 0 : index
    %c0_17 = arith.constant 0 : index
    %26 = vector.load %arg5[%c1, %c0_16, %c0_17] : memref<3x8x32xf32, #tpu.memory_space<vmem>>, vector<1x8x32xf32>
    %27 = vector.shape_cast %26 : vector<1x8x32xf32> to vector<8x32xf32>
    %c2 = arith.constant 2 : index
    %c0_18 = arith.constant 0 : index
    %c0_19 = arith.constant 0 : index
    %28 = vector.load %arg5[%c2, %c0_18, %c0_19] : memref<3x8x32xf32, #tpu.memory_space<vmem>>, vector<1x8x32xf32>
    %29 = vector.shape_cast %28 : vector<1x8x32xf32> to vector<8x32xf32>
    %c0_20 = arith.constant 0 : index
    %c0_21 = arith.constant 0 : index
    %c0_22 = arith.constant 0 : index
    %30 = vector.load %arg6[%c0_20, %c0_21, %c0_22] : memref<3x8x32xf32, #tpu.memory_space<vmem>>, vector<1x8x32xf32>
    %31 = vector.shape_cast %30 : vector<1x8x32xf32> to vector<8x32xf32>
    %c1_23 = arith.constant 1 : index
    %c0_24 = arith.constant 0 : index
    %c0_25 = arith.constant 0 : index
    %32 = vector.load %arg6[%c1_23, %c0_24, %c0_25] : memref<3x8x32xf32, #tpu.memory_space<vmem>>, vector<1x8x32xf32>
    %33 = vector.shape_cast %32 : vector<1x8x32xf32> to vector<8x32xf32>
    %c2_26 = arith.constant 2 : index
    %c0_27 = arith.constant 0 : index
    %c0_28 = arith.constant 0 : index
    %34 = vector.load %arg6[%c2_26, %c0_27, %c0_28] : memref<3x8x32xf32, #tpu.memory_space<vmem>>, vector<1x8x32xf32>
    %35 = vector.shape_cast %34 : vector<1x8x32xf32> to vector<8x32xf32>
    %c0_29 = arith.constant 0 : index
    %c0_30 = arith.constant 0 : index
    %c0_31 = arith.constant 0 : index
    %36 = vector.load %arg12[%c0_29, %c0_30, %c0_31] : memref<8x8x128xf32, #tpu.memory_space<vmem>>, vector<1x8x128xf32>
    %37 = vector.shape_cast %36 : vector<1x8x128xf32> to vector<8x128xf32>
    %c0_32 = arith.constant 0 : index
    %c0_33 = arith.constant 0 : index
    %c0_34 = arith.constant 0 : index
    %38 = vector.load %arg3[%c0_32, %c0_33, %c0_34] : memref<3x32x128xf32, #tpu.memory_space<vmem>>, vector<1x32x128xf32>
    %39 = vector.shape_cast %38 : vector<1x32x128xf32> to vector<32x128xf32>
    %cst_35 = arith.constant dense<0.000000e+00> : vector<8x128xf32>
    %40 = tpu.matmul %25, %39, %cst_35 {dimension_numbers = #tpu.dot_dimension_numbers<[1], [0], [0], [1], [0, 0, 1, 1], [], []>} : vector<8x32xf32>, vector<32x128xf32>, vector<8x128xf32> -> vector<8x128xf32>
    %41 = arith.addf %37, %40 : vector<8x128xf32>
    %42 = arith.mulf %41, %8 : vector<8x128xf32>
    %43 = math.tanh %42 : vector<8x128xf32>
    %44 = arith.mulf %43, %8 : vector<8x128xf32>
    %45 = arith.addf %44, %11 : vector<8x128xf32>
    %46 = vector.extract_strided_slice %45 {offsets = [0, 0], sizes = [8, 32], strides = [1, 1]} : vector<8x128xf32> to vector<8x32xf32>
    %47 = vector.extract_strided_slice %45 {offsets = [0, 32], sizes = [8, 32], strides = [1, 1]} : vector<8x128xf32> to vector<8x32xf32>
    %48 = vector.extract_strided_slice %45 {offsets = [0, 64], sizes = [8, 32], strides = [1, 1]} : vector<8x128xf32> to vector<8x32xf32>
    %49 = vector.extract_strided_slice %45 {offsets = [0, 96], sizes = [8, 32], strides = [1, 1]} : vector<8x128xf32> to vector<8x32xf32>
    %50 = arith.mulf %47, %31 : vector<8x32xf32>
    %51 = arith.mulf %46, %48 : vector<8x32xf32>
    %52 = arith.addf %50, %51 : vector<8x32xf32>
    %53 = math.tanh %52 : vector<8x32xf32>
    %54 = arith.mulf %49, %53 : vector<8x32xf32>
    %c1_36 = arith.constant 1 : index
    %c0_37 = arith.constant 0 : index
    %c0_38 = arith.constant 0 : index
    %55 = vector.load %arg12[%c1_36, %c0_37, %c0_38] : memref<8x8x128xf32, #tpu.memory_space<vmem>>, vector<1x8x128xf32>
    %56 = vector.shape_cast %55 : vector<1x8x128xf32> to vector<8x128xf32>
    %c0_39 = arith.constant 0 : index
    %c0_40 = arith.constant 0 : index
    %c0_41 = arith.constant 0 : index
    %57 = vector.load %arg3[%c0_39, %c0_40, %c0_41] : memref<3x32x128xf32, #tpu.memory_space<vmem>>, vector<1x32x128xf32>
    %58 = vector.shape_cast %57 : vector<1x32x128xf32> to vector<32x128xf32>
    %cst_42 = arith.constant dense<0.000000e+00> : vector<8x128xf32>
    %59 = tpu.matmul %54, %58, %cst_42 {dimension_numbers = #tpu.dot_dimension_numbers<[1], [0], [0], [1], [0, 0, 1, 1], [], []>} : vector<8x32xf32>, vector<32x128xf32>, vector<8x128xf32> -> vector<8x128xf32>
    %60 = arith.addf %56, %59 : vector<8x128xf32>
    %61 = arith.mulf %60, %8 : vector<8x128xf32>
    %62 = math.tanh %61 : vector<8x128xf32>
    %63 = arith.mulf %62, %8 : vector<8x128xf32>
    %64 = arith.addf %63, %11 : vector<8x128xf32>
    %65 = vector.extract_strided_slice %64 {offsets = [0, 0], sizes = [8, 32], strides = [1, 1]} : vector<8x128xf32> to vector<8x32xf32>
    %66 = vector.extract_strided_slice %64 {offsets = [0, 32], sizes = [8, 32], strides = [1, 1]} : vector<8x128xf32> to vector<8x32xf32>
    %67 = vector.extract_strided_slice %64 {offsets = [0, 64], sizes = [8, 32], strides = [1, 1]} : vector<8x128xf32> to vector<8x32xf32>
    %68 = vector.extract_strided_slice %64 {offsets = [0, 96], sizes = [8, 32], strides = [1, 1]} : vector<8x128xf32> to vector<8x32xf32>
    %69 = arith.mulf %66, %52 : vector<8x32xf32>
    %70 = arith.mulf %65, %67 : vector<8x32xf32>
    %71 = arith.addf %69, %70 : vector<8x32xf32>
    %72 = math.tanh %71 : vector<8x32xf32>
    %73 = arith.mulf %68, %72 : vector<8x32xf32>
    %c0_43 = arith.constant 0 : index
    %c0_44 = arith.constant 0 : index
    %c0_45 = arith.constant 0 : index
    %74 = vector.load %arg2[%c0_43, %c0_44, %c0_45] : memref<2x32x128xf32, #tpu.memory_space<vmem>>, vector<1x32x128xf32>
    %75 = vector.shape_cast %74 : vector<1x32x128xf32> to vector<32x128xf32>
    %cst_46 = arith.constant dense<0.000000e+00> : vector<8x128xf32>
    %76 = tpu.matmul %54, %75, %cst_46 {dimension_numbers = #tpu.dot_dimension_numbers<[1], [0], [0], [1], [0, 0, 1, 1], [], []>} : vector<8x32xf32>, vector<32x128xf32>, vector<8x128xf32> -> vector<8x128xf32>
    %c1_47 = arith.constant 1 : index
    %c0_48 = arith.constant 0 : index
    %c0_49 = arith.constant 0 : index
    %77 = vector.load %arg4[%c1_47, %c0_48, %c0_49] : memref<3x1x128xf32, #tpu.memory_space<vmem>>, vector<1x1x128xf32>
    %78 = vector.shape_cast %77 : vector<1x1x128xf32> to vector<1x128xf32>
    %79 = vector.broadcast %78 : vector<1x128xf32> to vector<8x128xf32>
    %80 = arith.addf %76, %79 : vector<8x128xf32>
    %c1_50 = arith.constant 1 : index
    %c0_51 = arith.constant 0 : index
    %c0_52 = arith.constant 0 : index
    %81 = vector.load %arg3[%c1_50, %c0_51, %c0_52] : memref<3x32x128xf32, #tpu.memory_space<vmem>>, vector<1x32x128xf32>
    %82 = vector.shape_cast %81 : vector<1x32x128xf32> to vector<32x128xf32>
    %cst_53 = arith.constant dense<0.000000e+00> : vector<8x128xf32>
    %83 = tpu.matmul %27, %82, %cst_53 {dimension_numbers = #tpu.dot_dimension_numbers<[1], [0], [0], [1], [0, 0, 1, 1], [], []>} : vector<8x32xf32>, vector<32x128xf32>, vector<8x128xf32> -> vector<8x128xf32>
    %84 = arith.addf %80, %83 : vector<8x128xf32>
    %85 = arith.mulf %84, %8 : vector<8x128xf32>
    %86 = math.tanh %85 : vector<8x128xf32>
    %87 = arith.mulf %86, %8 : vector<8x128xf32>
    %88 = arith.addf %87, %11 : vector<8x128xf32>
    %89 = vector.extract_strided_slice %88 {offsets = [0, 0], sizes = [8, 32], strides = [1, 1]} : vector<8x128xf32> to vector<8x32xf32>
    %90 = vector.extract_strided_slice %88 {offsets = [0, 32], sizes = [8, 32], strides = [1, 1]} : vector<8x128xf32> to vector<8x32xf32>
    %91 = vector.extract_strided_slice %88 {offsets = [0, 64], sizes = [8, 32], strides = [1, 1]} : vector<8x128xf32> to vector<8x32xf32>
    %92 = vector.extract_strided_slice %88 {offsets = [0, 96], sizes = [8, 32], strides = [1, 1]} : vector<8x128xf32> to vector<8x32xf32>
    %93 = arith.mulf %90, %33 : vector<8x32xf32>
    %94 = arith.mulf %89, %91 : vector<8x32xf32>
    %95 = arith.addf %93, %94 : vector<8x32xf32>
    %96 = math.tanh %95 : vector<8x32xf32>
    %97 = arith.mulf %92, %96 : vector<8x32xf32>
    %c2_54 = arith.constant 2 : index
    %c0_55 = arith.constant 0 : index
    %c0_56 = arith.constant 0 : index
    %98 = vector.load %arg12[%c2_54, %c0_55, %c0_56] : memref<8x8x128xf32, #tpu.memory_space<vmem>>, vector<1x8x128xf32>
    %99 = vector.shape_cast %98 : vector<1x8x128xf32> to vector<8x128xf32>
    %c0_57 = arith.constant 0 : index
    %c0_58 = arith.constant 0 : index
    %c0_59 = arith.constant 0 : index
    %100 = vector.load %arg3[%c0_57, %c0_58, %c0_59] : memref<3x32x128xf32, #tpu.memory_space<vmem>>, vector<1x32x128xf32>
    %101 = vector.shape_cast %100 : vector<1x32x128xf32> to vector<32x128xf32>
    %cst_60 = arith.constant dense<0.000000e+00> : vector<8x128xf32>
    %102 = tpu.matmul %73, %101, %cst_60 {dimension_numbers = #tpu.dot_dimension_numbers<[1], [0], [0], [1], [0, 0, 1, 1], [], []>} : vector<8x32xf32>, vector<32x128xf32>, vector<8x128xf32> -> vector<8x128xf32>
    %103 = arith.addf %99, %102 : vector<8x128xf32>
    %104 = arith.mulf %103, %8 : vector<8x128xf32>
    %105 = math.tanh %104 : vector<8x128xf32>
    %106 = arith.mulf %105, %8 : vector<8x128xf32>
    %107 = arith.addf %106, %11 : vector<8x128xf32>
    %108 = vector.extract_strided_slice %107 {offsets = [0, 0], sizes = [8, 32], strides = [1, 1]} : vector<8x128xf32> to vector<8x32xf32>
    %109 = vector.extract_strided_slice %107 {offsets = [0, 32], sizes = [8, 32], strides = [1, 1]} : vector<8x128xf32> to vector<8x32xf32>
    %110 = vector.extract_strided_slice %107 {offsets = [0, 64], sizes = [8, 32], strides = [1, 1]} : vector<8x128xf32> to vector<8x32xf32>
    %111 = vector.extract_strided_slice %107 {offsets = [0, 96], sizes = [8, 32], strides = [1, 1]} : vector<8x128xf32> to vector<8x32xf32>
    %112 = arith.mulf %109, %71 : vector<8x32xf32>
    %113 = arith.mulf %108, %110 : vector<8x32xf32>
    %114 = arith.addf %112, %113 : vector<8x32xf32>
    %115 = math.tanh %114 : vector<8x32xf32>
    %116 = arith.mulf %111, %115 : vector<8x32xf32>
    %c0_61 = arith.constant 0 : index
    %c0_62 = arith.constant 0 : index
    %c0_63 = arith.constant 0 : index
    %117 = vector.load %arg2[%c0_61, %c0_62, %c0_63] : memref<2x32x128xf32, #tpu.memory_space<vmem>>, vector<1x32x128xf32>
    %118 = vector.shape_cast %117 : vector<1x32x128xf32> to vector<32x128xf32>
    %cst_64 = arith.constant dense<0.000000e+00> : vector<8x128xf32>
    %119 = tpu.matmul %73, %118, %cst_64 {dimension_numbers = #tpu.dot_dimension_numbers<[1], [0], [0], [1], [0, 0, 1, 1], [], []>} : vector<8x32xf32>, vector<32x128xf32>, vector<8x128xf32> -> vector<8x128xf32>
    %c1_65 = arith.constant 1 : index
    %c0_66 = arith.constant 0 : index
    %c0_67 = arith.constant 0 : index
    %120 = vector.load %arg4[%c1_65, %c0_66, %c0_67] : memref<3x1x128xf32, #tpu.memory_space<vmem>>, vector<1x1x128xf32>
    %121 = vector.shape_cast %120 : vector<1x1x128xf32> to vector<1x128xf32>
    %122 = vector.broadcast %121 : vector<1x128xf32> to vector<8x128xf32>
    %123 = arith.addf %119, %122 : vector<8x128xf32>
    %c1_68 = arith.constant 1 : index
    %c0_69 = arith.constant 0 : index
    %c0_70 = arith.constant 0 : index
    %124 = vector.load %arg3[%c1_68, %c0_69, %c0_70] : memref<3x32x128xf32, #tpu.memory_space<vmem>>, vector<1x32x128xf32>
    %125 = vector.shape_cast %124 : vector<1x32x128xf32> to vector<32x128xf32>
    %cst_71 = arith.constant dense<0.000000e+00> : vector<8x128xf32>
    %126 = tpu.matmul %97, %125, %cst_71 {dimension_numbers = #tpu.dot_dimension_numbers<[1], [0], [0], [1], [0, 0, 1, 1], [], []>} : vector<8x32xf32>, vector<32x128xf32>, vector<8x128xf32> -> vector<8x128xf32>
    %127 = arith.addf %123, %126 : vector<8x128xf32>
    %128 = arith.mulf %127, %8 : vector<8x128xf32>
    %129 = math.tanh %128 : vector<8x128xf32>
    %130 = arith.mulf %129, %8 : vector<8x128xf32>
    %131 = arith.addf %130, %11 : vector<8x128xf32>
    %132 = vector.extract_strided_slice %131 {offsets = [0, 0], sizes = [8, 32], strides = [1, 1]} : vector<8x128xf32> to vector<8x32xf32>
    %133 = vector.extract_strided_slice %131 {offsets = [0, 32], sizes = [8, 32], strides = [1, 1]} : vector<8x128xf32> to vector<8x32xf32>
    %134 = vector.extract_strided_slice %131 {offsets = [0, 64], sizes = [8, 32], strides = [1, 1]} : vector<8x128xf32> to vector<8x32xf32>
    %135 = vector.extract_strided_slice %131 {offsets = [0, 96], sizes = [8, 32], strides = [1, 1]} : vector<8x128xf32> to vector<8x32xf32>
    %136 = arith.mulf %133, %95 : vector<8x32xf32>
    %137 = arith.mulf %132, %134 : vector<8x32xf32>
    %138 = arith.addf %136, %137 : vector<8x32xf32>
    %139 = math.tanh %138 : vector<8x32xf32>
    %140 = arith.mulf %135, %139 : vector<8x32xf32>
    %c1_72 = arith.constant 1 : index
    %c0_73 = arith.constant 0 : index
    %c0_74 = arith.constant 0 : index
    %141 = vector.load %arg2[%c1_72, %c0_73, %c0_74] : memref<2x32x128xf32, #tpu.memory_space<vmem>>, vector<1x32x128xf32>
    %142 = vector.shape_cast %141 : vector<1x32x128xf32> to vector<32x128xf32>
    %cst_75 = arith.constant dense<0.000000e+00> : vector<8x128xf32>
    %143 = tpu.matmul %97, %142, %cst_75 {dimension_numbers = #tpu.dot_dimension_numbers<[1], [0], [0], [1], [0, 0, 1, 1], [], []>} : vector<8x32xf32>, vector<32x128xf32>, vector<8x128xf32> -> vector<8x128xf32>
    %c2_76 = arith.constant 2 : index
    %c0_77 = arith.constant 0 : index
    %c0_78 = arith.constant 0 : index
    %144 = vector.load %arg4[%c2_76, %c0_77, %c0_78] : memref<3x1x128xf32, #tpu.memory_space<vmem>>, vector<1x1x128xf32>
    %145 = vector.shape_cast %144 : vector<1x1x128xf32> to vector<1x128xf32>
    %146 = vector.broadcast %145 : vector<1x128xf32> to vector<8x128xf32>
    %147 = arith.addf %143, %146 : vector<8x128xf32>
    %c2_79 = arith.constant 2 : index
    %c0_80 = arith.constant 0 : index
    %c0_81 = arith.constant 0 : index
    %148 = vector.load %arg3[%c2_79, %c0_80, %c0_81] : memref<3x32x128xf32, #tpu.memory_space<vmem>>, vector<1x32x128xf32>
    %149 = vector.shape_cast %148 : vector<1x32x128xf32> to vector<32x128xf32>
    %cst_82 = arith.constant dense<0.000000e+00> : vector<8x128xf32>
    %150 = tpu.matmul %29, %149, %cst_82 {dimension_numbers = #tpu.dot_dimension_numbers<[1], [0], [0], [1], [0, 0, 1, 1], [], []>} : vector<8x32xf32>, vector<32x128xf32>, vector<8x128xf32> -> vector<8x128xf32>
    %151 = arith.addf %147, %150 : vector<8x128xf32>
    %152 = arith.mulf %151, %8 : vector<8x128xf32>
    %153 = math.tanh %152 : vector<8x128xf32>
    %154 = arith.mulf %153, %8 : vector<8x128xf32>
    %155 = arith.addf %154, %11 : vector<8x128xf32>
    %156 = vector.extract_strided_slice %155 {offsets = [0, 0], sizes = [8, 32], strides = [1, 1]} : vector<8x128xf32> to vector<8x32xf32>
    %157 = vector.extract_strided_slice %155 {offsets = [0, 32], sizes = [8, 32], strides = [1, 1]} : vector<8x128xf32> to vector<8x32xf32>
    %158 = vector.extract_strided_slice %155 {offsets = [0, 64], sizes = [8, 32], strides = [1, 1]} : vector<8x128xf32> to vector<8x32xf32>
    %159 = vector.extract_strided_slice %155 {offsets = [0, 96], sizes = [8, 32], strides = [1, 1]} : vector<8x128xf32> to vector<8x32xf32>
    %160 = arith.mulf %157, %35 : vector<8x32xf32>
    %161 = arith.mulf %156, %158 : vector<8x32xf32>
    %162 = arith.addf %160, %161 : vector<8x32xf32>
    %163 = math.tanh %162 : vector<8x32xf32>
    %164 = arith.mulf %159, %163 : vector<8x32xf32>
    %c0_83 = arith.constant 0 : index
    %c0_84 = arith.constant 0 : index
    %165 = vector.load %arg13[%c0_83, %c0_84] : memref<64x32xf32, #tpu.memory_space<vmem>>, vector<8x32xf32>
    tpu.vector_store %arg13[%c0_83, %c0_84], %164 {strides = array<i32>} : memref<64x32xf32, #tpu.memory_space<vmem>>, vector<8x32xf32>,
    %c3 = arith.constant 3 : index
    %c0_85 = arith.constant 0 : index
    %c0_86 = arith.constant 0 : index
    %166 = vector.load %arg12[%c3, %c0_85, %c0_86] : memref<8x8x128xf32, #tpu.memory_space<vmem>>, vector<1x8x128xf32>
    %167 = vector.shape_cast %166 : vector<1x8x128xf32> to vector<8x128xf32>
    %c0_87 = arith.constant 0 : index
    %c0_88 = arith.constant 0 : index
    %c0_89 = arith.constant 0 : index
    %168 = vector.load %arg3[%c0_87, %c0_88, %c0_89] : memref<3x32x128xf32, #tpu.memory_space<vmem>>, vector<1x32x128xf32>
    %169 = vector.shape_cast %168 : vector<1x32x128xf32> to vector<32x128xf32>
    %cst_90 = arith.constant dense<0.000000e+00> : vector<8x128xf32>
    %170 = tpu.matmul %116, %169, %cst_90 {dimension_numbers = #tpu.dot_dimension_numbers<[1], [0], [0], [1], [0, 0, 1, 1], [], []>} : vector<8x32xf32>, vector<32x128xf32>, vector<8x128xf32> -> vector<8x128xf32>
    %171 = arith.addf %167, %170 : vector<8x128xf32>
    %172 = arith.mulf %171, %8 : vector<8x128xf32>
    %173 = math.tanh %172 : vector<8x128xf32>
    %174 = arith.mulf %173, %8 : vector<8x128xf32>
    %175 = arith.addf %174, %11 : vector<8x128xf32>
    %176 = vector.extract_strided_slice %175 {offsets = [0, 0], sizes = [8, 32], strides = [1, 1]} : vector<8x128xf32> to vector<8x32xf32>
    %177 = vector.extract_strided_slice %175 {offsets = [0, 32], sizes = [8, 32], strides = [1, 1]} : vector<8x128xf32> to vector<8x32xf32>
    %178 = vector.extract_strided_slice %175 {offsets = [0, 64], sizes = [8, 32], strides = [1, 1]} : vector<8x128xf32> to vector<8x32xf32>
    %179 = vector.extract_strided_slice %175 {offsets = [0, 96], sizes = [8, 32], strides = [1, 1]} : vector<8x128xf32> to vector<8x32xf32>
    %180 = arith.mulf %177, %114 : vector<8x32xf32>
    %181 = arith.mulf %176, %178 : vector<8x32xf32>
    %182 = arith.addf %180, %181 : vector<8x32xf32>
    %183 = math.tanh %182 : vector<8x32xf32>
    %184 = arith.mulf %179, %183 : vector<8x32xf32>
    %c0_91 = arith.constant 0 : index
    %c0_92 = arith.constant 0 : index
    %c0_93 = arith.constant 0 : index
    %185 = vector.load %arg2[%c0_91, %c0_92, %c0_93] : memref<2x32x128xf32, #tpu.memory_space<vmem>>, vector<1x32x128xf32>
    %186 = vector.shape_cast %185 : vector<1x32x128xf32> to vector<32x128xf32>
    %cst_94 = arith.constant dense<0.000000e+00> : vector<8x128xf32>
    %187 = tpu.matmul %116, %186, %cst_94 {dimension_numbers = #tpu.dot_dimension_numbers<[1], [0], [0], [1], [0, 0, 1, 1], [], []>} : vector<8x32xf32>, vector<32x128xf32>, vector<8x128xf32> -> vector<8x128xf32>
    %c1_95 = arith.constant 1 : index
    %c0_96 = arith.constant 0 : index
    %c0_97 = arith.constant 0 : index
    %188 = vector.load %arg4[%c1_95, %c0_96, %c0_97] : memref<3x1x128xf32, #tpu.memory_space<vmem>>, vector<1x1x128xf32>
    %189 = vector.shape_cast %188 : vector<1x1x128xf32> to vector<1x128xf32>
    %190 = vector.broadcast %189 : vector<1x128xf32> to vector<8x128xf32>
    %191 = arith.addf %187, %190 : vector<8x128xf32>
    %c1_98 = arith.constant 1 : index
    %c0_99 = arith.constant 0 : index
    %c0_100 = arith.constant 0 : index
    %192 = vector.load %arg3[%c1_98, %c0_99, %c0_100] : memref<3x32x128xf32, #tpu.memory_space<vmem>>, vector<1x32x128xf32>
    %193 = vector.shape_cast %192 : vector<1x32x128xf32> to vector<32x128xf32>
    %cst_101 = arith.constant dense<0.000000e+00> : vector<8x128xf32>
    %194 = tpu.matmul %140, %193, %cst_101 {dimension_numbers = #tpu.dot_dimension_numbers<[1], [0], [0], [1], [0, 0, 1, 1], [], []>} : vector<8x32xf32>, vector<32x128xf32>, vector<8x128xf32> -> vector<8x128xf32>
    %195 = arith.addf %191, %194 : vector<8x128xf32>
    %196 = arith.mulf %195, %8 : vector<8x128xf32>
    %197 = math.tanh %196 : vector<8x128xf32>
    %198 = arith.mulf %197, %8 : vector<8x128xf32>
    %199 = arith.addf %198, %11 : vector<8x128xf32>
    %200 = vector.extract_strided_slice %199 {offsets = [0, 0], sizes = [8, 32], strides = [1, 1]} : vector<8x128xf32> to vector<8x32xf32>
    %201 = vector.extract_strided_slice %199 {offsets = [0, 32], sizes = [8, 32], strides = [1, 1]} : vector<8x128xf32> to vector<8x32xf32>
    %202 = vector.extract_strided_slice %199 {offsets = [0, 64], sizes = [8, 32], strides = [1, 1]} : vector<8x128xf32> to vector<8x32xf32>
    %203 = vector.extract_strided_slice %199 {offsets = [0, 96], sizes = [8, 32], strides = [1, 1]} : vector<8x128xf32> to vector<8x32xf32>
    %204 = arith.mulf %201, %138 : vector<8x32xf32>
    %205 = arith.mulf %200, %202 : vector<8x32xf32>
    %206 = arith.addf %204, %205 : vector<8x32xf32>
    %207 = math.tanh %206 : vector<8x32xf32>
    %208 = arith.mulf %203, %207 : vector<8x32xf32>
    %c1_102 = arith.constant 1 : index
    %c0_103 = arith.constant 0 : index
    %c0_104 = arith.constant 0 : index
    %209 = vector.load %arg2[%c1_102, %c0_103, %c0_104] : memref<2x32x128xf32, #tpu.memory_space<vmem>>, vector<1x32x128xf32>
    %210 = vector.shape_cast %209 : vector<1x32x128xf32> to vector<32x128xf32>
    %cst_105 = arith.constant dense<0.000000e+00> : vector<8x128xf32>
    %211 = tpu.matmul %140, %210, %cst_105 {dimension_numbers = #tpu.dot_dimension_numbers<[1], [0], [0], [1], [0, 0, 1, 1], [], []>} : vector<8x32xf32>, vector<32x128xf32>, vector<8x128xf32> -> vector<8x128xf32>
    %c2_106 = arith.constant 2 : index
    %c0_107 = arith.constant 0 : index
    %c0_108 = arith.constant 0 : index
    %212 = vector.load %arg4[%c2_106, %c0_107, %c0_108] : memref<3x1x128xf32, #tpu.memory_space<vmem>>, vector<1x1x128xf32>
    %213 = vector.shape_cast %212 : vector<1x1x128xf32> to vector<1x128xf32>
    %214 = vector.broadcast %213 : vector<1x128xf32> to vector<8x128xf32>
    %215 = arith.addf %211, %214 : vector<8x128xf32>
    %c2_109 = arith.constant 2 : index
    %c0_110 = arith.constant 0 : index
    %c0_111 = arith.constant 0 : index
    %216 = vector.load %arg3[%c2_109, %c0_110, %c0_111] : memref<3x32x128xf32, #tpu.memory_space<vmem>>, vector<1x32x128xf32>
    %217 = vector.shape_cast %216 : vector<1x32x128xf32> to vector<32x128xf32>
    %cst_112 = arith.constant dense<0.000000e+00> : vector<8x128xf32>
    %218 = tpu.matmul %164, %217, %cst_112 {dimension_numbers = #tpu.dot_dimension_numbers<[1], [0], [0], [1], [0, 0, 1, 1], [], []>} : vector<8x32xf32>, vector<32x128xf32>, vector<8x128xf32> -> vector<8x128xf32>
    %219 = arith.addf %215, %218 : vector<8x128xf32>
    %220 = arith.mulf %219, %8 : vector<8x128xf32>
    %221 = math.tanh %220 : vector<8x128xf32>
    %222 = arith.mulf %221, %8 : vector<8x128xf32>
    %223 = arith.addf %222, %11 : vector<8x128xf32>
    %224 = vector.extract_strided_slice %223 {offsets = [0, 0], sizes = [8, 32], strides = [1, 1]} : vector<8x128xf32> to vector<8x32xf32>
    %225 = vector.extract_strided_slice %223 {offsets = [0, 32], sizes = [8, 32], strides = [1, 1]} : vector<8x128xf32> to vector<8x32xf32>
    %226 = vector.extract_strided_slice %223 {offsets = [0, 64], sizes = [8, 32], strides = [1, 1]} : vector<8x128xf32> to vector<8x32xf32>
    %227 = vector.extract_strided_slice %223 {offsets = [0, 96], sizes = [8, 32], strides = [1, 1]} : vector<8x128xf32> to vector<8x32xf32>
    %228 = arith.mulf %225, %162 : vector<8x32xf32>
    %229 = arith.mulf %224, %226 : vector<8x32xf32>
    %230 = arith.addf %228, %229 : vector<8x32xf32>
    %231 = math.tanh %230 : vector<8x32xf32>
    %232 = arith.mulf %227, %231 : vector<8x32xf32>
    %c8 = arith.constant 8 : index
    %c0_113 = arith.constant 0 : index
    %233 = vector.load %arg13[%c8, %c0_113] : memref<64x32xf32, #tpu.memory_space<vmem>>, vector<8x32xf32>
    tpu.vector_store %arg13[%c8, %c0_113], %232 {strides = array<i32>} : memref<64x32xf32, #tpu.memory_space<vmem>>, vector<8x32xf32>,
    %c4 = arith.constant 4 : index
    %c0_114 = arith.constant 0 : index
    %c0_115 = arith.constant 0 : index
    %234 = vector.load %arg12[%c4, %c0_114, %c0_115] : memref<8x8x128xf32, #tpu.memory_space<vmem>>, vector<1x8x128xf32>
    %235 = vector.shape_cast %234 : vector<1x8x128xf32> to vector<8x128xf32>
    %c0_116 = arith.constant 0 : index
    %c0_117 = arith.constant 0 : index
    %c0_118 = arith.constant 0 : index
    %236 = vector.load %arg3[%c0_116, %c0_117, %c0_118] : memref<3x32x128xf32, #tpu.memory_space<vmem>>, vector<1x32x128xf32>
    %237 = vector.shape_cast %236 : vector<1x32x128xf32> to vector<32x128xf32>
    %cst_119 = arith.constant dense<0.000000e+00> : vector<8x128xf32>
    %238 = tpu.matmul %184, %237, %cst_119 {dimension_numbers = #tpu.dot_dimension_numbers<[1], [0], [0], [1], [0, 0, 1, 1], [], []>} : vector<8x32xf32>, vector<32x128xf32>, vector<8x128xf32> -> vector<8x128xf32>
    %239 = arith.addf %235, %238 : vector<8x128xf32>
    %240 = arith.mulf %239, %8 : vector<8x128xf32>
    %241 = math.tanh %240 : vector<8x128xf32>
    %242 = arith.mulf %241, %8 : vector<8x128xf32>
    %243 = arith.addf %242, %11 : vector<8x128xf32>
    %244 = vector.extract_strided_slice %243 {offsets = [0, 0], sizes = [8, 32], strides = [1, 1]} : vector<8x128xf32> to vector<8x32xf32>
    %245 = vector.extract_strided_slice %243 {offsets = [0, 32], sizes = [8, 32], strides = [1, 1]} : vector<8x128xf32> to vector<8x32xf32>
    %246 = vector.extract_strided_slice %243 {offsets = [0, 64], sizes = [8, 32], strides = [1, 1]} : vector<8x128xf32> to vector<8x32xf32>
    %247 = vector.extract_strided_slice %243 {offsets = [0, 96], sizes = [8, 32], strides = [1, 1]} : vector<8x128xf32> to vector<8x32xf32>
    %248 = arith.mulf %245, %182 : vector<8x32xf32>
    %249 = arith.mulf %244, %246 : vector<8x32xf32>
    %250 = arith.addf %248, %249 : vector<8x32xf32>
    %251 = math.tanh %250 : vector<8x32xf32>
    %252 = arith.mulf %247, %251 : vector<8x32xf32>
    %c0_120 = arith.constant 0 : index
    %c0_121 = arith.constant 0 : index
    %c0_122 = arith.constant 0 : index
    %253 = vector.load %arg2[%c0_120, %c0_121, %c0_122] : memref<2x32x128xf32, #tpu.memory_space<vmem>>, vector<1x32x128xf32>
    %254 = vector.shape_cast %253 : vector<1x32x128xf32> to vector<32x128xf32>
    %cst_123 = arith.constant dense<0.000000e+00> : vector<8x128xf32>
    %255 = tpu.matmul %184, %254, %cst_123 {dimension_numbers = #tpu.dot_dimension_numbers<[1], [0], [0], [1], [0, 0, 1, 1], [], []>} : vector<8x32xf32>, vector<32x128xf32>, vector<8x128xf32> -> vector<8x128xf32>
    %c1_124 = arith.constant 1 : index
    %c0_125 = arith.constant 0 : index
    %c0_126 = arith.constant 0 : index
    %256 = vector.load %arg4[%c1_124, %c0_125, %c0_126] : memref<3x1x128xf32, #tpu.memory_space<vmem>>, vector<1x1x128xf32>
    %257 = vector.shape_cast %256 : vector<1x1x128xf32> to vector<1x128xf32>
    %258 = vector.broadcast %257 : vector<1x128xf32> to vector<8x128xf32>
    %259 = arith.addf %255, %258 : vector<8x128xf32>
    %c1_127 = arith.constant 1 : index
    %c0_128 = arith.constant 0 : index
    %c0_129 = arith.constant 0 : index
    %260 = vector.load %arg3[%c1_127, %c0_128, %c0_129] : memref<3x32x128xf32, #tpu.memory_space<vmem>>, vector<1x32x128xf32>
    %261 = vector.shape_cast %260 : vector<1x32x128xf32> to vector<32x128xf32>
    %cst_130 = arith.constant dense<0.000000e+00> : vector<8x128xf32>
    %262 = tpu.matmul %208, %261, %cst_130 {dimension_numbers = #tpu.dot_dimension_numbers<[1], [0], [0], [1], [0, 0, 1, 1], [], []>} : vector<8x32xf32>, vector<32x128xf32>, vector<8x128xf32> -> vector<8x128xf32>
    %263 = arith.addf %259, %262 : vector<8x128xf32>
    %264 = arith.mulf %263, %8 : vector<8x128xf32>
    %265 = math.tanh %264 : vector<8x128xf32>
    %266 = arith.mulf %265, %8 : vector<8x128xf32>
    %267 = arith.addf %266, %11 : vector<8x128xf32>
    %268 = vector.extract_strided_slice %267 {offsets = [0, 0], sizes = [8, 32], strides = [1, 1]} : vector<8x128xf32> to vector<8x32xf32>
    %269 = vector.extract_strided_slice %267 {offsets = [0, 32], sizes = [8, 32], strides = [1, 1]} : vector<8x128xf32> to vector<8x32xf32>
    %270 = vector.extract_strided_slice %267 {offsets = [0, 64], sizes = [8, 32], strides = [1, 1]} : vector<8x128xf32> to vector<8x32xf32>
    %271 = vector.extract_strided_slice %267 {offsets = [0, 96], sizes = [8, 32], strides = [1, 1]} : vector<8x128xf32> to vector<8x32xf32>
    %272 = arith.mulf %269, %206 : vector<8x32xf32>
    %273 = arith.mulf %268, %270 : vector<8x32xf32>
    %274 = arith.addf %272, %273 : vector<8x32xf32>
    %275 = math.tanh %274 : vector<8x32xf32>
    %276 = arith.mulf %271, %275 : vector<8x32xf32>
    %c1_131 = arith.constant 1 : index
    %c0_132 = arith.constant 0 : index
    %c0_133 = arith.constant 0 : index
    %277 = vector.load %arg2[%c1_131, %c0_132, %c0_133] : memref<2x32x128xf32, #tpu.memory_space<vmem>>, vector<1x32x128xf32>
    %278 = vector.shape_cast %277 : vector<1x32x128xf32> to vector<32x128xf32>
    %cst_134 = arith.constant dense<0.000000e+00> : vector<8x128xf32>
    %279 = tpu.matmul %208, %278, %cst_134 {dimension_numbers = #tpu.dot_dimension_numbers<[1], [0], [0], [1], [0, 0, 1, 1], [], []>} : vector<8x32xf32>, vector<32x128xf32>, vector<8x128xf32> -> vector<8x128xf32>
    %c2_135 = arith.constant 2 : index
    %c0_136 = arith.constant 0 : index
    %c0_137 = arith.constant 0 : index
    %280 = vector.load %arg4[%c2_135, %c0_136, %c0_137] : memref<3x1x128xf32, #tpu.memory_space<vmem>>, vector<1x1x128xf32>
    %281 = vector.shape_cast %280 : vector<1x1x128xf32> to vector<1x128xf32>
    %282 = vector.broadcast %281 : vector<1x128xf32> to vector<8x128xf32>
    %283 = arith.addf %279, %282 : vector<8x128xf32>
    %c2_138 = arith.constant 2 : index
    %c0_139 = arith.constant 0 : index
    %c0_140 = arith.constant 0 : index
    %284 = vector.load %arg3[%c2_138, %c0_139, %c0_140] : memref<3x32x128xf32, #tpu.memory_space<vmem>>, vector<1x32x128xf32>
    %285 = vector.shape_cast %284 : vector<1x32x128xf32> to vector<32x128xf32>
    %cst_141 = arith.constant dense<0.000000e+00> : vector<8x128xf32>
    %286 = tpu.matmul %232, %285, %cst_141 {dimension_numbers = #tpu.dot_dimension_numbers<[1], [0], [0], [1], [0, 0, 1, 1], [], []>} : vector<8x32xf32>, vector<32x128xf32>, vector<8x128xf32> -> vector<8x128xf32>
    %287 = arith.addf %283, %286 : vector<8x128xf32>
    %288 = arith.mulf %287, %8 : vector<8x128xf32>
    %289 = math.tanh %288 : vector<8x128xf32>
    %290 = arith.mulf %289, %8 : vector<8x128xf32>
    %291 = arith.addf %290, %11 : vector<8x128xf32>
    %292 = vector.extract_strided_slice %291 {offsets = [0, 0], sizes = [8, 32], strides = [1, 1]} : vector<8x128xf32> to vector<8x32xf32>
    %293 = vector.extract_strided_slice %291 {offsets = [0, 32], sizes = [8, 32], strides = [1, 1]} : vector<8x128xf32> to vector<8x32xf32>
    %294 = vector.extract_strided_slice %291 {offsets = [0, 64], sizes = [8, 32], strides = [1, 1]} : vector<8x128xf32> to vector<8x32xf32>
    %295 = vector.extract_strided_slice %291 {offsets = [0, 96], sizes = [8, 32], strides = [1, 1]} : vector<8x128xf32> to vector<8x32xf32>
    %296 = arith.mulf %293, %230 : vector<8x32xf32>
    %297 = arith.mulf %292, %294 : vector<8x32xf32>
    %298 = arith.addf %296, %297 : vector<8x32xf32>
    %299 = math.tanh %298 : vector<8x32xf32>
    %300 = arith.mulf %295, %299 : vector<8x32xf32>
    %c16 = arith.constant 16 : index
    %c0_142 = arith.constant 0 : index
    %301 = vector.load %arg13[%c16, %c0_142] : memref<64x32xf32, #tpu.memory_space<vmem>>, vector<8x32xf32>
    tpu.vector_store %arg13[%c16, %c0_142], %300 {strides = array<i32>} : memref<64x32xf32, #tpu.memory_space<vmem>>, vector<8x32xf32>,
    %c5 = arith.constant 5 : index
    %c0_143 = arith.constant 0 : index
    %c0_144 = arith.constant 0 : index
    %302 = vector.load %arg12[%c5, %c0_143, %c0_144] : memref<8x8x128xf32, #tpu.memory_space<vmem>>, vector<1x8x128xf32>
    %303 = vector.shape_cast %302 : vector<1x8x128xf32> to vector<8x128xf32>
    %c0_145 = arith.constant 0 : index
    %c0_146 = arith.constant 0 : index
    %c0_147 = arith.constant 0 : index
    %304 = vector.load %arg3[%c0_145, %c0_146, %c0_147] : memref<3x32x128xf32, #tpu.memory_space<vmem>>, vector<1x32x128xf32>
    %305 = vector.shape_cast %304 : vector<1x32x128xf32> to vector<32x128xf32>
    %cst_148 = arith.constant dense<0.000000e+00> : vector<8x128xf32>
    %306 = tpu.matmul %252, %305, %cst_148 {dimension_numbers = #tpu.dot_dimension_numbers<[1], [0], [0], [1], [0, 0, 1, 1], [], []>} : vector<8x32xf32>, vector<32x128xf32>, vector<8x128xf32> -> vector<8x128xf32>
    %307 = arith.addf %303, %306 : vector<8x128xf32>
    %308 = arith.mulf %307, %8 : vector<8x128xf32>
    %309 = math.tanh %308 : vector<8x128xf32>
    %310 = arith.mulf %309, %8 : vector<8x128xf32>
    %311 = arith.addf %310, %11 : vector<8x128xf32>
    %312 = vector.extract_strided_slice %311 {offsets = [0, 0], sizes = [8, 32], strides = [1, 1]} : vector<8x128xf32> to vector<8x32xf32>
    %313 = vector.extract_strided_slice %311 {offsets = [0, 32], sizes = [8, 32], strides = [1, 1]} : vector<8x128xf32> to vector<8x32xf32>
    %314 = vector.extract_strided_slice %311 {offsets = [0, 64], sizes = [8, 32], strides = [1, 1]} : vector<8x128xf32> to vector<8x32xf32>
    %315 = vector.extract_strided_slice %311 {offsets = [0, 96], sizes = [8, 32], strides = [1, 1]} : vector<8x128xf32> to vector<8x32xf32>
    %316 = arith.mulf %313, %250 : vector<8x32xf32>
    %317 = arith.mulf %312, %314 : vector<8x32xf32>
    %318 = arith.addf %316, %317 : vector<8x32xf32>
    %319 = math.tanh %318 : vector<8x32xf32>
    %320 = arith.mulf %315, %319 : vector<8x32xf32>
    %c0_149 = arith.constant 0 : index
    %c0_150 = arith.constant 0 : index
    %c0_151 = arith.constant 0 : index
    %321 = vector.load %arg2[%c0_149, %c0_150, %c0_151] : memref<2x32x128xf32, #tpu.memory_space<vmem>>, vector<1x32x128xf32>
    %322 = vector.shape_cast %321 : vector<1x32x128xf32> to vector<32x128xf32>
    %cst_152 = arith.constant dense<0.000000e+00> : vector<8x128xf32>
    %323 = tpu.matmul %252, %322, %cst_152 {dimension_numbers = #tpu.dot_dimension_numbers<[1], [0], [0], [1], [0, 0, 1, 1], [], []>} : vector<8x32xf32>, vector<32x128xf32>, vector<8x128xf32> -> vector<8x128xf32>
    %c1_153 = arith.constant 1 : index
    %c0_154 = arith.constant 0 : index
    %c0_155 = arith.constant 0 : index
    %324 = vector.load %arg4[%c1_153, %c0_154, %c0_155] : memref<3x1x128xf32, #tpu.memory_space<vmem>>, vector<1x1x128xf32>
    %325 = vector.shape_cast %324 : vector<1x1x128xf32> to vector<1x128xf32>
    %326 = vector.broadcast %325 : vector<1x128xf32> to vector<8x128xf32>
    %327 = arith.addf %323, %326 : vector<8x128xf32>
    %c1_156 = arith.constant 1 : index
    %c0_157 = arith.constant 0 : index
    %c0_158 = arith.constant 0 : index
    %328 = vector.load %arg3[%c1_156, %c0_157, %c0_158] : memref<3x32x128xf32, #tpu.memory_space<vmem>>, vector<1x32x128xf32>
    %329 = vector.shape_cast %328 : vector<1x32x128xf32> to vector<32x128xf32>
    %cst_159 = arith.constant dense<0.000000e+00> : vector<8x128xf32>
    %330 = tpu.matmul %276, %329, %cst_159 {dimension_numbers = #tpu.dot_dimension_numbers<[1], [0], [0], [1], [0, 0, 1, 1], [], []>} : vector<8x32xf32>, vector<32x128xf32>, vector<8x128xf32> -> vector<8x128xf32>
    %331 = arith.addf %327, %330 : vector<8x128xf32>
    %332 = arith.mulf %331, %8 : vector<8x128xf32>
    %333 = math.tanh %332 : vector<8x128xf32>
    %334 = arith.mulf %333, %8 : vector<8x128xf32>
    %335 = arith.addf %334, %11 : vector<8x128xf32>
    %336 = vector.extract_strided_slice %335 {offsets = [0, 0], sizes = [8, 32], strides = [1, 1]} : vector<8x128xf32> to vector<8x32xf32>
    %337 = vector.extract_strided_slice %335 {offsets = [0, 32], sizes = [8, 32], strides = [1, 1]} : vector<8x128xf32> to vector<8x32xf32>
    %338 = vector.extract_strided_slice %335 {offsets = [0, 64], sizes = [8, 32], strides = [1, 1]} : vector<8x128xf32> to vector<8x32xf32>
    %339 = vector.extract_strided_slice %335 {offsets = [0, 96], sizes = [8, 32], strides = [1, 1]} : vector<8x128xf32> to vector<8x32xf32>
    %340 = arith.mulf %337, %274 : vector<8x32xf32>
    %341 = arith.mulf %336, %338 : vector<8x32xf32>
    %342 = arith.addf %340, %341 : vector<8x32xf32>
    %343 = math.tanh %342 : vector<8x32xf32>
    %344 = arith.mulf %339, %343 : vector<8x32xf32>
    %c1_160 = arith.constant 1 : index
    %c0_161 = arith.constant 0 : index
    %c0_162 = arith.constant 0 : index
    %345 = vector.load %arg2[%c1_160, %c0_161, %c0_162] : memref<2x32x128xf32, #tpu.memory_space<vmem>>, vector<1x32x128xf32>
    %346 = vector.shape_cast %345 : vector<1x32x128xf32> to vector<32x128xf32>
    %cst_163 = arith.constant dense<0.000000e+00> : vector<8x128xf32>
    %347 = tpu.matmul %276, %346, %cst_163 {dimension_numbers = #tpu.dot_dimension_numbers<[1], [0], [0], [1], [0, 0, 1, 1], [], []>} : vector<8x32xf32>, vector<32x128xf32>, vector<8x128xf32> -> vector<8x128xf32>
    %c2_164 = arith.constant 2 : index
    %c0_165 = arith.constant 0 : index
    %c0_166 = arith.constant 0 : index
    %348 = vector.load %arg4[%c2_164, %c0_165, %c0_166] : memref<3x1x128xf32, #tpu.memory_space<vmem>>, vector<1x1x128xf32>
    %349 = vector.shape_cast %348 : vector<1x1x128xf32> to vector<1x128xf32>
    %350 = vector.broadcast %349 : vector<1x128xf32> to vector<8x128xf32>
    %351 = arith.addf %347, %350 : vector<8x128xf32>
    %c2_167 = arith.constant 2 : index
    %c0_168 = arith.constant 0 : index
    %c0_169 = arith.constant 0 : index
    %352 = vector.load %arg3[%c2_167, %c0_168, %c0_169] : memref<3x32x128xf32, #tpu.memory_space<vmem>>, vector<1x32x128xf32>
    %353 = vector.shape_cast %352 : vector<1x32x128xf32> to vector<32x128xf32>
    %cst_170 = arith.constant dense<0.000000e+00> : vector<8x128xf32>
    %354 = tpu.matmul %300, %353, %cst_170 {dimension_numbers = #tpu.dot_dimension_numbers<[1], [0], [0], [1], [0, 0, 1, 1], [], []>} : vector<8x32xf32>, vector<32x128xf32>, vector<8x128xf32> -> vector<8x128xf32>
    %355 = arith.addf %351, %354 : vector<8x128xf32>
    %356 = arith.mulf %355, %8 : vector<8x128xf32>
    %357 = math.tanh %356 : vector<8x128xf32>
    %358 = arith.mulf %357, %8 : vector<8x128xf32>
    %359 = arith.addf %358, %11 : vector<8x128xf32>
    %360 = vector.extract_strided_slice %359 {offsets = [0, 0], sizes = [8, 32], strides = [1, 1]} : vector<8x128xf32> to vector<8x32xf32>
    %361 = vector.extract_strided_slice %359 {offsets = [0, 32], sizes = [8, 32], strides = [1, 1]} : vector<8x128xf32> to vector<8x32xf32>
    %362 = vector.extract_strided_slice %359 {offsets = [0, 64], sizes = [8, 32], strides = [1, 1]} : vector<8x128xf32> to vector<8x32xf32>
    %363 = vector.extract_strided_slice %359 {offsets = [0, 96], sizes = [8, 32], strides = [1, 1]} : vector<8x128xf32> to vector<8x32xf32>
    %364 = arith.mulf %361, %298 : vector<8x32xf32>
    %365 = arith.mulf %360, %362 : vector<8x32xf32>
    %366 = arith.addf %364, %365 : vector<8x32xf32>
    %367 = math.tanh %366 : vector<8x32xf32>
    %368 = arith.mulf %363, %367 : vector<8x32xf32>
    %c24 = arith.constant 24 : index
    %c0_171 = arith.constant 0 : index
    %369 = vector.load %arg13[%c24, %c0_171] : memref<64x32xf32, #tpu.memory_space<vmem>>, vector<8x32xf32>
    tpu.vector_store %arg13[%c24, %c0_171], %368 {strides = array<i32>} : memref<64x32xf32, #tpu.memory_space<vmem>>, vector<8x32xf32>,
    %c6 = arith.constant 6 : index
    %c0_172 = arith.constant 0 : index
    %c0_173 = arith.constant 0 : index
    %370 = vector.load %arg12[%c6, %c0_172, %c0_173] : memref<8x8x128xf32, #tpu.memory_space<vmem>>, vector<1x8x128xf32>
    %371 = vector.shape_cast %370 : vector<1x8x128xf32> to vector<8x128xf32>
    %c0_174 = arith.constant 0 : index
    %c0_175 = arith.constant 0 : index
    %c0_176 = arith.constant 0 : index
    %372 = vector.load %arg3[%c0_174, %c0_175, %c0_176] : memref<3x32x128xf32, #tpu.memory_space<vmem>>, vector<1x32x128xf32>
    %373 = vector.shape_cast %372 : vector<1x32x128xf32> to vector<32x128xf32>
    %cst_177 = arith.constant dense<0.000000e+00> : vector<8x128xf32>
    %374 = tpu.matmul %320, %373, %cst_177 {dimension_numbers = #tpu.dot_dimension_numbers<[1], [0], [0], [1], [0, 0, 1, 1], [], []>} : vector<8x32xf32>, vector<32x128xf32>, vector<8x128xf32> -> vector<8x128xf32>
    %375 = arith.addf %371, %374 : vector<8x128xf32>
    %376 = arith.mulf %375, %8 : vector<8x128xf32>
    %377 = math.tanh %376 : vector<8x128xf32>
    %378 = arith.mulf %377, %8 : vector<8x128xf32>
    %379 = arith.addf %378, %11 : vector<8x128xf32>
    %380 = vector.extract_strided_slice %379 {offsets = [0, 0], sizes = [8, 32], strides = [1, 1]} : vector<8x128xf32> to vector<8x32xf32>
    %381 = vector.extract_strided_slice %379 {offsets = [0, 32], sizes = [8, 32], strides = [1, 1]} : vector<8x128xf32> to vector<8x32xf32>
    %382 = vector.extract_strided_slice %379 {offsets = [0, 64], sizes = [8, 32], strides = [1, 1]} : vector<8x128xf32> to vector<8x32xf32>
    %383 = vector.extract_strided_slice %379 {offsets = [0, 96], sizes = [8, 32], strides = [1, 1]} : vector<8x128xf32> to vector<8x32xf32>
    %384 = arith.mulf %381, %318 : vector<8x32xf32>
    %385 = arith.mulf %380, %382 : vector<8x32xf32>
    %386 = arith.addf %384, %385 : vector<8x32xf32>
    %387 = math.tanh %386 : vector<8x32xf32>
    %388 = arith.mulf %383, %387 : vector<8x32xf32>
    %c0_178 = arith.constant 0 : index
    %c0_179 = arith.constant 0 : index
    %c0_180 = arith.constant 0 : index
    %389 = vector.load %arg2[%c0_178, %c0_179, %c0_180] : memref<2x32x128xf32, #tpu.memory_space<vmem>>, vector<1x32x128xf32>
    %390 = vector.shape_cast %389 : vector<1x32x128xf32> to vector<32x128xf32>
    %cst_181 = arith.constant dense<0.000000e+00> : vector<8x128xf32>
    %391 = tpu.matmul %320, %390, %cst_181 {dimension_numbers = #tpu.dot_dimension_numbers<[1], [0], [0], [1], [0, 0, 1, 1], [], []>} : vector<8x32xf32>, vector<32x128xf32>, vector<8x128xf32> -> vector<8x128xf32>
    %c1_182 = arith.constant 1 : index
    %c0_183 = arith.constant 0 : index
    %c0_184 = arith.constant 0 : index
    %392 = vector.load %arg4[%c1_182, %c0_183, %c0_184] : memref<3x1x128xf32, #tpu.memory_space<vmem>>, vector<1x1x128xf32>
    %393 = vector.shape_cast %392 : vector<1x1x128xf32> to vector<1x128xf32>
    %394 = vector.broadcast %393 : vector<1x128xf32> to vector<8x128xf32>
    %395 = arith.addf %391, %394 : vector<8x128xf32>
    %c1_185 = arith.constant 1 : index
    %c0_186 = arith.constant 0 : index
    %c0_187 = arith.constant 0 : index
    %396 = vector.load %arg3[%c1_185, %c0_186, %c0_187] : memref<3x32x128xf32, #tpu.memory_space<vmem>>, vector<1x32x128xf32>
    %397 = vector.shape_cast %396 : vector<1x32x128xf32> to vector<32x128xf32>
    %cst_188 = arith.constant dense<0.000000e+00> : vector<8x128xf32>
    %398 = tpu.matmul %344, %397, %cst_188 {dimension_numbers = #tpu.dot_dimension_numbers<[1], [0], [0], [1], [0, 0, 1, 1], [], []>} : vector<8x32xf32>, vector<32x128xf32>, vector<8x128xf32> -> vector<8x128xf32>
    %399 = arith.addf %395, %398 : vector<8x128xf32>
    %400 = arith.mulf %399, %8 : vector<8x128xf32>
    %401 = math.tanh %400 : vector<8x128xf32>
    %402 = arith.mulf %401, %8 : vector<8x128xf32>
    %403 = arith.addf %402, %11 : vector<8x128xf32>
    %404 = vector.extract_strided_slice %403 {offsets = [0, 0], sizes = [8, 32], strides = [1, 1]} : vector<8x128xf32> to vector<8x32xf32>
    %405 = vector.extract_strided_slice %403 {offsets = [0, 32], sizes = [8, 32], strides = [1, 1]} : vector<8x128xf32> to vector<8x32xf32>
    %406 = vector.extract_strided_slice %403 {offsets = [0, 64], sizes = [8, 32], strides = [1, 1]} : vector<8x128xf32> to vector<8x32xf32>
    %407 = vector.extract_strided_slice %403 {offsets = [0, 96], sizes = [8, 32], strides = [1, 1]} : vector<8x128xf32> to vector<8x32xf32>
    %408 = arith.mulf %405, %342 : vector<8x32xf32>
    %409 = arith.mulf %404, %406 : vector<8x32xf32>
    %410 = arith.addf %408, %409 : vector<8x32xf32>
    %411 = math.tanh %410 : vector<8x32xf32>
    %412 = arith.mulf %407, %411 : vector<8x32xf32>
    %c1_189 = arith.constant 1 : index
    %c0_190 = arith.constant 0 : index
    %c0_191 = arith.constant 0 : index
    %413 = vector.load %arg2[%c1_189, %c0_190, %c0_191] : memref<2x32x128xf32, #tpu.memory_space<vmem>>, vector<1x32x128xf32>
    %414 = vector.shape_cast %413 : vector<1x32x128xf32> to vector<32x128xf32>
    %cst_192 = arith.constant dense<0.000000e+00> : vector<8x128xf32>
    %415 = tpu.matmul %344, %414, %cst_192 {dimension_numbers = #tpu.dot_dimension_numbers<[1], [0], [0], [1], [0, 0, 1, 1], [], []>} : vector<8x32xf32>, vector<32x128xf32>, vector<8x128xf32> -> vector<8x128xf32>
    %c2_193 = arith.constant 2 : index
    %c0_194 = arith.constant 0 : index
    %c0_195 = arith.constant 0 : index
    %416 = vector.load %arg4[%c2_193, %c0_194, %c0_195] : memref<3x1x128xf32, #tpu.memory_space<vmem>>, vector<1x1x128xf32>
    %417 = vector.shape_cast %416 : vector<1x1x128xf32> to vector<1x128xf32>
    %418 = vector.broadcast %417 : vector<1x128xf32> to vector<8x128xf32>
    %419 = arith.addf %415, %418 : vector<8x128xf32>
    %c2_196 = arith.constant 2 : index
    %c0_197 = arith.constant 0 : index
    %c0_198 = arith.constant 0 : index
    %420 = vector.load %arg3[%c2_196, %c0_197, %c0_198] : memref<3x32x128xf32, #tpu.memory_space<vmem>>, vector<1x32x128xf32>
    %421 = vector.shape_cast %420 : vector<1x32x128xf32> to vector<32x128xf32>
    %cst_199 = arith.constant dense<0.000000e+00> : vector<8x128xf32>
    %422 = tpu.matmul %368, %421, %cst_199 {dimension_numbers = #tpu.dot_dimension_numbers<[1], [0], [0], [1], [0, 0, 1, 1], [], []>} : vector<8x32xf32>, vector<32x128xf32>, vector<8x128xf32> -> vector<8x128xf32>
    %423 = arith.addf %419, %422 : vector<8x128xf32>
    %424 = arith.mulf %423, %8 : vector<8x128xf32>
    %425 = math.tanh %424 : vector<8x128xf32>
    %426 = arith.mulf %425, %8 : vector<8x128xf32>
    %427 = arith.addf %426, %11 : vector<8x128xf32>
    %428 = vector.extract_strided_slice %427 {offsets = [0, 0], sizes = [8, 32], strides = [1, 1]} : vector<8x128xf32> to vector<8x32xf32>
    %429 = vector.extract_strided_slice %427 {offsets = [0, 32], sizes = [8, 32], strides = [1, 1]} : vector<8x128xf32> to vector<8x32xf32>
    %430 = vector.extract_strided_slice %427 {offsets = [0, 64], sizes = [8, 32], strides = [1, 1]} : vector<8x128xf32> to vector<8x32xf32>
    %431 = vector.extract_strided_slice %427 {offsets = [0, 96], sizes = [8, 32], strides = [1, 1]} : vector<8x128xf32> to vector<8x32xf32>
    %432 = arith.mulf %429, %366 : vector<8x32xf32>
    %433 = arith.mulf %428, %430 : vector<8x32xf32>
    %434 = arith.addf %432, %433 : vector<8x32xf32>
    %435 = math.tanh %434 : vector<8x32xf32>
    %436 = arith.mulf %431, %435 : vector<8x32xf32>
    %c32 = arith.constant 32 : index
    %c0_200 = arith.constant 0 : index
    %437 = vector.load %arg13[%c32, %c0_200] : memref<64x32xf32, #tpu.memory_space<vmem>>, vector<8x32xf32>
    tpu.vector_store %arg13[%c32, %c0_200], %436 {strides = array<i32>} : memref<64x32xf32, #tpu.memory_space<vmem>>, vector<8x32xf32>,
    %c7 = arith.constant 7 : index
    %c0_201 = arith.constant 0 : index
    %c0_202 = arith.constant 0 : index
    %438 = vector.load %arg12[%c7, %c0_201, %c0_202] : memref<8x8x128xf32, #tpu.memory_space<vmem>>, vector<1x8x128xf32>
    %439 = vector.shape_cast %438 : vector<1x8x128xf32> to vector<8x128xf32>
    %c0_203 = arith.constant 0 : index
    %c0_204 = arith.constant 0 : index
    %c0_205 = arith.constant 0 : index
    %440 = vector.load %arg3[%c0_203, %c0_204, %c0_205] : memref<3x32x128xf32, #tpu.memory_space<vmem>>, vector<1x32x128xf32>
    %441 = vector.shape_cast %440 : vector<1x32x128xf32> to vector<32x128xf32>
    %cst_206 = arith.constant dense<0.000000e+00> : vector<8x128xf32>
    %442 = tpu.matmul %388, %441, %cst_206 {dimension_numbers = #tpu.dot_dimension_numbers<[1], [0], [0], [1], [0, 0, 1, 1], [], []>} : vector<8x32xf32>, vector<32x128xf32>, vector<8x128xf32> -> vector<8x128xf32>
    %443 = arith.addf %439, %442 : vector<8x128xf32>
    %444 = arith.mulf %443, %8 : vector<8x128xf32>
    %445 = math.tanh %444 : vector<8x128xf32>
    %446 = arith.mulf %445, %8 : vector<8x128xf32>
    %447 = arith.addf %446, %11 : vector<8x128xf32>
    %448 = vector.extract_strided_slice %447 {offsets = [0, 0], sizes = [8, 32], strides = [1, 1]} : vector<8x128xf32> to vector<8x32xf32>
    %449 = vector.extract_strided_slice %447 {offsets = [0, 32], sizes = [8, 32], strides = [1, 1]} : vector<8x128xf32> to vector<8x32xf32>
    %450 = vector.extract_strided_slice %447 {offsets = [0, 64], sizes = [8, 32], strides = [1, 1]} : vector<8x128xf32> to vector<8x32xf32>
    %451 = vector.extract_strided_slice %447 {offsets = [0, 96], sizes = [8, 32], strides = [1, 1]} : vector<8x128xf32> to vector<8x32xf32>
    %452 = arith.mulf %449, %386 : vector<8x32xf32>
    %453 = arith.mulf %448, %450 : vector<8x32xf32>
    %454 = arith.addf %452, %453 : vector<8x32xf32>
    %455 = math.tanh %454 : vector<8x32xf32>
    %456 = arith.mulf %451, %455 : vector<8x32xf32>
    %c0_207 = arith.constant 0 : index
    %c0_208 = arith.constant 0 : index
    %c0_209 = arith.constant 0 : index
    %457 = vector.load %arg2[%c0_207, %c0_208, %c0_209] : memref<2x32x128xf32, #tpu.memory_space<vmem>>, vector<1x32x128xf32>
    %458 = vector.shape_cast %457 : vector<1x32x128xf32> to vector<32x128xf32>
    %cst_210 = arith.constant dense<0.000000e+00> : vector<8x128xf32>
    %459 = tpu.matmul %388, %458, %cst_210 {dimension_numbers = #tpu.dot_dimension_numbers<[1], [0], [0], [1], [0, 0, 1, 1], [], []>} : vector<8x32xf32>, vector<32x128xf32>, vector<8x128xf32> -> vector<8x128xf32>
    %c1_211 = arith.constant 1 : index
    %c0_212 = arith.constant 0 : index
    %c0_213 = arith.constant 0 : index
    %460 = vector.load %arg4[%c1_211, %c0_212, %c0_213] : memref<3x1x128xf32, #tpu.memory_space<vmem>>, vector<1x1x128xf32>
    %461 = vector.shape_cast %460 : vector<1x1x128xf32> to vector<1x128xf32>
    %462 = vector.broadcast %461 : vector<1x128xf32> to vector<8x128xf32>
    %463 = arith.addf %459, %462 : vector<8x128xf32>
    %c1_214 = arith.constant 1 : index
    %c0_215 = arith.constant 0 : index
    %c0_216 = arith.constant 0 : index
    %464 = vector.load %arg3[%c1_214, %c0_215, %c0_216] : memref<3x32x128xf32, #tpu.memory_space<vmem>>, vector<1x32x128xf32>
    %465 = vector.shape_cast %464 : vector<1x32x128xf32> to vector<32x128xf32>
    %cst_217 = arith.constant dense<0.000000e+00> : vector<8x128xf32>
    %466 = tpu.matmul %412, %465, %cst_217 {dimension_numbers = #tpu.dot_dimension_numbers<[1], [0], [0], [1], [0, 0, 1, 1], [], []>} : vector<8x32xf32>, vector<32x128xf32>, vector<8x128xf32> -> vector<8x128xf32>
    %467 = arith.addf %463, %466 : vector<8x128xf32>
    %468 = arith.mulf %467, %8 : vector<8x128xf32>
    %469 = math.tanh %468 : vector<8x128xf32>
    %470 = arith.mulf %469, %8 : vector<8x128xf32>
    %471 = arith.addf %470, %11 : vector<8x128xf32>
    %472 = vector.extract_strided_slice %471 {offsets = [0, 0], sizes = [8, 32], strides = [1, 1]} : vector<8x128xf32> to vector<8x32xf32>
    %473 = vector.extract_strided_slice %471 {offsets = [0, 32], sizes = [8, 32], strides = [1, 1]} : vector<8x128xf32> to vector<8x32xf32>
    %474 = vector.extract_strided_slice %471 {offsets = [0, 64], sizes = [8, 32], strides = [1, 1]} : vector<8x128xf32> to vector<8x32xf32>
    %475 = vector.extract_strided_slice %471 {offsets = [0, 96], sizes = [8, 32], strides = [1, 1]} : vector<8x128xf32> to vector<8x32xf32>
    %476 = arith.mulf %473, %410 : vector<8x32xf32>
    %477 = arith.mulf %472, %474 : vector<8x32xf32>
    %478 = arith.addf %476, %477 : vector<8x32xf32>
    %479 = math.tanh %478 : vector<8x32xf32>
    %480 = arith.mulf %475, %479 : vector<8x32xf32>
    %c1_218 = arith.constant 1 : index
    %c0_219 = arith.constant 0 : index
    %c0_220 = arith.constant 0 : index
    %481 = vector.load %arg2[%c1_218, %c0_219, %c0_220] : memref<2x32x128xf32, #tpu.memory_space<vmem>>, vector<1x32x128xf32>
    %482 = vector.shape_cast %481 : vector<1x32x128xf32> to vector<32x128xf32>
    %cst_221 = arith.constant dense<0.000000e+00> : vector<8x128xf32>
    %483 = tpu.matmul %412, %482, %cst_221 {dimension_numbers = #tpu.dot_dimension_numbers<[1], [0], [0], [1], [0, 0, 1, 1], [], []>} : vector<8x32xf32>, vector<32x128xf32>, vector<8x128xf32> -> vector<8x128xf32>
    %c2_222 = arith.constant 2 : index
    %c0_223 = arith.constant 0 : index
    %c0_224 = arith.constant 0 : index
    %484 = vector.load %arg4[%c2_222, %c0_223, %c0_224] : memref<3x1x128xf32, #tpu.memory_space<vmem>>, vector<1x1x128xf32>
    %485 = vector.shape_cast %484 : vector<1x1x128xf32> to vector<1x128xf32>
    %486 = vector.broadcast %485 : vector<1x128xf32> to vector<8x128xf32>
    %487 = arith.addf %483, %486 : vector<8x128xf32>
    %c2_225 = arith.constant 2 : index
    %c0_226 = arith.constant 0 : index
    %c0_227 = arith.constant 0 : index
    %488 = vector.load %arg3[%c2_225, %c0_226, %c0_227] : memref<3x32x128xf32, #tpu.memory_space<vmem>>, vector<1x32x128xf32>
    %489 = vector.shape_cast %488 : vector<1x32x128xf32> to vector<32x128xf32>
    %cst_228 = arith.constant dense<0.000000e+00> : vector<8x128xf32>
    %490 = tpu.matmul %436, %489, %cst_228 {dimension_numbers = #tpu.dot_dimension_numbers<[1], [0], [0], [1], [0, 0, 1, 1], [], []>} : vector<8x32xf32>, vector<32x128xf32>, vector<8x128xf32> -> vector<8x128xf32>
    %491 = arith.addf %487, %490 : vector<8x128xf32>
    %492 = arith.mulf %491, %8 : vector<8x128xf32>
    %493 = math.tanh %492 : vector<8x128xf32>
    %494 = arith.mulf %493, %8 : vector<8x128xf32>
    %495 = arith.addf %494, %11 : vector<8x128xf32>
    %496 = vector.extract_strided_slice %495 {offsets = [0, 0], sizes = [8, 32], strides = [1, 1]} : vector<8x128xf32> to vector<8x32xf32>
    %497 = vector.extract_strided_slice %495 {offsets = [0, 32], sizes = [8, 32], strides = [1, 1]} : vector<8x128xf32> to vector<8x32xf32>
    %498 = vector.extract_strided_slice %495 {offsets = [0, 64], sizes = [8, 32], strides = [1, 1]} : vector<8x128xf32> to vector<8x32xf32>
    %499 = vector.extract_strided_slice %495 {offsets = [0, 96], sizes = [8, 32], strides = [1, 1]} : vector<8x128xf32> to vector<8x32xf32>
    %500 = arith.mulf %497, %434 : vector<8x32xf32>
    %501 = arith.mulf %496, %498 : vector<8x32xf32>
    %502 = arith.addf %500, %501 : vector<8x32xf32>
    %503 = math.tanh %502 : vector<8x32xf32>
    %504 = arith.mulf %499, %503 : vector<8x32xf32>
    %c40 = arith.constant 40 : index
    %c0_229 = arith.constant 0 : index
    %505 = vector.load %arg13[%c40, %c0_229] : memref<64x32xf32, #tpu.memory_space<vmem>>, vector<8x32xf32>
    tpu.vector_store %arg13[%c40, %c0_229], %504 {strides = array<i32>} : memref<64x32xf32, #tpu.memory_space<vmem>>, vector<8x32xf32>,
    %c0_230 = arith.constant 0 : index
    %c0_231 = arith.constant 0 : index
    %c0_232 = arith.constant 0 : index
    %506 = vector.load %arg2[%c0_230, %c0_231, %c0_232] : memref<2x32x128xf32, #tpu.memory_space<vmem>>, vector<1x32x128xf32>
    %507 = vector.shape_cast %506 : vector<1x32x128xf32> to vector<32x128xf32>
    %cst_233 = arith.constant dense<0.000000e+00> : vector<8x128xf32>
    %508 = tpu.matmul %456, %507, %cst_233 {dimension_numbers = #tpu.dot_dimension_numbers<[1], [0], [0], [1], [0, 0, 1, 1], [], []>} : vector<8x32xf32>, vector<32x128xf32>, vector<8x128xf32> -> vector<8x128xf32>
    %c1_234 = arith.constant 1 : index
    %c0_235 = arith.constant 0 : index
    %c0_236 = arith.constant 0 : index
    %509 = vector.load %arg4[%c1_234, %c0_235, %c0_236] : memref<3x1x128xf32, #tpu.memory_space<vmem>>, vector<1x1x128xf32>
    %510 = vector.shape_cast %509 : vector<1x1x128xf32> to vector<1x128xf32>
    %511 = vector.broadcast %510 : vector<1x128xf32> to vector<8x128xf32>
    %512 = arith.addf %508, %511 : vector<8x128xf32>
    %c1_237 = arith.constant 1 : index
    %c0_238 = arith.constant 0 : index
    %c0_239 = arith.constant 0 : index
    %513 = vector.load %arg3[%c1_237, %c0_238, %c0_239] : memref<3x32x128xf32, #tpu.memory_space<vmem>>, vector<1x32x128xf32>
    %514 = vector.shape_cast %513 : vector<1x32x128xf32> to vector<32x128xf32>
    %cst_240 = arith.constant dense<0.000000e+00> : vector<8x128xf32>
    %515 = tpu.matmul %480, %514, %cst_240 {dimension_numbers = #tpu.dot_dimension_numbers<[1], [0], [0], [1], [0, 0, 1, 1], [], []>} : vector<8x32xf32>, vector<32x128xf32>, vector<8x128xf32> -> vector<8x128xf32>
    %516 = arith.addf %512, %515 : vector<8x128xf32>
    %517 = arith.mulf %516, %8 : vector<8x128xf32>
    %518 = math.tanh %517 : vector<8x128xf32>
    %519 = arith.mulf %518, %8 : vector<8x128xf32>
    %520 = arith.addf %519, %11 : vector<8x128xf32>
    %521 = vector.extract_strided_slice %520 {offsets = [0, 0], sizes = [8, 32], strides = [1, 1]} : vector<8x128xf32> to vector<8x32xf32>
    %522 = vector.extract_strided_slice %520 {offsets = [0, 32], sizes = [8, 32], strides = [1, 1]} : vector<8x128xf32> to vector<8x32xf32>
    %523 = vector.extract_strided_slice %520 {offsets = [0, 64], sizes = [8, 32], strides = [1, 1]} : vector<8x128xf32> to vector<8x32xf32>
    %524 = vector.extract_strided_slice %520 {offsets = [0, 96], sizes = [8, 32], strides = [1, 1]} : vector<8x128xf32> to vector<8x32xf32>
    %525 = arith.mulf %522, %478 : vector<8x32xf32>
    %526 = arith.mulf %521, %523 : vector<8x32xf32>
    %527 = arith.addf %525, %526 : vector<8x32xf32>
    %528 = math.tanh %527 : vector<8x32xf32>
    %529 = arith.mulf %524, %528 : vector<8x32xf32>
    %c1_241 = arith.constant 1 : index
    %c0_242 = arith.constant 0 : index
    %c0_243 = arith.constant 0 : index
    %530 = vector.load %arg2[%c1_241, %c0_242, %c0_243] : memref<2x32x128xf32, #tpu.memory_space<vmem>>, vector<1x32x128xf32>
    %531 = vector.shape_cast %530 : vector<1x32x128xf32> to vector<32x128xf32>
    %cst_244 = arith.constant dense<0.000000e+00> : vector<8x128xf32>
    %532 = tpu.matmul %480, %531, %cst_244 {dimension_numbers = #tpu.dot_dimension_numbers<[1], [0], [0], [1], [0, 0, 1, 1], [], []>} : vector<8x32xf32>, vector<32x128xf32>, vector<8x128xf32> -> vector<8x128xf32>
    %c2_245 = arith.constant 2 : index
    %c0_246 = arith.constant 0 : index
    %c0_247 = arith.constant 0 : index
    %533 = vector.load %arg4[%c2_245, %c0_246, %c0_247] : memref<3x1x128xf32, #tpu.memory_space<vmem>>, vector<1x1x128xf32>
    %534 = vector.shape_cast %533 : vector<1x1x128xf32> to vector<1x128xf32>
    %535 = vector.broadcast %534 : vector<1x128xf32> to vector<8x128xf32>
    %536 = arith.addf %532, %535 : vector<8x128xf32>
    %c2_248 = arith.constant 2 : index
    %c0_249 = arith.constant 0 : index
    %c0_250 = arith.constant 0 : index
    %537 = vector.load %arg3[%c2_248, %c0_249, %c0_250] : memref<3x32x128xf32, #tpu.memory_space<vmem>>, vector<1x32x128xf32>
    %538 = vector.shape_cast %537 : vector<1x32x128xf32> to vector<32x128xf32>
    %cst_251 = arith.constant dense<0.000000e+00> : vector<8x128xf32>
    %539 = tpu.matmul %504, %538, %cst_251 {dimension_numbers = #tpu.dot_dimension_numbers<[1], [0], [0], [1], [0, 0, 1, 1], [], []>} : vector<8x32xf32>, vector<32x128xf32>, vector<8x128xf32> -> vector<8x128xf32>
    %540 = arith.addf %536, %539 : vector<8x128xf32>
    %541 = arith.mulf %540, %8 : vector<8x128xf32>
    %542 = math.tanh %541 : vector<8x128xf32>
    %543 = arith.mulf %542, %8 : vector<8x128xf32>
    %544 = arith.addf %543, %11 : vector<8x128xf32>
    %545 = vector.extract_strided_slice %544 {offsets = [0, 0], sizes = [8, 32], strides = [1, 1]} : vector<8x128xf32> to vector<8x32xf32>
    %546 = vector.extract_strided_slice %544 {offsets = [0, 32], sizes = [8, 32], strides = [1, 1]} : vector<8x128xf32> to vector<8x32xf32>
    %547 = vector.extract_strided_slice %544 {offsets = [0, 64], sizes = [8, 32], strides = [1, 1]} : vector<8x128xf32> to vector<8x32xf32>
    %548 = vector.extract_strided_slice %544 {offsets = [0, 96], sizes = [8, 32], strides = [1, 1]} : vector<8x128xf32> to vector<8x32xf32>
    %549 = arith.mulf %546, %502 : vector<8x32xf32>
    %550 = arith.mulf %545, %547 : vector<8x32xf32>
    %551 = arith.addf %549, %550 : vector<8x32xf32>
    %552 = math.tanh %551 : vector<8x32xf32>
    %553 = arith.mulf %548, %552 : vector<8x32xf32>
    %c48 = arith.constant 48 : index
    %c0_252 = arith.constant 0 : index
    %554 = vector.load %arg13[%c48, %c0_252] : memref<64x32xf32, #tpu.memory_space<vmem>>, vector<8x32xf32>
    tpu.vector_store %arg13[%c48, %c0_252], %553 {strides = array<i32>} : memref<64x32xf32, #tpu.memory_space<vmem>>, vector<8x32xf32>,
    %c1_253 = arith.constant 1 : index
    %c0_254 = arith.constant 0 : index
    %c0_255 = arith.constant 0 : index
    %555 = vector.load %arg2[%c1_253, %c0_254, %c0_255] : memref<2x32x128xf32, #tpu.memory_space<vmem>>, vector<1x32x128xf32>
    %556 = vector.shape_cast %555 : vector<1x32x128xf32> to vector<32x128xf32>
    %cst_256 = arith.constant dense<0.000000e+00> : vector<8x128xf32>
    %557 = tpu.matmul %529, %556, %cst_256 {dimension_numbers = #tpu.dot_dimension_numbers<[1], [0], [0], [1], [0, 0, 1, 1], [], []>} : vector<8x32xf32>, vector<32x128xf32>, vector<8x128xf32> -> vector<8x128xf32>
    %c2_257 = arith.constant 2 : index
    %c0_258 = arith.constant 0 : index
    %c0_259 = arith.constant 0 : index
    %558 = vector.load %arg4[%c2_257, %c0_258, %c0_259] : memref<3x1x128xf32, #tpu.memory_space<vmem>>, vector<1x1x128xf32>
    %559 = vector.shape_cast %558 : vector<1x1x128xf32> to vector<1x128xf32>
    %560 = vector.broadcast %559 : vector<1x128xf32> to vector<8x128xf32>
    %561 = arith.addf %557, %560 : vector<8x128xf32>
    %c2_260 = arith.constant 2 : index
    %c0_261 = arith.constant 0 : index
    %c0_262 = arith.constant 0 : index
    %562 = vector.load %arg3[%c2_260, %c0_261, %c0_262] : memref<3x32x128xf32, #tpu.memory_space<vmem>>, vector<1x32x128xf32>
    %563 = vector.shape_cast %562 : vector<1x32x128xf32> to vector<32x128xf32>
    %cst_263 = arith.constant dense<0.000000e+00> : vector<8x128xf32>
    %564 = tpu.matmul %553, %563, %cst_263 {dimension_numbers = #tpu.dot_dimension_numbers<[1], [0], [0], [1], [0, 0, 1, 1], [], []>} : vector<8x32xf32>, vector<32x128xf32>, vector<8x128xf32> -> vector<8x128xf32>
    %565 = arith.addf %561, %564 : vector<8x128xf32>
    %566 = arith.mulf %565, %8 : vector<8x128xf32>
    %567 = math.tanh %566 : vector<8x128xf32>
    %568 = arith.mulf %567, %8 : vector<8x128xf32>
    %569 = arith.addf %568, %11 : vector<8x128xf32>
    %570 = vector.extract_strided_slice %569 {offsets = [0, 0], sizes = [8, 32], strides = [1, 1]} : vector<8x128xf32> to vector<8x32xf32>
    %571 = vector.extract_strided_slice %569 {offsets = [0, 32], sizes = [8, 32], strides = [1, 1]} : vector<8x128xf32> to vector<8x32xf32>
    %572 = vector.extract_strided_slice %569 {offsets = [0, 64], sizes = [8, 32], strides = [1, 1]} : vector<8x128xf32> to vector<8x32xf32>
    %573 = vector.extract_strided_slice %569 {offsets = [0, 96], sizes = [8, 32], strides = [1, 1]} : vector<8x128xf32> to vector<8x32xf32>
    %574 = arith.mulf %571, %551 : vector<8x32xf32>
    %575 = arith.mulf %570, %572 : vector<8x32xf32>
    %576 = arith.addf %574, %575 : vector<8x32xf32>
    %577 = math.tanh %576 : vector<8x32xf32>
    %578 = arith.mulf %573, %577 : vector<8x32xf32>
    %c56 = arith.constant 56 : index
    %c0_264 = arith.constant 0 : index
    %579 = vector.load %arg13[%c56, %c0_264] : memref<64x32xf32, #tpu.memory_space<vmem>>, vector<8x32xf32>
    tpu.vector_store %arg13[%c56, %c0_264], %578 {strides = array<i32>} : memref<64x32xf32, #tpu.memory_space<vmem>>, vector<8x32xf32>,
    %c0_265 = arith.constant 0 : index
    %c0_266 = arith.constant 0 : index
    %c0_267 = arith.constant 0 : index
    %580 = vector.load %arg10[%c0_265, %c0_266, %c0_267] : memref<3x8x32xf32, #tpu.memory_space<vmem>>, vector<1x8x32xf32>
    %581 = vector.shape_cast %580 : vector<1x8x32xf32> to vector<8x32xf32>
    %582 = vector.shape_cast %456 : vector<8x32xf32> to vector<1x8x32xf32>
    tpu.vector_store %arg10[%c0_265, %c0_266, %c0_267], %582 {strides = array<i32>} : memref<3x8x32xf32, #tpu.memory_space<vmem>>, vector<1x8x32xf32>,
    %c0_268 = arith.constant 0 : index
    %c0_269 = arith.constant 0 : index
    %c0_270 = arith.constant 0 : index
    %583 = vector.load %arg11[%c0_268, %c0_269, %c0_270] : memref<3x8x32xf32, #tpu.memory_space<vmem>>, vector<1x8x32xf32>
    %584 = vector.shape_cast %583 : vector<1x8x32xf32> to vector<8x32xf32>
    %585 = vector.shape_cast %454 : vector<8x32xf32> to vector<1x8x32xf32>
    tpu.vector_store %arg11[%c0_268, %c0_269, %c0_270], %585 {strides = array<i32>} : memref<3x8x32xf32, #tpu.memory_space<vmem>>, vector<1x8x32xf32>,
    %c1_271 = arith.constant 1 : index
    %c0_272 = arith.constant 0 : index
    %c0_273 = arith.constant 0 : index
    %586 = vector.load %arg10[%c1_271, %c0_272, %c0_273] : memref<3x8x32xf32, #tpu.memory_space<vmem>>, vector<1x8x32xf32>
    %587 = vector.shape_cast %586 : vector<1x8x32xf32> to vector<8x32xf32>
    %588 = vector.shape_cast %529 : vector<8x32xf32> to vector<1x8x32xf32>
    tpu.vector_store %arg10[%c1_271, %c0_272, %c0_273], %588 {strides = array<i32>} : memref<3x8x32xf32, #tpu.memory_space<vmem>>, vector<1x8x32xf32>,
    %c1_274 = arith.constant 1 : index
    %c0_275 = arith.constant 0 : index
    %c0_276 = arith.constant 0 : index
    %589 = vector.load %arg11[%c1_274, %c0_275, %c0_276] : memref<3x8x32xf32, #tpu.memory_space<vmem>>, vector<1x8x32xf32>
    %590 = vector.shape_cast %589 : vector<1x8x32xf32> to vector<8x32xf32>
    %591 = vector.shape_cast %527 : vector<8x32xf32> to vector<1x8x32xf32>
    tpu.vector_store %arg11[%c1_274, %c0_275, %c0_276], %591 {strides = array<i32>} : memref<3x8x32xf32, #tpu.memory_space<vmem>>, vector<1x8x32xf32>,
    %c2_277 = arith.constant 2 : index
    %c0_278 = arith.constant 0 : index
    %c0_279 = arith.constant 0 : index
    %592 = vector.load %arg10[%c2_277, %c0_278, %c0_279] : memref<3x8x32xf32, #tpu.memory_space<vmem>>, vector<1x8x32xf32>
    %593 = vector.shape_cast %592 : vector<1x8x32xf32> to vector<8x32xf32>
    %594 = vector.shape_cast %578 : vector<8x32xf32> to vector<1x8x32xf32>
    tpu.vector_store %arg10[%c2_277, %c0_278, %c0_279], %594 {strides = array<i32>} : memref<3x8x32xf32, #tpu.memory_space<vmem>>, vector<1x8x32xf32>,
    %c2_280 = arith.constant 2 : index
    %c0_281 = arith.constant 0 : index
    %c0_282 = arith.constant 0 : index
    %595 = vector.load %arg11[%c2_280, %c0_281, %c0_282] : memref<3x8x32xf32, #tpu.memory_space<vmem>>, vector<1x8x32xf32>
    %596 = vector.shape_cast %595 : vector<1x8x32xf32> to vector<8x32xf32>
    %597 = vector.shape_cast %576 : vector<8x32xf32> to vector<1x8x32xf32>
    tpu.vector_store %arg11[%c2_280, %c0_281, %c0_282], %597 {strides = array<i32>} : memref<3x8x32xf32, #tpu.memory_space<vmem>>, vector<1x8x32xf32>,
    %c0_283 = arith.constant 0 : index
    %c0_284 = arith.constant 0 : index
    %598 = vector.load %arg13[%c0_283, %c0_284] : memref<64x32xf32, #tpu.memory_space<vmem>>, vector<64x32xf32>
    %c0_285 = arith.constant 0 : index
    %c0_286 = arith.constant 0 : index
    %599 = vector.load %arg7[%c0_285, %c0_286] : memref<32x256xf32, #tpu.memory_space<vmem>>, vector<32x256xf32>
    %cst_287 = arith.constant dense<0.000000e+00> : vector<64x256xf32>
    %600 = tpu.matmul %598, %599, %cst_287 {dimension_numbers = #tpu.dot_dimension_numbers<[1], [0], [0], [1], [0, 0, 1, 1], [], []>} : vector<64x32xf32>, vector<32x256xf32>, vector<64x256xf32> -> vector<64x256xf32>
    %c0_288 = arith.constant 0 : index
    %c0_289 = arith.constant 0 : index
    %601 = vector.load %arg8[%c0_288, %c0_289] : memref<1x256xf32, #tpu.memory_space<vmem>>, vector<1x256xf32>
    %602 = vector.broadcast %601 : vector<1x256xf32> to vector<64x256xf32>
    %603 = arith.addf %600, %602 : vector<64x256xf32>
    %c0_290 = arith.constant 0 : index
    %c0_291 = arith.constant 0 : index
    %604 = vector.load %arg9[%c0_290, %c0_291] : memref<64x256xf32, #tpu.memory_space<vmem>>, vector<64x256xf32>
    tpu.vector_store %arg9[%c0_290, %c0_291], %603 {strides = array<i32>} : memref<64x256xf32, #tpu.memory_space<vmem>>, vector<64x256xf32>,
    return
  }
}

</mosaic_0001>

<llo_original>
// kernel: tpu_custom_call.1
$region0: #{tpu_custom_call.1}
  #allocation0 [shape = 'u32[]', space=smem, size = 0x4, offset = 0x4, fixed_abs, tag = 'smem constant byte address 0x4 - core index']
  #allocation1 [shape = 'u32[144,128]{1,0:T(1,128)}', space=vmem, size = 0x12000, scoped, tag = 'internal scratch']
  #allocation2 [shape = 'f32[8,8,128]{2,1,0:T(8,128)}', space=vmem, size = 0x8000, scoped, tag = 'scratch operand']
  #allocation3 [shape = 'f32[64,32]{1,0:T(8,128)}', space=vmem, size = 0x8000, scoped, tag = 'scratch operand']
  %s0 = inlined_call_operand.vmem [shape: f32[8,8,1], index: 0, kind: input, shape index: {}]
  %s1 = inlined_call_operand.hbm [shape: f32[1,128], index: 1, kind: input, shape index: {}]
  %s2 = inlined_call_operand.vmem [shape: f32[2,32,128], index: 2, kind: input, shape index: {}]
  %s3 = inlined_call_operand.hbm [shape: f32[3,32,128], index: 3, kind: input, shape index: {}]
  %s4 = inlined_call_operand.hbm [shape: f32[3,1,128], index: 4, kind: input, shape index: {}]
  %s5 = inlined_call_operand.vmem [shape: f32[3,8,32], index: 5, kind: input, shape index: {}]
  %s6 = inlined_call_operand.hbm [shape: f32[3,8,32], index: 6, kind: input, shape index: {}]
  %s7 = inlined_call_operand.hbm [shape: f32[32,256], index: 7, kind: input, shape index: {}]
  %s8 = inlined_call_operand.vmem [shape: f32[1,256], index: 8, kind: input, shape index: {}]
  %s9 = inlined_call_operand.hbm [shape: f32[64,256], index: 9, kind: output, shape index: {0}]
  %s10 = inlined_call_operand.hbm [shape: f32[3,8,32], index: 10, kind: output, shape index: {1}]
  %s11 = inlined_call_operand.hbm [shape: f32[3,8,32], index: 11, kind: output, shape index: {2}]
  %12 = xla_tuple %s9, %s10, %s11
  %s13 = sld [smem:[#allocation0]]
  $region82: #{tpu_custom_call.1} parent=0
    _
  %s15 = ssub.s32 1, %s13
  %s16 = scalar_select 0, %s15, %s13
  $region1: #{tpu_custom_call.1} parent=0
    #allocation4 [shape = 'u8[512]{0}', space=vmem, size = 0x400, scoped, tag = 'input window, operand 1, single buffered']
    #allocation5 [shape = 's32[1]{0}', space=sflag, size = 0x4, scoped, tag = 'scoped memory for tpu_custom_call.1']
    #allocation6 [shape = 's32[1]{0}', space=sflag, size = 0x4, scoped, tag = 'scoped memory for tpu_custom_call.1']
    #allocation7 [shape = 'u8[49152]{0}', space=vmem, size = 0xc000, scoped, tag = 'input window, operand 3, single buffered']
    #allocation8 [shape = 's32[1]{0}', space=sflag, size = 0x4, scoped, tag = 'scoped memory for tpu_custom_call.1']
    #allocation9 [shape = 'u8[1536]{0}', space=vmem, size = 0x800, scoped, tag = 'input window, operand 4, single buffered']
    #allocation10 [shape = 'u8[12288]{0}', space=vmem, size = 0x3000, scoped, tag = 'input window, operand 6, single buffered']
    #allocation11 [shape = 's32[1]{0}', space=sflag, size = 0x4, scoped, tag = 'scoped memory for tpu_custom_call.1']
    #allocation12 [shape = 'u8[32768]{0}', space=vmem, size = 0x8000, scoped, tag = 'input window, operand 7, single buffered']
    #allocation13 [shape = 'u8[65536]{0}', space=vmem, size = 0x10000, scoped, tag = 'output window, operand 0, single buffered']
    #allocation14 [shape = 'u8[12288]{0}', space=vmem, size = 0x3000, scoped, tag = 'output window, operand 1, single buffered']
    #allocation15 [shape = 's32[1]{0}', space=sflag, size = 0x4, scoped, tag = 'scoped memory for tpu_custom_call.1']
    #allocation16 [shape = 'u8[12288]{0}', space=vmem, size = 0x3000, scoped, tag = 'output window, operand 2, single buffered']
    %17 = vsyncpa [#allocation5], 0
    %18 = vsyncpa [#allocation8], 0
    %19 = vsyncpa [#allocation11], 0
    %20 = vsyncpa [#allocation6], 0
    %21 = vsyncpa [#allocation15], 0
    // Predicated region
    $region2: #{tpu_custom_call.1} parent=1 // pred_check
      _
    $region3: #{tpu_custom_call.1} parent=1 // pred_check_branch
      %23 = sbr.rel (0) target = $region5
    $region4: #{tpu_custom_call.1} parent=1 // pred_region
      _
    $region5: #{tpu_custom_call.1} parent=1 // pred_fallthru
      _
    // Predicated region
    $region6: #{tpu_custom_call.1} parent=1 // pred_check
      _
    $region7: #{tpu_custom_call.1} parent=1 // pred_check_branch
      %25 = sbr.rel (0) target = $region9
    $region8: #{tpu_custom_call.1} parent=1 // pred_region
      %s27 = ssub.s32 16, 16
      %28 = vsyncadd [#allocation5], %s27
      %s30 = sshll.u32 [#allocation4], 4
      %s31 = int_to_ptr.vmem [resolvable:$true] %s30
      %33 = dma.hbm_to_vmem [thread:$0]  %s1, 16, %s31, [#allocation5]
    $region9: #{tpu_custom_call.1} parent=1 // pred_fallthru
      _
    // Predicated region
    $region10: #{tpu_custom_call.1} parent=1 // pred_check
      _
    $region11: #{tpu_custom_call.1} parent=1 // pred_check_branch
      %35 = sbr.rel (0) target = $region13
    $region12: #{tpu_custom_call.1} parent=1 // pred_region
      _
    $region13: #{tpu_custom_call.1} parent=1 // pred_fallthru
      _
    // Predicated region
    $region14: #{tpu_custom_call.1} parent=1 // pred_check
      _
    $region15: #{tpu_custom_call.1} parent=1 // pred_check_branch
      %37 = sbr.rel (0) target = $region17
    $region16: #{tpu_custom_call.1} parent=1 // pred_region
      %s39 = ssub.s32 1536, 1536
      %40 = vsyncadd [#allocation8], %s39
      %s41 = sshll.u32 [#allocation7], 4
      %s42 = int_to_ptr.vmem [resolvable:$true] %s41
      %47 = dma.hbm_to_vmem [thread:$0]  %s3, 1536, %s42, [#allocation8], 128, 128, 8
    $region17: #{tpu_custom_call.1} parent=1 // pred_fallthru
      _
    // Predicated region
    $region18: #{tpu_custom_call.1} parent=1 // pred_check
      _
    $region19: #{tpu_custom_call.1} parent=1 // pred_check_branch
      %49 = sbr.rel (0) target = $region21
    $region20: #{tpu_custom_call.1} parent=1 // pred_region
      %s51 = ssub.s32 48, 48
      %52 = vsyncadd [#allocation8], %s51
      %s53 = sshll.u32 [#allocation9], 4
      %s54 = int_to_ptr.vmem [resolvable:$true] %s53
      %59 = dma.hbm_to_vmem [thread:$0]  %s4, 48, %s54, [#allocation8], 16, 16, 1
    $region21: #{tpu_custom_call.1} parent=1 // pred_fallthru
      _
    // Predicated region
    $region22: #{tpu_custom_call.1} parent=1 // pred_check
      _
    $region23: #{tpu_custom_call.1} parent=1 // pred_check_branch
      %61 = sbr.rel (0) target = $region25
    $region24: #{tpu_custom_call.1} parent=1 // pred_region
      _
    $region25: #{tpu_custom_call.1} parent=1 // pred_fallthru
      _
    // Predicated region
    $region26: #{tpu_custom_call.1} parent=1 // pred_check
      _
    $region27: #{tpu_custom_call.1} parent=1 // pred_check_branch
      %63 = sbr.rel (0) target = $region29
    $region28: #{tpu_custom_call.1} parent=1 // pred_region
      %s65 = ssub.s32 384, 384
      %66 = vsyncadd [#allocation11], %s65
      %s67 = sshll.u32 [#allocation10], 4
      %s68 = int_to_ptr.vmem [resolvable:$true] %s67
      %73 = dma.hbm_to_vmem [thread:$0]  %s6, 384, %s68, [#allocation11], 128, 128, 8
    $region29: #{tpu_custom_call.1} parent=1 // pred_fallthru
      _
    // Predicated region
    $region30: #{tpu_custom_call.1} parent=1 // pred_check
      _
    $region31: #{tpu_custom_call.1} parent=1 // pred_check_branch
      %75 = sbr.rel (0) target = $region33
    $region32: #{tpu_custom_call.1} parent=1 // pred_region
      %s77 = ssub.s32 1024, 1024
      %78 = vsyncadd [#allocation11], %s77
      %s79 = sshll.u32 [#allocation12], 4
      %s80 = int_to_ptr.vmem [resolvable:$true] %s79
      %85 = dma.hbm_to_vmem [thread:$0]  %s7, 1024, %s80, [#allocation11], 256, 256, 16
    $region33: #{tpu_custom_call.1} parent=1 // pred_fallthru
      _
    // Predicated region
    $region34: #{tpu_custom_call.1} parent=1 // pred_check
      _
    $region35: #{tpu_custom_call.1} parent=1 // pred_check_branch
      %87 = sbr.rel (0) target = $region37
    $region36: #{tpu_custom_call.1} parent=1 // pred_region
      _
    $region37: #{tpu_custom_call.1} parent=1 // pred_fallthru
      _
    // Predicated region
    $region38: #{tpu_custom_call.1} parent=1 // pred_check
      _
    $region39: #{tpu_custom_call.1} parent=1 // pred_check_branch
      %89 = sbr.rel (0) target = $region41
    $region40: #{tpu_custom_call.1} parent=1 // pred_region
      %90 = dma.done [#allocation5], 16
    $region41: #{tpu_custom_call.1} parent=1 // pred_fallthru
      _
    // Predicated region
    $region42: #{tpu_custom_call.1} parent=1 // pred_check
      _
    $region43: #{tpu_custom_call.1} parent=1 // pred_check_branch
      %92 = sbr.rel (0) target = $region45
    $region44: #{tpu_custom_call.1} parent=1 // pred_region
      %93 = dma.done [#allocation8], 1536
    $region45: #{tpu_custom_call.1} parent=1 // pred_fallthru
      _
    // Predicated region
    $region46: #{tpu_custom_call.1} parent=1 // pred_check
      _
    $region47: #{tpu_custom_call.1} parent=1 // pred_check_branch
      %95 = sbr.rel (0) target = $region49
    $region48: #{tpu_custom_call.1} parent=1 // pred_region
      %96 = dma.done [#allocation8], 48
    $region49: #{tpu_custom_call.1} parent=1 // pred_fallthru
      _
    // Predicated region
    $region50: #{tpu_custom_call.1} parent=1 // pred_check
      _
    $region51: #{tpu_custom_call.1} parent=1 // pred_check_branch
      %98 = sbr.rel (0) target = $region53
    $region52: #{tpu_custom_call.1} parent=1 // pred_region
      %99 = dma.done [#allocation11], 384
    $region53: #{tpu_custom_call.1} parent=1 // pred_fallthru
      _
    // Predicated region
    $region54: #{tpu_custom_call.1} parent=1 // pred_check
      _
    $region55: #{tpu_custom_call.1} parent=1 // pred_check_branch
      %101 = sbr.rel (0) target = $region57
    $region56: #{tpu_custom_call.1} parent=1 // pred_region
      %102 = dma.done [#allocation11], 1024
    $region57: #{tpu_custom_call.1} parent=1 // pred_fallthru
      _
    %v103 = vlaneseq
    %v104 = vand.u32 %v103, 127
    %vm105 = vcmp.ge.s32.totalorder %v104, 64
    %vm106 = vcmp.lt.s32.totalorder %v104, 96
    %vm107 = vmand %vm105, %vm106
    %v108 = vsel %vm107, 1.0, 0.5
    %v109 = vsel %vm107, 0.0, 0.5
    %v110 = vld [vmem:[%s0] sm:$0xff]
    %v111 = vld [vmem:[%s0 + $0x8] sm:$0xff]
    %v112 = vld [vmem:[%s0 + $0x10] sm:$0xff]
    %v113 = vld [vmem:[%s0 + $0x18] sm:$0xff]
    %v114 = vld [vmem:[%s0 + $0x20] sm:$0xff]
    %v115 = vld [vmem:[%s0 + $0x28] sm:$0xff]
    %v116 = vld [vmem:[%s0 + $0x30] sm:$0xff]
    %v117 = vld [vmem:[%s0 + $0x38] sm:$0xff]
    %v118 = vld [vmem:[#allocation4] sm:$0x1]
    %120 = vset.pattern.permute.xlu0 0
    %121 = vperm.xlu0 %120, %v110
    %v122 = vpop.permute.xlu0 %121
    %125 = vset.pattern.permute.xlu0 0
    %126 = vperm.xlu0 %125, %v111
    %v127 = vpop.permute.xlu0 %126
    %130 = vset.pattern.permute.xlu0 0
    %131 = vperm.xlu0 %130, %v112
    %v132 = vpop.permute.xlu0 %131
    %135 = vset.pattern.permute.xlu0 0
    %136 = vperm.xlu0 %135, %v113
    %v137 = vpop.permute.xlu0 %136
    %140 = vset.pattern.permute.xlu0 0
    %141 = vperm.xlu0 %140, %v114
    %v142 = vpop.permute.xlu0 %141
    %145 = vset.pattern.permute.xlu0 0
    %146 = vperm.xlu0 %145, %v115
    %v147 = vpop.permute.xlu0 %146
    %150 = vset.pattern.permute.xlu0 0
    %151 = vperm.xlu0 %150, %v116
    %v152 = vpop.permute.xlu0 %151
    %155 = vset.pattern.permute.xlu0 0
    %156 = vperm.xlu0 %155, %v117
    %v157 = vpop.permute.xlu0 %156
    %v160 = vlaneseq
    %v161 = vshrl.u32 %v160, 7
    %v162 = vsub.s32 0, %v161
    %v163 = vrot.slane %v118, %v162
    %v165 = vmul.f32 %v122, %v163
    %v166 = vmul.f32 %v127, %v163
    %v167 = vmul.f32 %v132, %v163
    %v168 = vmul.f32 %v137, %v163
    %v169 = vmul.f32 %v142, %v163
    %v170 = vmul.f32 %v147, %v163
    %v171 = vmul.f32 %v152, %v163
    %v172 = vmul.f32 %v157, %v163
    %v173 = vld [vmem:[#allocation9] sm:$0x1]
    %v175 = vlaneseq
    %v176 = vshrl.u32 %v175, 7
    %v177 = vsub.s32 0, %v176
    %v178 = vrot.slane %v173, %v177
    %v180 = vadd.f32 %v165, %v178
    %v181 = vadd.f32 %v166, %v178
    %v182 = vadd.f32 %v167, %v178
    %v183 = vadd.f32 %v168, %v178
    %v184 = vadd.f32 %v169, %v178
    %v185 = vadd.f32 %v170, %v178
    %v186 = vadd.f32 %v171, %v178
    %v187 = vadd.f32 %v172, %v178
    %188 = vst [vmem:[#allocation2] sm:$0xff] %v180
    %189 = vst [vmem:[#allocation2 + $0x8] sm:$0xff] %v181
    %190 = vst [vmem:[#allocation2 + $0x10] sm:$0xff] %v182
    %191 = vst [vmem:[#allocation2 + $0x18] sm:$0xff] %v183
    %192 = vst [vmem:[#allocation2 + $0x20] sm:$0xff] %v184
    %193 = vst [vmem:[#allocation2 + $0x28] sm:$0xff] %v185
    %194 = vst [vmem:[#allocation2 + $0x30] sm:$0xff] %v186
    %195 = vst [vmem:[#allocation2 + $0x38] sm:$0xff] %v187
    %v196 = vld [vmem:[%s5] sm:$0xff]
    %s197 = scalar_lea.vmem %s5, 8
    %v198 = vld [vmem:[%s197] sm:$0xff]
    %s199 = scalar_lea.vmem %s5, 16
    %v200 = vld [vmem:[%s199] sm:$0xff]
    %v201 = vld [vmem:[#allocation10] sm:$0xff]
    %s202 = scalar_lea.vmem [#allocation10], 8
    %v203 = vld [vmem:[%s202] sm:$0xff]
    %s204 = scalar_lea.vmem [#allocation10], 16
    %v205 = vld [vmem:[%s204] sm:$0xff]
    %v206 = vld [vmem:[#allocation2] sm:$0xff]
    %v207 = vld [vmem:[#allocation7] sm:$0xff]
    %v208 = vld [vmem:[#allocation7 + $0x8] sm:$0xff]
    %v209 = vld [vmem:[#allocation7 + $0x10] sm:$0xff]
    %v210 = vld [vmem:[#allocation7 + $0x18] sm:$0xff]
    %vm211 = vcmask 261120
    %v213 = vsel %vm211, %v196, 0
    %215 = vmatprep.subr.mxu0 0.0
    %216 = vmatpush1.msra.mxu0 %v207
    %217 = vmatprep.subr.mxu0 0.0
    %218 = vmatpush1.msra.mxu0 %v208
    %219 = vmatprep.subr.mxu0 0.0
    %220 = vmatpush1.msra.mxu0 %v209
    %221 = vmatprep.subr.mxu0 0.0
    %222 = vmatpush1.msra.mxu0 %v210
    %223 = vmatprep.subr.mxu0 0.0
    %224 = vmatpush1.msra.mxu0 0.0
    %225 = vmatprep.subr.mxu0 0.0
    %226 = vmatpush1.msra.mxu0 0.0
    %227 = vmatprep.subr.mxu0 0.0
    %228 = vmatpush1.msra.mxu0 0.0
    %229 = vmatprep.subr.mxu0 0.0
    %230 = vmatpush1.msra.mxu0 0.0
    %231 = vmatprep.subr.mxu0 0.0
    %232 = vmatpush1.msra.mxu0 0.0
    %233 = vmatprep.subr.mxu0 0.0
    %234 = vmatpush1.msra.mxu0 0.0
    %235 = vmatprep.subr.mxu0 0.0
    %236 = vmatpush1.msra.mxu0 0.0
    %237 = vmatprep.subr.mxu0 0.0
    %238 = vmatpush1.msra.mxu0 0.0
    %239 = vmatprep.subr.mxu0 0.0
    %240 = vmatpush1.msra.mxu0 0.0
    %241 = vmatprep.subr.mxu0 0.0
    %242 = vmatpush1.msra.mxu0 0.0
    %243 = vmatprep.subr.mxu0 0.0
    %244 = vmatpush1.msra.mxu0 0.0
    %245 = vmatprep.subr.mxu0 0.0
    %246 = vmatpush1.msra.mxu0 0.0
    %247 = vmatprep.subr.mxu0 0.0
    %248 = vmatpush1.msra.mxu0 0.0
    %249 = vmatprep.subr.mxu0 0.0
    %250 = vmatpush1.msra.mxu0 0.0
    %251 = vmatprep.subr.mxu0 0.0
    %252 = vmatpush1.msra.mxu0 0.0
    %253 = vmatprep.subr.mxu0 0.0
    %254 = vmatpush1.msra.mxu0 0.0
    %255 = vmatprep.subr.mxu0 0.0
    %256 = vmatpush1.msra.mxu0 0.0
    %257 = vmatprep.subr.mxu0 0.0
    %258 = vmatpush1.msra.mxu0 0.0
    %259 = vmatprep.subr.mxu0 0.0
    %260 = vmatpush1.msra.mxu0 0.0
    %261 = vmatprep.subr.mxu0 0.0
    %262 = vmatpush1.msra.mxu0 0.0
    %263 = vmatprep.subr.mxu0 0.0
    %264 = vmatpush1.msra.mxu0 0.0
    %265 = vmatprep.subr.mxu0 0.0
    %266 = vmatpush1.msra.mxu0 0.0
    %267 = vmatprep.subr.mxu0 0.0
    %268 = vmatpush1.msra.mxu0 0.0
    %269 = vmatprep.subr.mxu0 0.0
    %270 = vmatpush1.msra.mxu0 0.0
    %271 = vmatprep.subr.mxu0 0.0
    %272 = vmatpush1.msra.mxu0 0.0
    %273 = vmatprep.subr.mxu0 0.0
    %274 = vmatpush1.msra.mxu0 0.0
    %275 = vmatprep.subr.mxu0 0.0
    %276 = vmatpush1.msra.mxu0 0.0
    %277 = vmatprep.subr.mxu0 0.0
    %278 = vmatpush1.msra.mxu0 0.0
    %279 = vmatprep.mubr.f32.mxu0 0.0
    %280 = vmatmul.mubr.f32.gmra.mrb[0].mxu0 %v213
    %v281 = vpop.f32.mrb[0].mxu0
    %v282 = vadd.f32 0.0, %v281
    %v283 = vpop.f32.mrb[0].mxu0
    %284 = vdwg.mxu0
    %v285 = vadd.f32 %v206, %v282
    %v286 = vmul.f32 %v285, %v108
    %v287 = vtanh.pop %v286
    %v288 = vmul.f32 %v287, %v108
    %v289 = vadd.f32 %v288, %v109
    %291 = vrot.lane.b32.xlu0 %v201, 32
    %v292 = vpop.permute.xlu0 %291
    %v294 = vmul.f32 %v289, %v292
    %296 = vrot.lane.b32.xlu0 %v289, 64
    %v297 = vpop.permute.xlu0 %296
    %v299 = vmul.f32 %v289, %v297
    %301 = vrot.lane.b32.xlu0 %v299, 32
    %v302 = vpop.permute.xlu0 %301
    %v304 = vadd.f32 %v294, %v302
    %v305 = vtanh.pop %v304
    %307 = vrot.lane.b32.xlu0 %v305, 64
    %v308 = vpop.permute.xlu0 %307
    %v310 = vmul.f32 %v289, %v308
    %s311 = scalar_lea.vmem [#allocation2], 8
    %v312 = vld [vmem:[%s311] sm:$0xff]
    %314 = vrot.lane.b32.xlu0 %v310, 32
    %v315 = vpop.permute.xlu0 %314
    %v316 = vsel %vm211, %v315, 0
    %318 = vmatprep.subr.mxu0 0.0
    %319 = vmatpush1.msra.mxu0 %v207
    %320 = vmatprep.subr.mxu0 0.0
    %321 = vmatpush1.msra.mxu0 %v208
    %322 = vmatprep.subr.mxu0 0.0
    %323 = vmatpush1.msra.mxu0 %v209
    %324 = vmatprep.subr.mxu0 0.0
    %325 = vmatpush1.msra.mxu0 %v210
    %326 = vmatprep.subr.mxu0 0.0
    %327 = vmatpush1.msra.mxu0 0.0
    %328 = vmatprep.subr.mxu0 0.0
    %329 = vmatpush1.msra.mxu0 0.0
    %330 = vmatprep.subr.mxu0 0.0
    %331 = vmatpush1.msra.mxu0 0.0
    %332 = vmatprep.subr.mxu0 0.0
    %333 = vmatpush1.msra.mxu0 0.0
    %334 = vmatprep.subr.mxu0 0.0
    %335 = vmatpush1.msra.mxu0 0.0
    %336 = vmatprep.subr.mxu0 0.0
    %337 = vmatpush1.msra.mxu0 0.0
    %338 = vmatprep.subr.mxu0 0.0
    %339 = vmatpush1.msra.mxu0 0.0
    %340 = vmatprep.subr.mxu0 0.0
    %341 = vmatpush1.msra.mxu0 0.0
    %342 = vmatprep.subr.mxu0 0.0
    %343 = vmatpush1.msra.mxu0 0.0
    %344 = vmatprep.subr.mxu0 0.0
    %345 = vmatpush1.msra.mxu0 0.0
    %346 = vmatprep.subr.mxu0 0.0
    %347 = vmatpush1.msra.mxu0 0.0
    %348 = vmatprep.subr.mxu0 0.0
    %349 = vmatpush1.msra.mxu0 0.0
    %350 = vmatprep.subr.mxu0 0.0
    %351 = vmatpush1.msra.mxu0 0.0
    %352 = vmatprep.subr.mxu0 0.0
    %353 = vmatpush1.msra.mxu0 0.0
    %354 = vmatprep.subr.mxu0 0.0
    %355 = vmatpush1.msra.mxu0 0.0
    %356 = vmatprep.subr.mxu0 0.0
    %357 = vmatpush1.msra.mxu0 0.0
    %358 = vmatprep.subr.mxu0 0.0
    %359 = vmatpush1.msra.mxu0 0.0
    %360 = vmatprep.subr.mxu0 0.0
    %361 = vmatpush1.msra.mxu0 0.0
    %362 = vmatprep.subr.mxu0 0.0
    %363 = vmatpush1.msra.mxu0 0.0
    %364 = vmatprep.subr.mxu0 0.0
    %365 = vmatpush1.msra.mxu0 0.0
    %366 = vmatprep.subr.mxu0 0.0
    %367 = vmatpush1.msra.mxu0 0.0
    %368 = vmatprep.subr.mxu0 0.0
    %369 = vmatpush1.msra.mxu0 0.0
    %370 = vmatprep.subr.mxu0 0.0
    %371 = vmatpush1.msra.mxu0 0.0
    %372 = vmatprep.subr.mxu0 0.0
    %373 = vmatpush1.msra.mxu0 0.0
    %374 = vmatprep.subr.mxu0 0.0
    %375 = vmatpush1.msra.mxu0 0.0
    %376 = vmatprep.subr.mxu0 0.0
    %377 = vmatpush1.msra.mxu0 0.0
    %378 = vmatprep.subr.mxu0 0.0
    %379 = vmatpush1.msra.mxu0 0.0
    %380 = vmatprep.subr.mxu0 0.0
    %381 = vmatpush1.msra.mxu0 0.0
    %382 = vmatprep.mubr.f32.mxu0 0.0
    %383 = vmatmul.mubr.f32.gmra.mrb[0].mxu0 %v316
    %v384 = vpop.f32.mrb[0].mxu0
    %v385 = vadd.f32 0.0, %v384
    %v386 = vpop.f32.mrb[0].mxu0
    %387 = vdwg.mxu0
    %v388 = vadd.f32 %v312, %v385
    %v389 = vmul.f32 %v388, %v108
    %v390 = vtanh.pop %v389
    %v391 = vmul.f32 %v390, %v108
    %v392 = vadd.f32 %v391, %v109
    %v393 = vmul.f32 %v392, %v304
    %395 = vrot.lane.b32.xlu0 %v392, 64
    %v396 = vpop.permute.xlu0 %395
    %v398 = vmul.f32 %v392, %v396
    %400 = vrot.lane.b32.xlu0 %v398, 32
    %v401 = vpop.permute.xlu0 %400
    %v403 = vadd.f32 %v393, %v401
    %v404 = vtanh.pop %v403
    %406 = vrot.lane.b32.xlu0 %v404, 64
    %v407 = vpop.permute.xlu0 %406
    %v409 = vmul.f32 %v392, %v407
    %v410 = vld [vmem:[%s2] sm:$0xff]
    %v411 = vld [vmem:[%s2 + $0x8] sm:$0xff]
    %v412 = vld [vmem:[%s2 + $0x10] sm:$0xff]
    %v413 = vld [vmem:[%s2 + $0x18] sm:$0xff]
    %s414 = scalar_lea.vmem [#allocation9], 1
    %v415 = vld [vmem:[%s414] sm:$0x1]
    %v417 = vlaneseq
    %v418 = vshrl.u32 %v417, 7
    %v419 = vsub.s32 0, %v418
    %v420 = vrot.slane %v415, %v419
    %422 = vmatprep.subr.mxu0 0.0
    %423 = vmatpush1.msra.mxu0 %v410
    %424 = vmatprep.subr.mxu0 0.0
    %425 = vmatpush1.msra.mxu0 %v411
    %426 = vmatprep.subr.mxu0 0.0
    %427 = vmatpush1.msra.mxu0 %v412
    %428 = vmatprep.subr.mxu0 0.0
    %429 = vmatpush1.msra.mxu0 %v413
    %430 = vmatprep.subr.mxu0 0.0
    %431 = vmatpush1.msra.mxu0 0.0
    %432 = vmatprep.subr.mxu0 0.0
    %433 = vmatpush1.msra.mxu0 0.0
    %434 = vmatprep.subr.mxu0 0.0
    %435 = vmatpush1.msra.mxu0 0.0
    %436 = vmatprep.subr.mxu0 0.0
    %437 = vmatpush1.msra.mxu0 0.0
    %438 = vmatprep.subr.mxu0 0.0
    %439 = vmatpush1.msra.mxu0 0.0
    %440 = vmatprep.subr.mxu0 0.0
    %441 = vmatpush1.msra.mxu0 0.0
    %442 = vmatprep.subr.mxu0 0.0
    %443 = vmatpush1.msra.mxu0 0.0
    %444 = vmatprep.subr.mxu0 0.0
    %445 = vmatpush1.msra.mxu0 0.0
    %446 = vmatprep.subr.mxu0 0.0
    %447 = vmatpush1.msra.mxu0 0.0
    %448 = vmatprep.subr.mxu0 0.0
    %449 = vmatpush1.msra.mxu0 0.0
    %450 = vmatprep.subr.mxu0 0.0
    %451 = vmatpush1.msra.mxu0 0.0
    %452 = vmatprep.subr.mxu0 0.0
    %453 = vmatpush1.msra.mxu0 0.0
    %454 = vmatprep.subr.mxu0 0.0
    %455 = vmatpush1.msra.mxu0 0.0
    %456 = vmatprep.subr.mxu0 0.0
    %457 = vmatpush1.msra.mxu0 0.0
    %458 = vmatprep.subr.mxu0 0.0
    %459 = vmatpush1.msra.mxu0 0.0
    %460 = vmatprep.subr.mxu0 0.0
    %461 = vmatpush1.msra.mxu0 0.0
    %462 = vmatprep.subr.mxu0 0.0
    %463 = vmatpush1.msra.mxu0 0.0
    %464 = vmatprep.subr.mxu0 0.0
    %465 = vmatpush1.msra.mxu0 0.0
    %466 = vmatprep.subr.mxu0 0.0
    %467 = vmatpush1.msra.mxu0 0.0
    %468 = vmatprep.subr.mxu0 0.0
    %469 = vmatpush1.msra.mxu0 0.0
    %470 = vmatprep.subr.mxu0 0.0
    %471 = vmatpush1.msra.mxu0 0.0
    %472 = vmatprep.subr.mxu0 0.0
    %473 = vmatpush1.msra.mxu0 0.0
    %474 = vmatprep.subr.mxu0 0.0
    %475 = vmatpush1.msra.mxu0 0.0
    %476 = vmatprep.subr.mxu0 0.0
    %477 = vmatpush1.msra.mxu0 0.0
    %478 = vmatprep.subr.mxu0 0.0
    %479 = vmatpush1.msra.mxu0 0.0
    %480 = vmatprep.subr.mxu0 0.0
    %481 = vmatpush1.msra.mxu0 0.0
    %482 = vmatprep.subr.mxu0 0.0
    %483 = vmatpush1.msra.mxu0 0.0
    %484 = vmatprep.subr.mxu0 0.0
    %485 = vmatpush1.msra.mxu0 0.0
    %486 = vmatprep.mubr.f32.mxu0 0.0
    %487 = vmatmul.mubr.f32.gmra.mrb[0].mxu0 %v316
    %v488 = vpop.f32.mrb[0].mxu0
    %v489 = vadd.f32 %v420, %v488
    %v490 = vpop.f32.mrb[0].mxu0
    %491 = vdwg.mxu0
    %s492 = scalar_lea.vmem [#allocation7], 32
    %v493 = vld [vmem:[%s492] sm:$0xff]
    %v494 = vld [vmem:[%s492 + $0x8] sm:$0xff]
    %v495 = vld [vmem:[%s492 + $0x10] sm:$0xff]
    %v496 = vld [vmem:[%s492 + $0x18] sm:$0xff]
    %v498 = vsel %vm211, %v198, 0
    %500 = vmatprep.subr.mxu0 0.0
    %501 = vmatpush1.msra.mxu0 %v493
    %502 = vmatprep.subr.mxu0 0.0
    %503 = vmatpush1.msra.mxu0 %v494
    %504 = vmatprep.subr.mxu0 0.0
    %505 = vmatpush1.msra.mxu0 %v495
    %506 = vmatprep.subr.mxu0 0.0
    %507 = vmatpush1.msra.mxu0 %v496
    %508 = vmatprep.subr.mxu0 0.0
    %509 = vmatpush1.msra.mxu0 0.0
    %510 = vmatprep.subr.mxu0 0.0
    %511 = vmatpush1.msra.mxu0 0.0
    %512 = vmatprep.subr.mxu0 0.0
    %513 = vmatpush1.msra.mxu0 0.0
    %514 = vmatprep.subr.mxu0 0.0
    %515 = vmatpush1.msra.mxu0 0.0
    %516 = vmatprep.subr.mxu0 0.0
    %517 = vmatpush1.msra.mxu0 0.0
    %518 = vmatprep.subr.mxu0 0.0
    %519 = vmatpush1.msra.mxu0 0.0
    %520 = vmatprep.subr.mxu0 0.0
    %521 = vmatpush1.msra.mxu0 0.0
    %522 = vmatprep.subr.mxu0 0.0
    %523 = vmatpush1.msra.mxu0 0.0
    %524 = vmatprep.subr.mxu0 0.0
    %525 = vmatpush1.msra.mxu0 0.0
    %526 = vmatprep.subr.mxu0 0.0
    %527 = vmatpush1.msra.mxu0 0.0
    %528 = vmatprep.subr.mxu0 0.0
    %529 = vmatpush1.msra.mxu0 0.0
    %530 = vmatprep.subr.mxu0 0.0
    %531 = vmatpush1.msra.mxu0 0.0
    %532 = vmatprep.subr.mxu0 0.0
    %533 = vmatpush1.msra.mxu0 0.0
    %534 = vmatprep.subr.mxu0 0.0
    %535 = vmatpush1.msra.mxu0 0.0
    %536 = vmatprep.subr.mxu0 0.0
    %537 = vmatpush1.msra.mxu0 0.0
    %538 = vmatprep.subr.mxu0 0.0
    %539 = vmatpush1.msra.mxu0 0.0
    %540 = vmatprep.subr.mxu0 0.0
    %541 = vmatpush1.msra.mxu0 0.0
    %542 = vmatprep.subr.mxu0 0.0
    %543 = vmatpush1.msra.mxu0 0.0
    %544 = vmatprep.subr.mxu0 0.0
    %545 = vmatpush1.msra.mxu0 0.0
    %546 = vmatprep.subr.mxu0 0.0
    %547 = vmatpush1.msra.mxu0 0.0
    %548 = vmatprep.subr.mxu0 0.0
    %549 = vmatpush1.msra.mxu0 0.0
    %550 = vmatprep.subr.mxu0 0.0
    %551 = vmatpush1.msra.mxu0 0.0
    %552 = vmatprep.subr.mxu0 0.0
    %553 = vmatpush1.msra.mxu0 0.0
    %554 = vmatprep.subr.mxu0 0.0
    %555 = vmatpush1.msra.mxu0 0.0
    %556 = vmatprep.subr.mxu0 0.0
    %557 = vmatpush1.msra.mxu0 0.0
    %558 = vmatprep.subr.mxu0 0.0
    %559 = vmatpush1.msra.mxu0 0.0
    %560 = vmatprep.subr.mxu0 0.0
    %561 = vmatpush1.msra.mxu0 0.0
    %562 = vmatprep.subr.mxu0 0.0
    %563 = vmatpush1.msra.mxu0 0.0
    %564 = vmatprep.mubr.f32.mxu0 0.0
    %565 = vmatmul.mubr.f32.gmra.mrb[0].mxu0 %v498
    %v566 = vpop.f32.mrb[0].mxu0
    %v567 = vadd.f32 0.0, %v566
    %v568 = vpop.f32.mrb[0].mxu0
    %569 = vdwg.mxu0
    %v570 = vadd.f32 %v489, %v567
    %v571 = vmul.f32 %v570, %v108
    %v572 = vtanh.pop %v571
    %v573 = vmul.f32 %v572, %v108
    %v574 = vadd.f32 %v573, %v109
    %576 = vrot.lane.b32.xlu0 %v203, 32
    %v577 = vpop.permute.xlu0 %576
    %v579 = vmul.f32 %v574, %v577
    %581 = vrot.lane.b32.xlu0 %v574, 64
    %v582 = vpop.permute.xlu0 %581
    %v584 = vmul.f32 %v574, %v582
    %586 = vrot.lane.b32.xlu0 %v584, 32
    %v587 = vpop.permute.xlu0 %586
    %v589 = vadd.f32 %v579, %v587
    %v590 = vtanh.pop %v589
    %592 = vrot.lane.b32.xlu0 %v590, 64
    %v593 = vpop.permute.xlu0 %592
    %v595 = vmul.f32 %v574, %v593
    %s596 = scalar_lea.vmem [#allocation2], 16
    %v597 = vld [vmem:[%s596] sm:$0xff]
    %599 = vrot.lane.b32.xlu0 %v409, 32
    %v600 = vpop.permute.xlu0 %599
    %v601 = vsel %vm211, %v600, 0
    %603 = vmatprep.subr.mxu0 0.0
    %604 = vmatpush1.msra.mxu0 %v207
    %605 = vmatprep.subr.mxu0 0.0
    %606 = vmatpush1.msra.mxu0 %v208
    %607 = vmatprep.subr.mxu0 0.0
    %608 = vmatpush1.msra.mxu0 %v209
    %609 = vmatprep.subr.mxu0 0.0
    %610 = vmatpush1.msra.mxu0 %v210
    %611 = vmatprep.subr.mxu0 0.0
    %612 = vmatpush1.msra.mxu0 0.0
    %613 = vmatprep.subr.mxu0 0.0
    %614 = vmatpush1.msra.mxu0 0.0
    %615 = vmatprep.subr.mxu0 0.0
    %616 = vmatpush1.msra.mxu0 0.0
    %617 = vmatprep.subr.mxu0 0.0
    %618 = vmatpush1.msra.mxu0 0.0
    %619 = vmatprep.subr.mxu0 0.0
    %620 = vmatpush1.msra.mxu0 0.0
    %621 = vmatprep.subr.mxu0 0.0
    %622 = vmatpush1.msra.mxu0 0.0
    %623 = vmatprep.subr.mxu0 0.0
    %624 = vmatpush1.msra.mxu0 0.0
    %625 = vmatprep.subr.mxu0 0.0
    %626 = vmatpush1.msra.mxu0 0.0
    %627 = vmatprep.subr.mxu0 0.0
    %628 = vmatpush1.msra.mxu0 0.0
    %629 = vmatprep.subr.mxu0 0.0
    %630 = vmatpush1.msra.mxu0 0.0
    %631 = vmatprep.subr.mxu0 0.0
    %632 = vmatpush1.msra.mxu0 0.0
    %633 = vmatprep.subr.mxu0 0.0
    %634 = vmatpush1.msra.mxu0 0.0
    %635 = vmatprep.subr.mxu0 0.0
    %636 = vmatpush1.msra.mxu0 0.0
    %637 = vmatprep.subr.mxu0 0.0
    %638 = vmatpush1.msra.mxu0 0.0
    %639 = vmatprep.subr.mxu0 0.0
    %640 = vmatpush1.msra.mxu0 0.0
    %641 = vmatprep.subr.mxu0 0.0
    %642 = vmatpush1.msra.mxu0 0.0
    %643 = vmatprep.subr.mxu0 0.0
    %644 = vmatpush1.msra.mxu0 0.0
    %645 = vmatprep.subr.mxu0 0.0
    %646 = vmatpush1.msra.mxu0 0.0
    %647 = vmatprep.subr.mxu0 0.0
    %648 = vmatpush1.msra.mxu0 0.0
    %649 = vmatprep.subr.mxu0 0.0
    %650 = vmatpush1.msra.mxu0 0.0
    %651 = vmatprep.subr.mxu0 0.0
    %652 = vmatpush1.msra.mxu0 0.0
    %653 = vmatprep.subr.mxu0 0.0
    %654 = vmatpush1.msra.mxu0 0.0
    %655 = vmatprep.subr.mxu0 0.0
    %656 = vmatpush1.msra.mxu0 0.0
    %657 = vmatprep.subr.mxu0 0.0
    %658 = vmatpush1.msra.mxu0 0.0
    %659 = vmatprep.subr.mxu0 0.0
    %660 = vmatpush1.msra.mxu0 0.0
    %661 = vmatprep.subr.mxu0 0.0
    %662 = vmatpush1.msra.mxu0 0.0
    %663 = vmatprep.subr.mxu0 0.0
    %664 = vmatpush1.msra.mxu0 0.0
    %665 = vmatprep.subr.mxu0 0.0
    %666 = vmatpush1.msra.mxu0 0.0
    %667 = vmatprep.mubr.f32.mxu0 0.0
    %668 = vmatmul.mubr.f32.gmra.mrb[0].mxu0 %v601
    %v669 = vpop.f32.mrb[0].mxu0
    %v670 = vadd.f32 0.0, %v669
    %v671 = vpop.f32.mrb[0].mxu0
    %672 = vdwg.mxu0
    %v673 = vadd.f32 %v597, %v670
    %v674 = vmul.f32 %v673, %v108
    %v675 = vtanh.pop %v674
    %v676 = vmul.f32 %v675, %v108
    %v677 = vadd.f32 %v676, %v109
    %v678 = vmul.f32 %v677, %v403
    %680 = vrot.lane.b32.xlu0 %v677, 64
    %v681 = vpop.permute.xlu0 %680
    %v683 = vmul.f32 %v677, %v681
    %685 = vrot.lane.b32.xlu0 %v683, 32
    %v686 = vpop.permute.xlu0 %685
    %v688 = vadd.f32 %v678, %v686
    %v689 = vtanh.pop %v688
    %691 = vrot.lane.b32.xlu0 %v689, 64
    %v692 = vpop.permute.xlu0 %691
    %v694 = vmul.f32 %v677, %v692
    %695 = vmatprep.subr.mxu0 0.0
    %696 = vmatpush1.msra.mxu0 %v410
    %697 = vmatprep.subr.mxu0 0.0
    %698 = vmatpush1.msra.mxu0 %v411
    %699 = vmatprep.subr.mxu0 0.0
    %700 = vmatpush1.msra.mxu0 %v412
    %701 = vmatprep.subr.mxu0 0.0
    %702 = vmatpush1.msra.mxu0 %v413
    %703 = vmatprep.subr.mxu0 0.0
    %704 = vmatpush1.msra.mxu0 0.0
    %705 = vmatprep.subr.mxu0 0.0
    %706 = vmatpush1.msra.mxu0 0.0
    %707 = vmatprep.subr.mxu0 0.0
    %708 = vmatpush1.msra.mxu0 0.0
    %709 = vmatprep.subr.mxu0 0.0
    %710 = vmatpush1.msra.mxu0 0.0
    %711 = vmatprep.subr.mxu0 0.0
    %712 = vmatpush1.msra.mxu0 0.0
    %713 = vmatprep.subr.mxu0 0.0
    %714 = vmatpush1.msra.mxu0 0.0
    %715 = vmatprep.subr.mxu0 0.0
    %716 = vmatpush1.msra.mxu0 0.0
    %717 = vmatprep.subr.mxu0 0.0
    %718 = vmatpush1.msra.mxu0 0.0
    %719 = vmatprep.subr.mxu0 0.0
    %720 = vmatpush1.msra.mxu0 0.0
    %721 = vmatprep.subr.mxu0 0.0
    %722 = vmatpush1.msra.mxu0 0.0
    %723 = vmatprep.subr.mxu0 0.0
    %724 = vmatpush1.msra.mxu0 0.0
    %725 = vmatprep.subr.mxu0 0.0
    %726 = vmatpush1.msra.mxu0 0.0
    %727 = vmatprep.subr.mxu0 0.0
    %728 = vmatpush1.msra.mxu0 0.0
    %729 = vmatprep.subr.mxu0 0.0
    %730 = vmatpush1.msra.mxu0 0.0
    %731 = vmatprep.subr.mxu0 0.0
    %732 = vmatpush1.msra.mxu0 0.0
    %733 = vmatprep.subr.mxu0 0.0
    %734 = vmatpush1.msra.mxu0 0.0
    %735 = vmatprep.subr.mxu0 0.0
    %736 = vmatpush1.msra.mxu0 0.0
    %737 = vmatprep.subr.mxu0 0.0
    %738 = vmatpush1.msra.mxu0 0.0
    %739 = vmatprep.subr.mxu0 0.0
    %740 = vmatpush1.msra.mxu0 0.0
    %741 = vmatprep.subr.mxu0 0.0
    %742 = vmatpush1.msra.mxu0 0.0
    %743 = vmatprep.subr.mxu0 0.0
    %744 = vmatpush1.msra.mxu0 0.0
    %745 = vmatprep.subr.mxu0 0.0
    %746 = vmatpush1.msra.mxu0 0.0
    %747 = vmatprep.subr.mxu0 0.0
    %748 = vmatpush1.msra.mxu0 0.0
    %749 = vmatprep.subr.mxu0 0.0
    %750 = vmatpush1.msra.mxu0 0.0
    %751 = vmatprep.subr.mxu0 0.0
    %752 = vmatpush1.msra.mxu0 0.0
    %753 = vmatprep.subr.mxu0 0.0
    %754 = vmatpush1.msra.mxu0 0.0
    %755 = vmatprep.subr.mxu0 0.0
    %756 = vmatpush1.msra.mxu0 0.0
    %757 = vmatprep.subr.mxu0 0.0
    %758 = vmatpush1.msra.mxu0 0.0
    %759 = vmatprep.mubr.f32.mxu0 0.0
    %760 = vmatmul.mubr.f32.gmra.mrb[0].mxu0 %v601
    %v761 = vpop.f32.mrb[0].mxu0
    %v762 = vadd.f32 %v420, %v761
    %v763 = vpop.f32.mrb[0].mxu0
    %764 = vdwg.mxu0
    %766 = vrot.lane.b32.xlu0 %v595, 32
    %v767 = vpop.permute.xlu0 %766
    %v768 = vsel %vm211, %v767, 0
    %770 = vmatprep.subr.mxu0 0.0
    %771 = vmatpush1.msra.mxu0 %v493
    %772 = vmatprep.subr.mxu0 0.0
    %773 = vmatpush1.msra.mxu0 %v494
    %774 = vmatprep.subr.mxu0 0.0
    %775 = vmatpush1.msra.mxu0 %v495
    %776 = vmatprep.subr.mxu0 0.0
    %777 = vmatpush1.msra.mxu0 %v496
    %778 = vmatprep.subr.mxu0 0.0
    %779 = vmatpush1.msra.mxu0 0.0
    %780 = vmatprep.subr.mxu0 0.0
    %781 = vmatpush1.msra.mxu0 0.0
    %782 = vmatprep.subr.mxu0 0.0
    %783 = vmatpush1.msra.mxu0 0.0
    %784 = vmatprep.subr.mxu0 0.0
    %785 = vmatpush1.msra.mxu0 0.0
    %786 = vmatprep.subr.mxu0 0.0
    %787 = vmatpush1.msra.mxu0 0.0
    %788 = vmatprep.subr.mxu0 0.0
    %789 = vmatpush1.msra.mxu0 0.0
    %790 = vmatprep.subr.mxu0 0.0
    %791 = vmatpush1.msra.mxu0 0.0
    %792 = vmatprep.subr.mxu0 0.0
    %793 = vmatpush1.msra.mxu0 0.0
    %794 = vmatprep.subr.mxu0 0.0
    %795 = vmatpush1.msra.mxu0 0.0
    %796 = vmatprep.subr.mxu0 0.0
    %797 = vmatpush1.msra.mxu0 0.0
    %798 = vmatprep.subr.mxu0 0.0
    %799 = vmatpush1.msra.mxu0 0.0
    %800 = vmatprep.subr.mxu0 0.0
    %801 = vmatpush1.msra.mxu0 0.0
    %802 = vmatprep.subr.mxu0 0.0
    %803 = vmatpush1.msra.mxu0 0.0
    %804 = vmatprep.subr.mxu0 0.0
    %805 = vmatpush1.msra.mxu0 0.0
    %806 = vmatprep.subr.mxu0 0.0
    %807 = vmatpush1.msra.mxu0 0.0
    %808 = vmatprep.subr.mxu0 0.0
    %809 = vmatpush1.msra.mxu0 0.0
    %810 = vmatprep.subr.mxu0 0.0
    %811 = vmatpush1.msra.mxu0 0.0
    %812 = vmatprep.subr.mxu0 0.0
    %813 = vmatpush1.msra.mxu0 0.0
    %814 = vmatprep.subr.mxu0 0.0
    %815 = vmatpush1.msra.mxu0 0.0
    %816 = vmatprep.subr.mxu0 0.0
    %817 = vmatpush1.msra.mxu0 0.0
    %818 = vmatprep.subr.mxu0 0.0
    %819 = vmatpush1.msra.mxu0 0.0
    %820 = vmatprep.subr.mxu0 0.0
    %821 = vmatpush1.msra.mxu0 0.0
    %822 = vmatprep.subr.mxu0 0.0
    %823 = vmatpush1.msra.mxu0 0.0
    %824 = vmatprep.subr.mxu0 0.0
    %825 = vmatpush1.msra.mxu0 0.0
    %826 = vmatprep.subr.mxu0 0.0
    %827 = vmatpush1.msra.mxu0 0.0
    %828 = vmatprep.subr.mxu0 0.0
    %829 = vmatpush1.msra.mxu0 0.0
    %830 = vmatprep.subr.mxu0 0.0
    %831 = vmatpush1.msra.mxu0 0.0
    %832 = vmatprep.subr.mxu0 0.0
    %833 = vmatpush1.msra.mxu0 0.0
    %834 = vmatprep.mubr.f32.mxu0 0.0
    %835 = vmatmul.mubr.f32.gmra.mrb[0].mxu0 %v768
    %v836 = vpop.f32.mrb[0].mxu0
    %v837 = vadd.f32 0.0, %v836
    %v838 = vpop.f32.mrb[0].mxu0
    %839 = vdwg.mxu0
    %v840 = vadd.f32 %v762, %v837
    %v841 = vmul.f32 %v840, %v108
    %v842 = vtanh.pop %v841
    %v843 = vmul.f32 %v842, %v108
    %v844 = vadd.f32 %v843, %v109
    %v845 = vmul.f32 %v844, %v589
    %847 = vrot.lane.b32.xlu0 %v844, 64
    %v848 = vpop.permute.xlu0 %847
    %v850 = vmul.f32 %v844, %v848
    %852 = vrot.lane.b32.xlu0 %v850, 32
    %v853 = vpop.permute.xlu0 %852
    %v855 = vadd.f32 %v845, %v853
    %v856 = vtanh.pop %v855
    %858 = vrot.lane.b32.xlu0 %v856, 64
    %v859 = vpop.permute.xlu0 %858
    %v861 = vmul.f32 %v844, %v859
    %s862 = scalar_lea.vmem %s2, 32
    %v863 = vld [vmem:[%s862] sm:$0xff]
    %v864 = vld [vmem:[%s862 + $0x8] sm:$0xff]
    %v865 = vld [vmem:[%s862 + $0x10] sm:$0xff]
    %v866 = vld [vmem:[%s862 + $0x18] sm:$0xff]
    %s867 = scalar_lea.vmem [#allocation9], 2
    %v868 = vld [vmem:[%s867] sm:$0x1]
    %v870 = vlaneseq
    %v871 = vshrl.u32 %v870, 7
    %v872 = vsub.s32 0, %v871
    %v873 = vrot.slane %v868, %v872
    %875 = vmatprep.subr.mxu0 0.0
    %876 = vmatpush1.msra.mxu0 %v863
    %877 = vmatprep.subr.mxu0 0.0
    %878 = vmatpush1.msra.mxu0 %v864
    %879 = vmatprep.subr.mxu0 0.0
    %880 = vmatpush1.msra.mxu0 %v865
    %881 = vmatprep.subr.mxu0 0.0
    %882 = vmatpush1.msra.mxu0 %v866
    %883 = vmatprep.subr.mxu0 0.0
    %884 = vmatpush1.msra.mxu0 0.0
    %885 = vmatprep.subr.mxu0 0.0
    %886 = vmatpush1.msra.mxu0 0.0
    %887 = vmatprep.subr.mxu0 0.0
    %888 = vmatpush1.msra.mxu0 0.0
    %889 = vmatprep.subr.mxu0 0.0
    %890 = vmatpush1.msra.mxu0 0.0
    %891 = vmatprep.subr.mxu0 0.0
    %892 = vmatpush1.msra.mxu0 0.0
    %893 = vmatprep.subr.mxu0 0.0
    %894 = vmatpush1.msra.mxu0 0.0
    %895 = vmatprep.subr.mxu0 0.0
    %896 = vmatpush1.msra.mxu0 0.0
    %897 = vmatprep.subr.mxu0 0.0
    %898 = vmatpush1.msra.mxu0 0.0
    %899 = vmatprep.subr.mxu0 0.0
    %900 = vmatpush1.msra.mxu0 0.0
    %901 = vmatprep.subr.mxu0 0.0
    %902 = vmatpush1.msra.mxu0 0.0
    %903 = vmatprep.subr.mxu0 0.0
    %904 = vmatpush1.msra.mxu0 0.0
    %905 = vmatprep.subr.mxu0 0.0
    %906 = vmatpush1.msra.mxu0 0.0
    %907 = vmatprep.subr.mxu0 0.0
    %908 = vmatpush1.msra.mxu0 0.0
    %909 = vmatprep.subr.mxu0 0.0
    %910 = vmatpush1.msra.mxu0 0.0
    %911 = vmatprep.subr.mxu0 0.0
    %912 = vmatpush1.msra.mxu0 0.0
    %913 = vmatprep.subr.mxu0 0.0
    %914 = vmatpush1.msra.mxu0 0.0
    %915 = vmatprep.subr.mxu0 0.0
    %916 = vmatpush1.msra.mxu0 0.0
    %917 = vmatprep.subr.mxu0 0.0
    %918 = vmatpush1.msra.mxu0 0.0
    %919 = vmatprep.subr.mxu0 0.0
    %920 = vmatpush1.msra.mxu0 0.0
    %921 = vmatprep.subr.mxu0 0.0
    %922 = vmatpush1.msra.mxu0 0.0
    %923 = vmatprep.subr.mxu0 0.0
    %924 = vmatpush1.msra.mxu0 0.0
    %925 = vmatprep.subr.mxu0 0.0
    %926 = vmatpush1.msra.mxu0 0.0
    %927 = vmatprep.subr.mxu0 0.0
    %928 = vmatpush1.msra.mxu0 0.0
    %929 = vmatprep.subr.mxu0 0.0
    %930 = vmatpush1.msra.mxu0 0.0
    %931 = vmatprep.subr.mxu0 0.0
    %932 = vmatpush1.msra.mxu0 0.0
    %933 = vmatprep.subr.mxu0 0.0
    %934 = vmatpush1.msra.mxu0 0.0
    %935 = vmatprep.subr.mxu0 0.0
    %936 = vmatpush1.msra.mxu0 0.0
    %937 = vmatprep.subr.mxu0 0.0
    %938 = vmatpush1.msra.mxu0 0.0
    %939 = vmatprep.mubr.f32.mxu0 0.0
    %940 = vmatmul.mubr.f32.gmra.mrb[0].mxu0 %v768
    %v941 = vpop.f32.mrb[0].mxu0
    %v942 = vadd.f32 %v873, %v941
    %v943 = vpop.f32.mrb[0].mxu0
    %944 = vdwg.mxu0
    %s945 = scalar_lea.vmem [#allocation7], 64
    %v946 = vld [vmem:[%s945] sm:$0xff]
    %v947 = vld [vmem:[%s945 + $0x8] sm:$0xff]
    %v948 = vld [vmem:[%s945 + $0x10] sm:$0xff]
    %v949 = vld [vmem:[%s945 + $0x18] sm:$0xff]
    %v951 = vsel %vm211, %v200, 0
    %953 = vmatprep.subr.mxu0 0.0
    %954 = vmatpush1.msra.mxu0 %v946
    %955 = vmatprep.subr.mxu0 0.0
    %956 = vmatpush1.msra.mxu0 %v947
    %957 = vmatprep.subr.mxu0 0.0
    %958 = vmatpush1.msra.mxu0 %v948
    %959 = vmatprep.subr.mxu0 0.0
    %960 = vmatpush1.msra.mxu0 %v949
    %961 = vmatprep.subr.mxu0 0.0
    %962 = vmatpush1.msra.mxu0 0.0
    %963 = vmatprep.subr.mxu0 0.0
    %964 = vmatpush1.msra.mxu0 0.0
    %965 = vmatprep.subr.mxu0 0.0
    %966 = vmatpush1.msra.mxu0 0.0
    %967 = vmatprep.subr.mxu0 0.0
    %968 = vmatpush1.msra.mxu0 0.0
    %969 = vmatprep.subr.mxu0 0.0
    %970 = vmatpush1.msra.mxu0 0.0
    %971 = vmatprep.subr.mxu0 0.0
    %972 = vmatpush1.msra.mxu0 0.0
    %973 = vmatprep.subr.mxu0 0.0
    %974 = vmatpush1.msra.mxu0 0.0
    %975 = vmatprep.subr.mxu0 0.0
    %976 = vmatpush1.msra.mxu0 0.0
    %977 = vmatprep.subr.mxu0 0.0
    %978 = vmatpush1.msra.mxu0 0.0
    %979 = vmatprep.subr.mxu0 0.0
    %980 = vmatpush1.msra.mxu0 0.0
    %981 = vmatprep.subr.mxu0 0.0
    %982 = vmatpush1.msra.mxu0 0.0
    %983 = vmatprep.subr.mxu0 0.0
    %984 = vmatpush1.msra.mxu0 0.0
    %985 = vmatprep.subr.mxu0 0.0
    %986 = vmatpush1.msra.mxu0 0.0
    %987 = vmatprep.subr.mxu0 0.0
    %988 = vmatpush1.msra.mxu0 0.0
    %989 = vmatprep.subr.mxu0 0.0
    %990 = vmatpush1.msra.mxu0 0.0
    %991 = vmatprep.subr.mxu0 0.0
    %992 = vmatpush1.msra.mxu0 0.0
    %993 = vmatprep.subr.mxu0 0.0
    %994 = vmatpush1.msra.mxu0 0.0
    %995 = vmatprep.subr.mxu0 0.0
    %996 = vmatpush1.msra.mxu0 0.0
    %997 = vmatprep.subr.mxu0 0.0
    %998 = vmatpush1.msra.mxu0 0.0
    %999 = vmatprep.subr.mxu0 0.0
    %1000 = vmatpush1.msra.mxu0 0.0
    %1001 = vmatprep.subr.mxu0 0.0
    %1002 = vmatpush1.msra.mxu0 0.0
    %1003 = vmatprep.subr.mxu0 0.0
    %1004 = vmatpush1.msra.mxu0 0.0
    %1005 = vmatprep.subr.mxu0 0.0
    %1006 = vmatpush1.msra.mxu0 0.0
    %1007 = vmatprep.subr.mxu0 0.0
    %1008 = vmatpush1.msra.mxu0 0.0
    %1009 = vmatprep.subr.mxu0 0.0
    %1010 = vmatpush1.msra.mxu0 0.0
    %1011 = vmatprep.subr.mxu0 0.0
    %1012 = vmatpush1.msra.mxu0 0.0
    %1013 = vmatprep.subr.mxu0 0.0
    %1014 = vmatpush1.msra.mxu0 0.0
    %1015 = vmatprep.subr.mxu0 0.0
    %1016 = vmatpush1.msra.mxu0 0.0
    %1017 = vmatprep.mubr.f32.mxu0 0.0
    %1018 = vmatmul.mubr.f32.gmra.mrb[0].mxu0 %v951
    %v1019 = vpop.f32.mrb[0].mxu0
    %v1020 = vadd.f32 0.0, %v1019
    %v1021 = vpop.f32.mrb[0].mxu0
    %1022 = vdwg.mxu0
    %v1023 = vadd.f32 %v942, %v1020
    %v1024 = vmul.f32 %v1023, %v108
    %v1025 = vtanh.pop %v1024
    %v1026 = vmul.f32 %v1025, %v108
    %v1027 = vadd.f32 %v1026, %v109
    %1029 = vrot.lane.b32.xlu0 %v205, 32
    %v1030 = vpop.permute.xlu0 %1029
    %v1032 = vmul.f32 %v1027, %v1030
    %1034 = vrot.lane.b32.xlu0 %v1027, 64
    %v1035 = vpop.permute.xlu0 %1034
    %v1037 = vmul.f32 %v1027, %v1035
    %1039 = vrot.lane.b32.xlu0 %v1037, 32
    %v1040 = vpop.permute.xlu0 %1039
    %v1042 = vadd.f32 %v1032, %v1040
    %v1043 = vtanh.pop %v1042
    %1045 = vrot.lane.b32.xlu0 %v1043, 64
    %v1046 = vpop.permute.xlu0 %1045
    %v1048 = vmul.f32 %v1027, %v1046
    %1050 = vrot.lane.b32.xlu0 %v1048, 32
    %v1051 = vpop.permute.xlu0 %1050
    %1053 = vst.msk [vmem:[#allocation3] sm:$0xff] %vm211, %v1051
    %s1054 = scalar_lea.vmem [#allocation2], 24
    %v1055 = vld [vmem:[%s1054] sm:$0xff]
    %v1056 = vld [vmem:[#allocation7] sm:$0xff]
    %v1057 = vld [vmem:[#allocation7 + $0x8] sm:$0xff]
    %v1058 = vld [vmem:[#allocation7 + $0x10] sm:$0xff]
    %v1059 = vld [vmem:[#allocation7 + $0x18] sm:$0xff]
    %1061 = vrot.lane.b32.xlu0 %v694, 32
    %v1062 = vpop.permute.xlu0 %1061
    %v1063 = vsel %vm211, %v1062, 0
    %1065 = vmatprep.subr.mxu0 0.0
    %1066 = vmatpush1.msra.mxu0 %v1056
    %1067 = vmatprep.subr.mxu0 0.0
    %1068 = vmatpush1.msra.mxu0 %v1057
    %1069 = vmatprep.subr.mxu0 0.0
    %1070 = vmatpush1.msra.mxu0 %v1058
    %1071 = vmatprep.subr.mxu0 0.0
    %1072 = vmatpush1.msra.mxu0 %v1059
    %1073 = vmatprep.subr.mxu0 0.0
    %1074 = vmatpush1.msra.mxu0 0.0
    %1075 = vmatprep.subr.mxu0 0.0
    %1076 = vmatpush1.msra.mxu0 0.0
    %1077 = vmatprep.subr.mxu0 0.0
    %1078 = vmatpush1.msra.mxu0 0.0
    %1079 = vmatprep.subr.mxu0 0.0
    %1080 = vmatpush1.msra.mxu0 0.0
    %1081 = vmatprep.subr.mxu0 0.0
    %1082 = vmatpush1.msra.mxu0 0.0
    %1083 = vmatprep.subr.mxu0 0.0
    %1084 = vmatpush1.msra.mxu0 0.0
    %1085 = vmatprep.subr.mxu0 0.0
    %1086 = vmatpush1.msra.mxu0 0.0
    %1087 = vmatprep.subr.mxu0 0.0
    %1088 = vmatpush1.msra.mxu0 0.0
    %1089 = vmatprep.subr.mxu0 0.0
    %1090 = vmatpush1.msra.mxu0 0.0
    %1091 = vmatprep.subr.mxu0 0.0
    %1092 = vmatpush1.msra.mxu0 0.0
    %1093 = vmatprep.subr.mxu0 0.0
    %1094 = vmatpush1.msra.mxu0 0.0
    %1095 = vmatprep.subr.mxu0 0.0
    %1096 = vmatpush1.msra.mxu0 0.0
    %1097 = vmatprep.subr.mxu0 0.0
    %1098 = vmatpush1.msra.mxu0 0.0
    %1099 = vmatprep.subr.mxu0 0.0
    %1100 = vmatpush1.msra.mxu0 0.0
    %1101 = vmatprep.subr.mxu0 0.0
    %1102 = vmatpush1.msra.mxu0 0.0
    %1103 = vmatprep.subr.mxu0 0.0
    %1104 = vmatpush1.msra.mxu0 0.0
    %1105 = vmatprep.subr.mxu0 0.0
    %1106 = vmatpush1.msra.mxu0 0.0
    %1107 = vmatprep.subr.mxu0 0.0
    %1108 = vmatpush1.msra.mxu0 0.0
    %1109 = vmatprep.subr.mxu0 0.0
    %1110 = vmatpush1.msra.mxu0 0.0
    %1111 = vmatprep.subr.mxu0 0.0
    %1112 = vmatpush1.msra.mxu0 0.0
    %1113 = vmatprep.subr.mxu0 0.0
    %1114 = vmatpush1.msra.mxu0 0.0
    %1115 = vmatprep.subr.mxu0 0.0
    %1116 = vmatpush1.msra.mxu0 0.0
    %1117 = vmatprep.subr.mxu0 0.0
    %1118 = vmatpush1.msra.mxu0 0.0
    %1119 = vmatprep.subr.mxu0 0.0
    %1120 = vmatpush1.msra.mxu0 0.0
    %1121 = vmatprep.subr.mxu0 0.0
    %1122 = vmatpush1.msra.mxu0 0.0
    %1123 = vmatprep.subr.mxu0 0.0
    %1124 = vmatpush1.msra.mxu0 0.0
    %1125 = vmatprep.subr.mxu0 0.0
    %1126 = vmatpush1.msra.mxu0 0.0
    %1127 = vmatprep.subr.mxu0 0.0
    %1128 = vmatpush1.msra.mxu0 0.0
    %1129 = vmatprep.mubr.f32.mxu0 0.0
    %1130 = vmatmul.mubr.f32.gmra.mrb[0].mxu0 %v1063
    %v1131 = vpop.f32.mrb[0].mxu0
    %v1132 = vadd.f32 0.0, %v1131
    %v1133 = vpop.f32.mrb[0].mxu0
    %1134 = vdwg.mxu0
    %v1135 = vadd.f32 %v1055, %v1132
    %v1136 = vmul.f32 %v1135, %v108
    %v1137 = vtanh.pop %v1136
    %v1138 = vmul.f32 %v1137, %v108
    %v1139 = vadd.f32 %v1138, %v109
    %v1140 = vmul.f32 %v1139, %v688
    %1142 = vrot.lane.b32.xlu0 %v1139, 64
    %v1143 = vpop.permute.xlu0 %1142
    %v1145 = vmul.f32 %v1139, %v1143
    %1147 = vrot.lane.b32.xlu0 %v1145, 32
    %v1148 = vpop.permute.xlu0 %1147
    %v1150 = vadd.f32 %v1140, %v1148
    %v1151 = vtanh.pop %v1150
    %1153 = vrot.lane.b32.xlu0 %v1151, 64
    %v1154 = vpop.permute.xlu0 %1153
    %v1156 = vmul.f32 %v1139, %v1154
    %v1157 = vld [vmem:[%s2] sm:$0xff]
    %v1158 = vld [vmem:[%s2 + $0x8] sm:$0xff]
    %v1159 = vld [vmem:[%s2 + $0x10] sm:$0xff]
    %v1160 = vld [vmem:[%s2 + $0x18] sm:$0xff]
    %v1161 = vld [vmem:[%s414] sm:$0x1]
    %v1163 = vlaneseq
    %v1164 = vshrl.u32 %v1163, 7
    %v1165 = vsub.s32 0, %v1164
    %v1166 = vrot.slane %v1161, %v1165
    %1168 = vmatprep.subr.mxu0 0.0
    %1169 = vmatpush1.msra.mxu0 %v1157
    %1170 = vmatprep.subr.mxu0 0.0
    %1171 = vmatpush1.msra.mxu0 %v1158
    %1172 = vmatprep.subr.mxu0 0.0
    %1173 = vmatpush1.msra.mxu0 %v1159
    %1174 = vmatprep.subr.mxu0 0.0
    %1175 = vmatpush1.msra.mxu0 %v1160
    %1176 = vmatprep.subr.mxu0 0.0
    %1177 = vmatpush1.msra.mxu0 0.0
    %1178 = vmatprep.subr.mxu0 0.0
    %1179 = vmatpush1.msra.mxu0 0.0
    %1180 = vmatprep.subr.mxu0 0.0
    %1181 = vmatpush1.msra.mxu0 0.0
    %1182 = vmatprep.subr.mxu0 0.0
    %1183 = vmatpush1.msra.mxu0 0.0
    %1184 = vmatprep.subr.mxu0 0.0
    %1185 = vmatpush1.msra.mxu0 0.0
    %1186 = vmatprep.subr.mxu0 0.0
    %1187 = vmatpush1.msra.mxu0 0.0
    %1188 = vmatprep.subr.mxu0 0.0
    %1189 = vmatpush1.msra.mxu0 0.0
    %1190 = vmatprep.subr.mxu0 0.0
    %1191 = vmatpush1.msra.mxu0 0.0
    %1192 = vmatprep.subr.mxu0 0.0
    %1193 = vmatpush1.msra.mxu0 0.0
    %1194 = vmatprep.subr.mxu0 0.0
    %1195 = vmatpush1.msra.mxu0 0.0
    %1196 = vmatprep.subr.mxu0 0.0
    %1197 = vmatpush1.msra.mxu0 0.0
    %1198 = vmatprep.subr.mxu0 0.0
    %1199 = vmatpush1.msra.mxu0 0.0
    %1200 = vmatprep.subr.mxu0 0.0
    %1201 = vmatpush1.msra.mxu0 0.0
    %1202 = vmatprep.subr.mxu0 0.0
    %1203 = vmatpush1.msra.mxu0 0.0
    %1204 = vmatprep.subr.mxu0 0.0
    %1205 = vmatpush1.msra.mxu0 0.0
    %1206 = vmatprep.subr.mxu0 0.0
    %1207 = vmatpush1.msra.mxu0 0.0
    %1208 = vmatprep.subr.mxu0 0.0
    %1209 = vmatpush1.msra.mxu0 0.0
    %1210 = vmatprep.subr.mxu0 0.0
    %1211 = vmatpush1.msra.mxu0 0.0
    %1212 = vmatprep.subr.mxu0 0.0
    %1213 = vmatpush1.msra.mxu0 0.0
    %1214 = vmatprep.subr.mxu0 0.0
    %1215 = vmatpush1.msra.mxu0 0.0
    %1216 = vmatprep.subr.mxu0 0.0
    %1217 = vmatpush1.msra.mxu0 0.0
    %1218 = vmatprep.subr.mxu0 0.0
    %1219 = vmatpush1.msra.mxu0 0.0
    %1220 = vmatprep.subr.mxu0 0.0
    %1221 = vmatpush1.msra.mxu0 0.0
    %1222 = vmatprep.subr.mxu0 0.0
    %1223 = vmatpush1.msra.mxu0 0.0
    %1224 = vmatprep.subr.mxu0 0.0
    %1225 = vmatpush1.msra.mxu0 0.0
    %1226 = vmatprep.subr.mxu0 0.0
    %1227 = vmatpush1.msra.mxu0 0.0
    %1228 = vmatprep.subr.mxu0 0.0
    %1229 = vmatpush1.msra.mxu0 0.0
    %1230 = vmatprep.subr.mxu0 0.0
    %1231 = vmatpush1.msra.mxu0 0.0
    %1232 = vmatprep.mubr.f32.mxu0 0.0
    %1233 = vmatmul.mubr.f32.gmra.mrb[0].mxu0 %v1063
    %v1234 = vpop.f32.mrb[0].mxu0
    %v1235 = vadd.f32 %v1166, %v1234
    %v1236 = vpop.f32.mrb[0].mxu0
    %1237 = vdwg.mxu0
    %v1238 = vld [vmem:[%s492] sm:$0xff]
    %v1239 = vld [vmem:[%s492 + $0x8] sm:$0xff]
    %v1240 = vld [vmem:[%s492 + $0x10] sm:$0xff]
    %v1241 = vld [vmem:[%s492 + $0x18] sm:$0xff]
    %1243 = vrot.lane.b32.xlu0 %v861, 32
    %v1244 = vpop.permute.xlu0 %1243
    %v1245 = vsel %vm211, %v1244, 0
    %1247 = vmatprep.subr.mxu0 0.0
    %1248 = vmatpush1.msra.mxu0 %v1238
    %1249 = vmatprep.subr.mxu0 0.0
    %1250 = vmatpush1.msra.mxu0 %v1239
    %1251 = vmatprep.subr.mxu0 0.0
    %1252 = vmatpush1.msra.mxu0 %v1240
    %1253 = vmatprep.subr.mxu0 0.0
    %1254 = vmatpush1.msra.mxu0 %v1241
    %1255 = vmatprep.subr.mxu0 0.0
    %1256 = vmatpush1.msra.mxu0 0.0
    %1257 = vmatprep.subr.mxu0 0.0
    %1258 = vmatpush1.msra.mxu0 0.0
    %1259 = vmatprep.subr.mxu0 0.0
    %1260 = vmatpush1.msra.mxu0 0.0
    %1261 = vmatprep.subr.mxu0 0.0
    %1262 = vmatpush1.msra.mxu0 0.0
    %1263 = vmatprep.subr.mxu0 0.0
    %1264 = vmatpush1.msra.mxu0 0.0
    %1265 = vmatprep.subr.mxu0 0.0
    %1266 = vmatpush1.msra.mxu0 0.0
    %1267 = vmatprep.subr.mxu0 0.0
    %1268 = vmatpush1.msra.mxu0 0.0
    %1269 = vmatprep.subr.mxu0 0.0
    %1270 = vmatpush1.msra.mxu0 0.0
    %1271 = vmatprep.subr.mxu0 0.0
    %1272 = vmatpush1.msra.mxu0 0.0
    %1273 = vmatprep.subr.mxu0 0.0
    %1274 = vmatpush1.msra.mxu0 0.0
    %1275 = vmatprep.subr.mxu0 0.0
    %1276 = vmatpush1.msra.mxu0 0.0
    %1277 = vmatprep.subr.mxu0 0.0
    %1278 = vmatpush1.msra.mxu0 0.0
    %1279 = vmatprep.subr.mxu0 0.0
    %1280 = vmatpush1.msra.mxu0 0.0
    %1281 = vmatprep.subr.mxu0 0.0
    %1282 = vmatpush1.msra.mxu0 0.0
    %1283 = vmatprep.subr.mxu0 0.0
    %1284 = vmatpush1.msra.mxu0 0.0
    %1285 = vmatprep.subr.mxu0 0.0
    %1286 = vmatpush1.msra.mxu0 0.0
    %1287 = vmatprep.subr.mxu0 0.0
    %1288 = vmatpush1.msra.mxu0 0.0
    %1289 = vmatprep.subr.mxu0 0.0
    %1290 = vmatpush1.msra.mxu0 0.0
    %1291 = vmatprep.subr.mxu0 0.0
    %1292 = vmatpush1.msra.mxu0 0.0
    %1293 = vmatprep.subr.mxu0 0.0
    %1294 = vmatpush1.msra.mxu0 0.0
    %1295 = vmatprep.subr.mxu0 0.0
    %1296 = vmatpush1.msra.mxu0 0.0
    %1297 = vmatprep.subr.mxu0 0.0
    %1298 = vmatpush1.msra.mxu0 0.0
    %1299 = vmatprep.subr.mxu0 0.0
    %1300 = vmatpush1.msra.mxu0 0.0
    %1301 = vmatprep.subr.mxu0 0.0
    %1302 = vmatpush1.msra.mxu0 0.0
    %1303 = vmatprep.subr.mxu0 0.0
    %1304 = vmatpush1.msra.mxu0 0.0
    %1305 = vmatprep.subr.mxu0 0.0
    %1306 = vmatpush1.msra.mxu0 0.0
    %1307 = vmatprep.subr.mxu0 0.0
    %1308 = vmatpush1.msra.mxu0 0.0
    %1309 = vmatprep.subr.mxu0 0.0
    %1310 = vmatpush1.msra.mxu0 0.0
    %1311 = vmatprep.mubr.f32.mxu0 0.0
    %1312 = vmatmul.mubr.f32.gmra.mrb[0].mxu0 %v1245
    %v1313 = vpop.f32.mrb[0].mxu0
    %v1314 = vadd.f32 0.0, %v1313
    %v1315 = vpop.f32.mrb[0].mxu0
    %1316 = vdwg.mxu0
    %v1317 = vadd.f32 %v1235, %v1314
    %v1318 = vmul.f32 %v1317, %v108
    %v1319 = vtanh.pop %v1318
    %v1320 = vmul.f32 %v1319, %v108
    %v1321 = vadd.f32 %v1320, %v109
    %v1322 = vmul.f32 %v1321, %v855
    %1324 = vrot.lane.b32.xlu0 %v1321, 64
    %v1325 = vpop.permute.xlu0 %1324
    %v1327 = vmul.f32 %v1321, %v1325
    %1329 = vrot.lane.b32.xlu0 %v1327, 32
    %v1330 = vpop.permute.xlu0 %1329
    %v1332 = vadd.f32 %v1322, %v1330
    %v1333 = vtanh.pop %v1332
    %1335 = vrot.lane.b32.xlu0 %v1333, 64
    %v1336 = vpop.permute.xlu0 %1335
    %v1338 = vmul.f32 %v1321, %v1336
    %v1339 = vld [vmem:[%s862] sm:$0xff]
    %v1340 = vld [vmem:[%s862 + $0x8] sm:$0xff]
    %v1341 = vld [vmem:[%s862 + $0x10] sm:$0xff]
    %v1342 = vld [vmem:[%s862 + $0x18] sm:$0xff]
    %v1343 = vld [vmem:[%s867] sm:$0x1]
    %v1345 = vlaneseq
    %v1346 = vshrl.u32 %v1345, 7
    %v1347 = vsub.s32 0, %v1346
    %v1348 = vrot.slane %v1343, %v1347
    %1350 = vmatprep.subr.mxu0 0.0
    %1351 = vmatpush1.msra.mxu0 %v1339
    %1352 = vmatprep.subr.mxu0 0.0
    %1353 = vmatpush1.msra.mxu0 %v1340
    %1354 = vmatprep.subr.mxu0 0.0
    %1355 = vmatpush1.msra.mxu0 %v1341
    %1356 = vmatprep.subr.mxu0 0.0
    %1357 = vmatpush1.msra.mxu0 %v1342
    %1358 = vmatprep.subr.mxu0 0.0
    %1359 = vmatpush1.msra.mxu0 0.0
    %1360 = vmatprep.subr.mxu0 0.0
    %1361 = vmatpush1.msra.mxu0 0.0
    %1362 = vmatprep.subr.mxu0 0.0
    %1363 = vmatpush1.msra.mxu0 0.0
    %1364 = vmatprep.subr.mxu0 0.0
    %1365 = vmatpush1.msra.mxu0 0.0
    %1366 = vmatprep.subr.mxu0 0.0
    %1367 = vmatpush1.msra.mxu0 0.0
    %1368 = vmatprep.subr.mxu0 0.0
    %1369 = vmatpush1.msra.mxu0 0.0
    %1370 = vmatprep.subr.mxu0 0.0
    %1371 = vmatpush1.msra.mxu0 0.0
    %1372 = vmatprep.subr.mxu0 0.0
    %1373 = vmatpush1.msra.mxu0 0.0
    %1374 = vmatprep.subr.mxu0 0.0
    %1375 = vmatpush1.msra.mxu0 0.0
    %1376 = vmatprep.subr.mxu0 0.0
    %1377 = vmatpush1.msra.mxu0 0.0
    %1378 = vmatprep.subr.mxu0 0.0
    %1379 = vmatpush1.msra.mxu0 0.0
    %1380 = vmatprep.subr.mxu0 0.0
    %1381 = vmatpush1.msra.mxu0 0.0
    %1382 = vmatprep.subr.mxu0 0.0
    %1383 = vmatpush1.msra.mxu0 0.0
    %1384 = vmatprep.subr.mxu0 0.0
    %1385 = vmatpush1.msra.mxu0 0.0
    %1386 = vmatprep.subr.mxu0 0.0
    %1387 = vmatpush1.msra.mxu0 0.0
    %1388 = vmatprep.subr.mxu0 0.0
    %1389 = vmatpush1.msra.mxu0 0.0
    %1390 = vmatprep.subr.mxu0 0.0
    %1391 = vmatpush1.msra.mxu0 0.0
    %1392 = vmatprep.subr.mxu0 0.0
    %1393 = vmatpush1.msra.mxu0 0.0
    %1394 = vmatprep.subr.mxu0 0.0
    %1395 = vmatpush1.msra.mxu0 0.0
    %1396 = vmatprep.subr.mxu0 0.0
    %1397 = vmatpush1.msra.mxu0 0.0
    %1398 = vmatprep.subr.mxu0 0.0
    %1399 = vmatpush1.msra.mxu0 0.0
    %1400 = vmatprep.subr.mxu0 0.0
    %1401 = vmatpush1.msra.mxu0 0.0
    %1402 = vmatprep.subr.mxu0 0.0
    %1403 = vmatpush1.msra.mxu0 0.0
    %1404 = vmatprep.subr.mxu0 0.0
    %1405 = vmatpush1.msra.mxu0 0.0
    %1406 = vmatprep.subr.mxu0 0.0
    %1407 = vmatpush1.msra.mxu0 0.0
    %1408 = vmatprep.subr.mxu0 0.0
    %1409 = vmatpush1.msra.mxu0 0.0
    %1410 = vmatprep.subr.mxu0 0.0
    %1411 = vmatpush1.msra.mxu0 0.0
    %1412 = vmatprep.subr.mxu0 0.0
    %1413 = vmatpush1.msra.mxu0 0.0
    %1414 = vmatprep.mubr.f32.mxu0 0.0
    %1415 = vmatmul.mubr.f32.gmra.mrb[0].mxu0 %v1245
    %v1416 = vpop.f32.mrb[0].mxu0
    %v1417 = vadd.f32 %v1348, %v1416
    %v1418 = vpop.f32.mrb[0].mxu0
    %1419 = vdwg.mxu0
    %v1420 = vld [vmem:[%s945] sm:$0xff]
    %v1421 = vld [vmem:[%s945 + $0x8] sm:$0xff]
    %v1422 = vld [vmem:[%s945 + $0x10] sm:$0xff]
    %v1423 = vld [vmem:[%s945 + $0x18] sm:$0xff]
    %v1424 = vsel %vm211, %v1051, 0
    %1426 = vmatprep.subr.mxu0 0.0
    %1427 = vmatpush1.msra.mxu0 %v1420
    %1428 = vmatprep.subr.mxu0 0.0
    %1429 = vmatpush1.msra.mxu0 %v1421
    %1430 = vmatprep.subr.mxu0 0.0
    %1431 = vmatpush1.msra.mxu0 %v1422
    %1432 = vmatprep.subr.mxu0 0.0
    %1433 = vmatpush1.msra.mxu0 %v1423
    %1434 = vmatprep.subr.mxu0 0.0
    %1435 = vmatpush1.msra.mxu0 0.0
    %1436 = vmatprep.subr.mxu0 0.0
    %1437 = vmatpush1.msra.mxu0 0.0
    %1438 = vmatprep.subr.mxu0 0.0
    %1439 = vmatpush1.msra.mxu0 0.0
    %1440 = vmatprep.subr.mxu0 0.0
    %1441 = vmatpush1.msra.mxu0 0.0
    %1442 = vmatprep.subr.mxu0 0.0
    %1443 = vmatpush1.msra.mxu0 0.0
    %1444 = vmatprep.subr.mxu0 0.0
    %1445 = vmatpush1.msra.mxu0 0.0
    %1446 = vmatprep.subr.mxu0 0.0
    %1447 = vmatpush1.msra.mxu0 0.0
    %1448 = vmatprep.subr.mxu0 0.0
    %1449 = vmatpush1.msra.mxu0 0.0
    %1450 = vmatprep.subr.mxu0 0.0
    %1451 = vmatpush1.msra.mxu0 0.0
    %1452 = vmatprep.subr.mxu0 0.0
    %1453 = vmatpush1.msra.mxu0 0.0
    %1454 = vmatprep.subr.mxu0 0.0
    %1455 = vmatpush1.msra.mxu0 0.0
    %1456 = vmatprep.subr.mxu0 0.0
    %1457 = vmatpush1.msra.mxu0 0.0
    %1458 = vmatprep.subr.mxu0 0.0
    %1459 = vmatpush1.msra.mxu0 0.0
    %1460 = vmatprep.subr.mxu0 0.0
    %1461 = vmatpush1.msra.mxu0 0.0
    %1462 = vmatprep.subr.mxu0 0.0
    %1463 = vmatpush1.msra.mxu0 0.0
    %1464 = vmatprep.subr.mxu0 0.0
    %1465 = vmatpush1.msra.mxu0 0.0
    %1466 = vmatprep.subr.mxu0 0.0
    %1467 = vmatpush1.msra.mxu0 0.0
    %1468 = vmatprep.subr.mxu0 0.0
    %1469 = vmatpush1.msra.mxu0 0.0
    %1470 = vmatprep.subr.mxu0 0.0
    %1471 = vmatpush1.msra.mxu0 0.0
    %1472 = vmatprep.subr.mxu0 0.0
    %1473 = vmatpush1.msra.mxu0 0.0
    %1474 = vmatprep.subr.mxu0 0.0
    %1475 = vmatpush1.msra.mxu0 0.0
    %1476 = vmatprep.subr.mxu0 0.0
    %1477 = vmatpush1.msra.mxu0 0.0
    %1478 = vmatprep.subr.mxu0 0.0
    %1479 = vmatpush1.msra.mxu0 0.0
    %1480 = vmatprep.subr.mxu0 0.0
    %1481 = vmatpush1.msra.mxu0 0.0
    %1482 = vmatprep.subr.mxu0 0.0
    %1483 = vmatpush1.msra.mxu0 0.0
    %1484 = vmatprep.subr.mxu0 0.0
    %1485 = vmatpush1.msra.mxu0 0.0
    %1486 = vmatprep.subr.mxu0 0.0
    %1487 = vmatpush1.msra.mxu0 0.0
    %1488 = vmatprep.subr.mxu0 0.0
    %1489 = vmatpush1.msra.mxu0 0.0
    %1490 = vmatprep.mubr.f32.mxu0 0.0
    %1491 = vmatmul.mubr.f32.gmra.mrb[0].mxu0 %v1424
    %v1492 = vpop.f32.mrb[0].mxu0
    %v1493 = vadd.f32 0.0, %v1492
    %v1494 = vpop.f32.mrb[0].mxu0
    %1495 = vdwg.mxu0
    %v1496 = vadd.f32 %v1417, %v1493
    %v1497 = vmul.f32 %v1496, %v108
    %v1498 = vtanh.pop %v1497
    %v1499 = vmul.f32 %v1498, %v108
    %v1500 = vadd.f32 %v1499, %v109
    %v1501 = vmul.f32 %v1500, %v1042
    %1503 = vrot.lane.b32.xlu0 %v1500, 64
    %v1504 = vpop.permute.xlu0 %1503
    %v1506 = vmul.f32 %v1500, %v1504
    %1508 = vrot.lane.b32.xlu0 %v1506, 32
    %v1509 = vpop.permute.xlu0 %1508
    %v1511 = vadd.f32 %v1501, %v1509
    %v1512 = vtanh.pop %v1511
    %1514 = vrot.lane.b32.xlu0 %v1512, 64
    %v1515 = vpop.permute.xlu0 %1514
    %v1517 = vmul.f32 %v1500, %v1515
    %1519 = vrot.lane.b32.xlu0 %v1517, 32
    %v1520 = vpop.permute.xlu0 %1519
    %1522 = vst.msk [vmem:[#allocation3 + $0x8] sm:$0xff] %vm211, %v1520
    %s1523 = scalar_lea.vmem [#allocation2], 32
    %v1524 = vld [vmem:[%s1523] sm:$0xff]
    %v1525 = vld [vmem:[#allocation7] sm:$0xff]
    %v1526 = vld [vmem:[#allocation7 + $0x8] sm:$0xff]
    %v1527 = vld [vmem:[#allocation7 + $0x10] sm:$0xff]
    %v1528 = vld [vmem:[#allocation7 + $0x18] sm:$0xff]
    %1530 = vrot.lane.b32.xlu0 %v1156, 32
    %v1531 = vpop.permute.xlu0 %1530
    %v1532 = vsel %vm211, %v1531, 0
    %1534 = vmatprep.subr.mxu0 0.0
    %1535 = vmatpush1.msra.mxu0 %v1525
    %1536 = vmatprep.subr.mxu0 0.0
    %1537 = vmatpush1.msra.mxu0 %v1526
    %1538 = vmatprep.subr.mxu0 0.0
    %1539 = vmatpush1.msra.mxu0 %v1527
    %1540 = vmatprep.subr.mxu0 0.0
    %1541 = vmatpush1.msra.mxu0 %v1528
    %1542 = vmatprep.subr.mxu0 0.0
    %1543 = vmatpush1.msra.mxu0 0.0
    %1544 = vmatprep.subr.mxu0 0.0
    %1545 = vmatpush1.msra.mxu0 0.0
    %1546 = vmatprep.subr.mxu0 0.0
    %1547 = vmatpush1.msra.mxu0 0.0
    %1548 = vmatprep.subr.mxu0 0.0
    %1549 = vmatpush1.msra.mxu0 0.0
    %1550 = vmatprep.subr.mxu0 0.0
    %1551 = vmatpush1.msra.mxu0 0.0
    %1552 = vmatprep.subr.mxu0 0.0
    %1553 = vmatpush1.msra.mxu0 0.0
    %1554 = vmatprep.subr.mxu0 0.0
    %1555 = vmatpush1.msra.mxu0 0.0
    %1556 = vmatprep.subr.mxu0 0.0
    %1557 = vmatpush1.msra.mxu0 0.0
    %1558 = vmatprep.subr.mxu0 0.0
    %1559 = vmatpush1.msra.mxu0 0.0
    %1560 = vmatprep.subr.mxu0 0.0
    %1561 = vmatpush1.msra.mxu0 0.0
    %1562 = vmatprep.subr.mxu0 0.0
    %1563 = vmatpush1.msra.mxu0 0.0
    %1564 = vmatprep.subr.mxu0 0.0
    %1565 = vmatpush1.msra.mxu0 0.0
    %1566 = vmatprep.subr.mxu0 0.0
    %1567 = vmatpush1.msra.mxu0 0.0
    %1568 = vmatprep.subr.mxu0 0.0
    %1569 = vmatpush1.msra.mxu0 0.0
    %1570 = vmatprep.subr.mxu0 0.0
    %1571 = vmatpush1.msra.mxu0 0.0
    %1572 = vmatprep.subr.mxu0 0.0
    %1573 = vmatpush1.msra.mxu0 0.0
    %1574 = vmatprep.subr.mxu0 0.0
    %1575 = vmatpush1.msra.mxu0 0.0
    %1576 = vmatprep.subr.mxu0 0.0
    %1577 = vmatpush1.msra.mxu0 0.0
    %1578 = vmatprep.subr.mxu0 0.0
    %1579 = vmatpush1.msra.mxu0 0.0
    %1580 = vmatprep.subr.mxu0 0.0
    %1581 = vmatpush1.msra.mxu0 0.0
    %1582 = vmatprep.subr.mxu0 0.0
    %1583 = vmatpush1.msra.mxu0 0.0
    %1584 = vmatprep.subr.mxu0 0.0
    %1585 = vmatpush1.msra.mxu0 0.0
    %1586 = vmatprep.subr.mxu0 0.0
    %1587 = vmatpush1.msra.mxu0 0.0
    %1588 = vmatprep.subr.mxu0 0.0
    %1589 = vmatpush1.msra.mxu0 0.0
    %1590 = vmatprep.subr.mxu0 0.0
    %1591 = vmatpush1.msra.mxu0 0.0
    %1592 = vmatprep.subr.mxu0 0.0
    %1593 = vmatpush1.msra.mxu0 0.0
    %1594 = vmatprep.subr.mxu0 0.0
    %1595 = vmatpush1.msra.mxu0 0.0
    %1596 = vmatprep.subr.mxu0 0.0
    %1597 = vmatpush1.msra.mxu0 0.0
    %1598 = vmatprep.mubr.f32.mxu0 0.0
    %1599 = vmatmul.mubr.f32.gmra.mrb[0].mxu0 %v1532
    %v1600 = vpop.f32.mrb[0].mxu0
    %v1601 = vadd.f32 0.0, %v1600
    %v1602 = vpop.f32.mrb[0].mxu0
    %1603 = vdwg.mxu0
    %v1604 = vadd.f32 %v1524, %v1601
    %v1605 = vmul.f32 %v1604, %v108
    %v1606 = vtanh.pop %v1605
    %v1607 = vmul.f32 %v1606, %v108
    %v1608 = vadd.f32 %v1607, %v109
    %v1609 = vmul.f32 %v1608, %v1150
    %1611 = vrot.lane.b32.xlu0 %v1608, 64
    %v1612 = vpop.permute.xlu0 %1611
    %v1614 = vmul.f32 %v1608, %v1612
    %1616 = vrot.lane.b32.xlu0 %v1614, 32
    %v1617 = vpop.permute.xlu0 %1616
    %v1619 = vadd.f32 %v1609, %v1617
    %v1620 = vtanh.pop %v1619
    %1622 = vrot.lane.b32.xlu0 %v1620, 64
    %v1623 = vpop.permute.xlu0 %1622
    %v1625 = vmul.f32 %v1608, %v1623
    %v1626 = vld [vmem:[%s2] sm:$0xff]
    %v1627 = vld [vmem:[%s2 + $0x8] sm:$0xff]
    %v1628 = vld [vmem:[%s2 + $0x10] sm:$0xff]
    %v1629 = vld [vmem:[%s2 + $0x18] sm:$0xff]
    %v1630 = vld [vmem:[%s414] sm:$0x1]
    %v1632 = vlaneseq
    %v1633 = vshrl.u32 %v1632, 7
    %v1634 = vsub.s32 0, %v1633
    %v1635 = vrot.slane %v1630, %v1634
    %1637 = vmatprep.subr.mxu0 0.0
    %1638 = vmatpush1.msra.mxu0 %v1626
    %1639 = vmatprep.subr.mxu0 0.0
    %1640 = vmatpush1.msra.mxu0 %v1627
    %1641 = vmatprep.subr.mxu0 0.0
    %1642 = vmatpush1.msra.mxu0 %v1628
    %1643 = vmatprep.subr.mxu0 0.0
    %1644 = vmatpush1.msra.mxu0 %v1629
    %1645 = vmatprep.subr.mxu0 0.0
    %1646 = vmatpush1.msra.mxu0 0.0
    %1647 = vmatprep.subr.mxu0 0.0
    %1648 = vmatpush1.msra.mxu0 0.0
    %1649 = vmatprep.subr.mxu0 0.0
    %1650 = vmatpush1.msra.mxu0 0.0
    %1651 = vmatprep.subr.mxu0 0.0
    %1652 = vmatpush1.msra.mxu0 0.0
    %1653 = vmatprep.subr.mxu0 0.0
    %1654 = vmatpush1.msra.mxu0 0.0
    %1655 = vmatprep.subr.mxu0 0.0
    %1656 = vmatpush1.msra.mxu0 0.0
    %1657 = vmatprep.subr.mxu0 0.0
    %1658 = vmatpush1.msra.mxu0 0.0
    %1659 = vmatprep.subr.mxu0 0.0
    %1660 = vmatpush1.msra.mxu0 0.0
    %1661 = vmatprep.subr.mxu0 0.0
    %1662 = vmatpush1.msra.mxu0 0.0
    %1663 = vmatprep.subr.mxu0 0.0
    %1664 = vmatpush1.msra.mxu0 0.0
    %1665 = vmatprep.subr.mxu0 0.0
    %1666 = vmatpush1.msra.mxu0 0.0
    %1667 = vmatprep.subr.mxu0 0.0
    %1668 = vmatpush1.msra.mxu0 0.0
    %1669 = vmatprep.subr.mxu0 0.0
    %1670 = vmatpush1.msra.mxu0 0.0
    %1671 = vmatprep.subr.mxu0 0.0
    %1672 = vmatpush1.msra.mxu0 0.0
    %1673 = vmatprep.subr.mxu0 0.0
    %1674 = vmatpush1.msra.mxu0 0.0
    %1675 = vmatprep.subr.mxu0 0.0
    %1676 = vmatpush1.msra.mxu0 0.0
    %1677 = vmatprep.subr.mxu0 0.0
    %1678 = vmatpush1.msra.mxu0 0.0
    %1679 = vmatprep.subr.mxu0 0.0
    %1680 = vmatpush1.msra.mxu0 0.0
    %1681 = vmatprep.subr.mxu0 0.0
    %1682 = vmatpush1.msra.mxu0 0.0
    %1683 = vmatprep.subr.mxu0 0.0
    %1684 = vmatpush1.msra.mxu0 0.0
    %1685 = vmatprep.subr.mxu0 0.0
    %1686 = vmatpush1.msra.mxu0 0.0
    %1687 = vmatprep.subr.mxu0 0.0
    %1688 = vmatpush1.msra.mxu0 0.0
    %1689 = vmatprep.subr.mxu0 0.0
    %1690 = vmatpush1.msra.mxu0 0.0
    %1691 = vmatprep.subr.mxu0 0.0
    %1692 = vmatpush1.msra.mxu0 0.0
    %1693 = vmatprep.subr.mxu0 0.0
    %1694 = vmatpush1.msra.mxu0 0.0
    %1695 = vmatprep.subr.mxu0 0.0
    %1696 = vmatpush1.msra.mxu0 0.0
    %1697 = vmatprep.subr.mxu0 0.0
    %1698 = vmatpush1.msra.mxu0 0.0
    %1699 = vmatprep.subr.mxu0 0.0
    %1700 = vmatpush1.msra.mxu0 0.0
    %1701 = vmatprep.mubr.f32.mxu0 0.0
    %1702 = vmatmul.mubr.f32.gmra.mrb[0].mxu0 %v1532
    %v1703 = vpop.f32.mrb[0].mxu0
    %v1704 = vadd.f32 %v1635, %v1703
    %v1705 = vpop.f32.mrb[0].mxu0
    %1706 = vdwg.mxu0
    %v1707 = vld [vmem:[%s492] sm:$0xff]
    %v1708 = vld [vmem:[%s492 + $0x8] sm:$0xff]
    %v1709 = vld [vmem:[%s492 + $0x10] sm:$0xff]
    %v1710 = vld [vmem:[%s492 + $0x18] sm:$0xff]
    %1712 = vrot.lane.b32.xlu0 %v1338, 32
    %v1713 = vpop.permute.xlu0 %1712
    %v1714 = vsel %vm211, %v1713, 0
    %1716 = vmatprep.subr.mxu0 0.0
    %1717 = vmatpush1.msra.mxu0 %v1707
    %1718 = vmatprep.subr.mxu0 0.0
    %1719 = vmatpush1.msra.mxu0 %v1708
    %1720 = vmatprep.subr.mxu0 0.0
    %1721 = vmatpush1.msra.mxu0 %v1709
    %1722 = vmatprep.subr.mxu0 0.0
    %1723 = vmatpush1.msra.mxu0 %v1710
    %1724 = vmatprep.subr.mxu0 0.0
    %1725 = vmatpush1.msra.mxu0 0.0
    %1726 = vmatprep.subr.mxu0 0.0
    %1727 = vmatpush1.msra.mxu0 0.0
    %1728 = vmatprep.subr.mxu0 0.0
    %1729 = vmatpush1.msra.mxu0 0.0
    %1730 = vmatprep.subr.mxu0 0.0
    %1731 = vmatpush1.msra.mxu0 0.0
    %1732 = vmatprep.subr.mxu0 0.0
    %1733 = vmatpush1.msra.mxu0 0.0
    %1734 = vmatprep.subr.mxu0 0.0
    %1735 = vmatpush1.msra.mxu0 0.0
    %1736 = vmatprep.subr.mxu0 0.0
    %1737 = vmatpush1.msra.mxu0 0.0
    %1738 = vmatprep.subr.mxu0 0.0
    %1739 = vmatpush1.msra.mxu0 0.0
    %1740 = vmatprep.subr.mxu0 0.0
    %1741 = vmatpush1.msra.mxu0 0.0
    %1742 = vmatprep.subr.mxu0 0.0
    %1743 = vmatpush1.msra.mxu0 0.0
    %1744 = vmatprep.subr.mxu0 0.0
    %1745 = vmatpush1.msra.mxu0 0.0
    %1746 = vmatprep.subr.mxu0 0.0
    %1747 = vmatpush1.msra.mxu0 0.0
    %1748 = vmatprep.subr.mxu0 0.0
    %1749 = vmatpush1.msra.mxu0 0.0
    %1750 = vmatprep.subr.mxu0 0.0
    %1751 = vmatpush1.msra.mxu0 0.0
    %1752 = vmatprep.subr.mxu0 0.0
    %1753 = vmatpush1.msra.mxu0 0.0
    %1754 = vmatprep.subr.mxu0 0.0
    %1755 = vmatpush1.msra.mxu0 0.0
    %1756 = vmatprep.subr.mxu0 0.0
    %1757 = vmatpush1.msra.mxu0 0.0
    %1758 = vmatprep.subr.mxu0 0.0
    %1759 = vmatpush1.msra.mxu0 0.0
    %1760 = vmatprep.subr.mxu0 0.0
    %1761 = vmatpush1.msra.mxu0 0.0
    %1762 = vmatprep.subr.mxu0 0.0
    %1763 = vmatpush1.msra.mxu0 0.0
    %1764 = vmatprep.subr.mxu0 0.0
    %1765 = vmatpush1.msra.mxu0 0.0
    %1766 = vmatprep.subr.mxu0 0.0
    %1767 = vmatpush1.msra.mxu0 0.0
    %1768 = vmatprep.subr.mxu0 0.0
    %1769 = vmatpush1.msra.mxu0 0.0
    %1770 = vmatprep.subr.mxu0 0.0
    %1771 = vmatpush1.msra.mxu0 0.0
    %1772 = vmatprep.subr.mxu0 0.0
    %1773 = vmatpush1.msra.mxu0 0.0
    %1774 = vmatprep.subr.mxu0 0.0
    %1775 = vmatpush1.msra.mxu0 0.0
    %1776 = vmatprep.subr.mxu0 0.0
    %1777 = vmatpush1.msra.mxu0 0.0
    %1778 = vmatprep.subr.mxu0 0.0
    %1779 = vmatpush1.msra.mxu0 0.0
    %1780 = vmatprep.mubr.f32.mxu0 0.0
    %1781 = vmatmul.mubr.f32.gmra.mrb[0].mxu0 %v1714
    %v1782 = vpop.f32.mrb[0].mxu0
    %v1783 = vadd.f32 0.0, %v1782
    %v1784 = vpop.f32.mrb[0].mxu0
    %1785 = vdwg.mxu0
    %v1786 = vadd.f32 %v1704, %v1783
    %v1787 = vmul.f32 %v1786, %v108
    %v1788 = vtanh.pop %v1787
    %v1789 = vmul.f32 %v1788, %v108
    %v1790 = vadd.f32 %v1789, %v109
    %v1791 = vmul.f32 %v1790, %v1332
    %1793 = vrot.lane.b32.xlu0 %v1790, 64
    %v1794 = vpop.permute.xlu0 %1793
    %v1796 = vmul.f32 %v1790, %v1794
    %1798 = vrot.lane.b32.xlu0 %v1796, 32
    %v1799 = vpop.permute.xlu0 %1798
    %v1801 = vadd.f32 %v1791, %v1799
    %v1802 = vtanh.pop %v1801
    %1804 = vrot.lane.b32.xlu0 %v1802, 64
    %v1805 = vpop.permute.xlu0 %1804
    %v1807 = vmul.f32 %v1790, %v1805
    %v1808 = vld [vmem:[%s862] sm:$0xff]
    %v1809 = vld [vmem:[%s862 + $0x8] sm:$0xff]
    %v1810 = vld [vmem:[%s862 + $0x10] sm:$0xff]
    %v1811 = vld [vmem:[%s862 + $0x18] sm:$0xff]
    %v1812 = vld [vmem:[%s867] sm:$0x1]
    %v1814 = vlaneseq
    %v1815 = vshrl.u32 %v1814, 7
    %v1816 = vsub.s32 0, %v1815
    %v1817 = vrot.slane %v1812, %v1816
    %1819 = vmatprep.subr.mxu0 0.0
    %1820 = vmatpush1.msra.mxu0 %v1808
    %1821 = vmatprep.subr.mxu0 0.0
    %1822 = vmatpush1.msra.mxu0 %v1809
    %1823 = vmatprep.subr.mxu0 0.0
    %1824 = vmatpush1.msra.mxu0 %v1810
    %1825 = vmatprep.subr.mxu0 0.0
    %1826 = vmatpush1.msra.mxu0 %v1811
    %1827 = vmatprep.subr.mxu0 0.0
    %1828 = vmatpush1.msra.mxu0 0.0
    %1829 = vmatprep.subr.mxu0 0.0
    %1830 = vmatpush1.msra.mxu0 0.0
    %1831 = vmatprep.subr.mxu0 0.0
    %1832 = vmatpush1.msra.mxu0 0.0
    %1833 = vmatprep.subr.mxu0 0.0
    %1834 = vmatpush1.msra.mxu0 0.0
    %1835 = vmatprep.subr.mxu0 0.0
    %1836 = vmatpush1.msra.mxu0 0.0
    %1837 = vmatprep.subr.mxu0 0.0
    %1838 = vmatpush1.msra.mxu0 0.0
    %1839 = vmatprep.subr.mxu0 0.0
    %1840 = vmatpush1.msra.mxu0 0.0
    %1841 = vmatprep.subr.mxu0 0.0
    %1842 = vmatpush1.msra.mxu0 0.0
    %1843 = vmatprep.subr.mxu0 0.0
    %1844 = vmatpush1.msra.mxu0 0.0
    %1845 = vmatprep.subr.mxu0 0.0
    %1846 = vmatpush1.msra.mxu0 0.0
    %1847 = vmatprep.subr.mxu0 0.0
    %1848 = vmatpush1.msra.mxu0 0.0
    %1849 = vmatprep.subr.mxu0 0.0
    %1850 = vmatpush1.msra.mxu0 0.0
    %1851 = vmatprep.subr.mxu0 0.0
    %1852 = vmatpush1.msra.mxu0 0.0
    %1853 = vmatprep.subr.mxu0 0.0
    %1854 = vmatpush1.msra.mxu0 0.0
    %1855 = vmatprep.subr.mxu0 0.0
    %1856 = vmatpush1.msra.mxu0 0.0
    %1857 = vmatprep.subr.mxu0 0.0
    %1858 = vmatpush1.msra.mxu0 0.0
    %1859 = vmatprep.subr.mxu0 0.0
    %1860 = vmatpush1.msra.mxu0 0.0
    %1861 = vmatprep.subr.mxu0 0.0
    %1862 = vmatpush1.msra.mxu0 0.0
    %1863 = vmatprep.subr.mxu0 0.0
    %1864 = vmatpush1.msra.mxu0 0.0
    %1865 = vmatprep.subr.mxu0 0.0
    %1866 = vmatpush1.msra.mxu0 0.0
    %1867 = vmatprep.subr.mxu0 0.0
    %1868 = vmatpush1.msra.mxu0 0.0
    %1869 = vmatprep.subr.mxu0 0.0
    %1870 = vmatpush1.msra.mxu0 0.0
    %1871 = vmatprep.subr.mxu0 0.0
    %1872 = vmatpush1.msra.mxu0 0.0
    %1873 = vmatprep.subr.mxu0 0.0
    %1874 = vmatpush1.msra.mxu0 0.0
    %1875 = vmatprep.subr.mxu0 0.0
    %1876 = vmatpush1.msra.mxu0 0.0
    %1877 = vmatprep.subr.mxu0 0.0
    %1878 = vmatpush1.msra.mxu0 0.0
    %1879 = vmatprep.subr.mxu0 0.0
    %1880 = vmatpush1.msra.mxu0 0.0
    %1881 = vmatprep.subr.mxu0 0.0
    %1882 = vmatpush1.msra.mxu0 0.0
    %1883 = vmatprep.mubr.f32.mxu0 0.0
    %1884 = vmatmul.mubr.f32.gmra.mrb[0].mxu0 %v1714
    %v1885 = vpop.f32.mrb[0].mxu0
    %v1886 = vadd.f32 %v1817, %v1885
    %v1887 = vpop.f32.mrb[0].mxu0
    %1888 = vdwg.mxu0
    %v1889 = vld [vmem:[%s945] sm:$0xff]
    %v1890 = vld [vmem:[%s945 + $0x8] sm:$0xff]
    %v1891 = vld [vmem:[%s945 + $0x10] sm:$0xff]
    %v1892 = vld [vmem:[%s945 + $0x18] sm:$0xff]
    %v1893 = vsel %vm211, %v1520, 0
    %1895 = vmatprep.subr.mxu0 0.0
    %1896 = vmatpush1.msra.mxu0 %v1889
    %1897 = vmatprep.subr.mxu0 0.0
    %1898 = vmatpush1.msra.mxu0 %v1890
    %1899 = vmatprep.subr.mxu0 0.0
    %1900 = vmatpush1.msra.mxu0 %v1891
    %1901 = vmatprep.subr.mxu0 0.0
    %1902 = vmatpush1.msra.mxu0 %v1892
    %1903 = vmatprep.subr.mxu0 0.0
    %1904 = vmatpush1.msra.mxu0 0.0
    %1905 = vmatprep.subr.mxu0 0.0
    %1906 = vmatpush1.msra.mxu0 0.0
    %1907 = vmatprep.subr.mxu0 0.0
    %1908 = vmatpush1.msra.mxu0 0.0
    %1909 = vmatprep.subr.mxu0 0.0
    %1910 = vmatpush1.msra.mxu0 0.0
    %1911 = vmatprep.subr.mxu0 0.0
    %1912 = vmatpush1.msra.mxu0 0.0
    %1913 = vmatprep.subr.mxu0 0.0
    %1914 = vmatpush1.msra.mxu0 0.0
    %1915 = vmatprep.subr.mxu0 0.0
    %1916 = vmatpush1.msra.mxu0 0.0
    %1917 = vmatprep.subr.mxu0 0.0
    %1918 = vmatpush1.msra.mxu0 0.0
    %1919 = vmatprep.subr.mxu0 0.0
    %1920 = vmatpush1.msra.mxu0 0.0
    %1921 = vmatprep.subr.mxu0 0.0
    %1922 = vmatpush1.msra.mxu0 0.0
    %1923 = vmatprep.subr.mxu0 0.0
    %1924 = vmatpush1.msra.mxu0 0.0
    %1925 = vmatprep.subr.mxu0 0.0
    %1926 = vmatpush1.msra.mxu0 0.0
    %1927 = vmatprep.subr.mxu0 0.0
    %1928 = vmatpush1.msra.mxu0 0.0
    %1929 = vmatprep.subr.mxu0 0.0
    %1930 = vmatpush1.msra.mxu0 0.0
    %1931 = vmatprep.subr.mxu0 0.0
    %1932 = vmatpush1.msra.mxu0 0.0
    %1933 = vmatprep.subr.mxu0 0.0
    %1934 = vmatpush1.msra.mxu0 0.0
    %1935 = vmatprep.subr.mxu0 0.0
    %1936 = vmatpush1.msra.mxu0 0.0
    %1937 = vmatprep.subr.mxu0 0.0
    %1938 = vmatpush1.msra.mxu0 0.0
    %1939 = vmatprep.subr.mxu0 0.0
    %1940 = vmatpush1.msra.mxu0 0.0
    %1941 = vmatprep.subr.mxu0 0.0
    %1942 = vmatpush1.msra.mxu0 0.0
    %1943 = vmatprep.subr.mxu0 0.0
    %1944 = vmatpush1.msra.mxu0 0.0
    %1945 = vmatprep.subr.mxu0 0.0
    %1946 = vmatpush1.msra.mxu0 0.0
    %1947 = vmatprep.subr.mxu0 0.0
    %1948 = vmatpush1.msra.mxu0 0.0
    %1949 = vmatprep.subr.mxu0 0.0
    %1950 = vmatpush1.msra.mxu0 0.0
    %1951 = vmatprep.subr.mxu0 0.0
    %1952 = vmatpush1.msra.mxu0 0.0
    %1953 = vmatprep.subr.mxu0 0.0
    %1954 = vmatpush1.msra.mxu0 0.0
    %1955 = vmatprep.subr.mxu0 0.0
    %1956 = vmatpush1.msra.mxu0 0.0
    %1957 = vmatprep.subr.mxu0 0.0
    %1958 = vmatpush1.msra.mxu0 0.0
    %1959 = vmatprep.mubr.f32.mxu0 0.0
    %1960 = vmatmul.mubr.f32.gmra.mrb[0].mxu0 %v1893
    %v1961 = vpop.f32.mrb[0].mxu0
    %v1962 = vadd.f32 0.0, %v1961
    %v1963 = vpop.f32.mrb[0].mxu0
    %1964 = vdwg.mxu0
    %v1965 = vadd.f32 %v1886, %v1962
    %v1966 = vmul.f32 %v1965, %v108
    %v1967 = vtanh.pop %v1966
    %v1968 = vmul.f32 %v1967, %v108
    %v1969 = vadd.f32 %v1968, %v109
    %v1970 = vmul.f32 %v1969, %v1511
    %1972 = vrot.lane.b32.xlu0 %v1969, 64
    %v1973 = vpop.permute.xlu0 %1972
    %v1975 = vmul.f32 %v1969, %v1973
    %1977 = vrot.lane.b32.xlu0 %v1975, 32
    %v1978 = vpop.permute.xlu0 %1977
    %v1980 = vadd.f32 %v1970, %v1978
    %v1981 = vtanh.pop %v1980
    %1983 = vrot.lane.b32.xlu0 %v1981, 64
    %v1984 = vpop.permute.xlu0 %1983
    %v1986 = vmul.f32 %v1969, %v1984
    %1988 = vrot.lane.b32.xlu0 %v1986, 32
    %v1989 = vpop.permute.xlu0 %1988
    %1991 = vst.msk [vmem:[#allocation3 + $0x10] sm:$0xff] %vm211, %v1989
    %s1992 = scalar_lea.vmem [#allocation2], 40
    %v1993 = vld [vmem:[%s1992] sm:$0xff]
    %v1994 = vld [vmem:[#allocation7] sm:$0xff]
    %v1995 = vld [vmem:[#allocation7 + $0x8] sm:$0xff]
    %v1996 = vld [vmem:[#allocation7 + $0x10] sm:$0xff]
    %v1997 = vld [vmem:[#allocation7 + $0x18] sm:$0xff]
    %1999 = vrot.lane.b32.xlu0 %v1625, 32
    %v2000 = vpop.permute.xlu0 %1999
    %v2001 = vsel %vm211, %v2000, 0
    %2003 = vmatprep.subr.mxu0 0.0
    %2004 = vmatpush1.msra.mxu0 %v1994
    %2005 = vmatprep.subr.mxu0 0.0
    %2006 = vmatpush1.msra.mxu0 %v1995
    %2007 = vmatprep.subr.mxu0 0.0
    %2008 = vmatpush1.msra.mxu0 %v1996
    %2009 = vmatprep.subr.mxu0 0.0
    %2010 = vmatpush1.msra.mxu0 %v1997
    %2011 = vmatprep.subr.mxu0 0.0
    %2012 = vmatpush1.msra.mxu0 0.0
    %2013 = vmatprep.subr.mxu0 0.0
    %2014 = vmatpush1.msra.mxu0 0.0
    %2015 = vmatprep.subr.mxu0 0.0
    %2016 = vmatpush1.msra.mxu0 0.0
    %2017 = vmatprep.subr.mxu0 0.0
    %2018 = vmatpush1.msra.mxu0 0.0
    %2019 = vmatprep.subr.mxu0 0.0
    %2020 = vmatpush1.msra.mxu0 0.0
    %2021 = vmatprep.subr.mxu0 0.0
    %2022 = vmatpush1.msra.mxu0 0.0
    %2023 = vmatprep.subr.mxu0 0.0
    %2024 = vmatpush1.msra.mxu0 0.0
    %2025 = vmatprep.subr.mxu0 0.0
    %2026 = vmatpush1.msra.mxu0 0.0
    %2027 = vmatprep.subr.mxu0 0.0
    %2028 = vmatpush1.msra.mxu0 0.0
    %2029 = vmatprep.subr.mxu0 0.0
    %2030 = vmatpush1.msra.mxu0 0.0
    %2031 = vmatprep.subr.mxu0 0.0
    %2032 = vmatpush1.msra.mxu0 0.0
    %2033 = vmatprep.subr.mxu0 0.0
    %2034 = vmatpush1.msra.mxu0 0.0
    %2035 = vmatprep.subr.mxu0 0.0
    %2036 = vmatpush1.msra.mxu0 0.0
    %2037 = vmatprep.subr.mxu0 0.0
    %2038 = vmatpush1.msra.mxu0 0.0
    %2039 = vmatprep.subr.mxu0 0.0
    %2040 = vmatpush1.msra.mxu0 0.0
    %2041 = vmatprep.subr.mxu0 0.0
    %2042 = vmatpush1.msra.mxu0 0.0
    %2043 = vmatprep.subr.mxu0 0.0
    %2044 = vmatpush1.msra.mxu0 0.0
    %2045 = vmatprep.subr.mxu0 0.0
    %2046 = vmatpush1.msra.mxu0 0.0
    %2047 = vmatprep.subr.mxu0 0.0
    %2048 = vmatpush1.msra.mxu0 0.0
    %2049 = vmatprep.subr.mxu0 0.0
    %2050 = vmatpush1.msra.mxu0 0.0
    %2051 = vmatprep.subr.mxu0 0.0
    %2052 = vmatpush1.msra.mxu0 0.0
    %2053 = vmatprep.subr.mxu0 0.0
    %2054 = vmatpush1.msra.mxu0 0.0
    %2055 = vmatprep.subr.mxu0 0.0
    %2056 = vmatpush1.msra.mxu0 0.0
    %2057 = vmatprep.subr.mxu0 0.0
    %2058 = vmatpush1.msra.mxu0 0.0
    %2059 = vmatprep.subr.mxu0 0.0
    %2060 = vmatpush1.msra.mxu0 0.0
    %2061 = vmatprep.subr.mxu0 0.0
    %2062 = vmatpush1.msra.mxu0 0.0
    %2063 = vmatprep.subr.mxu0 0.0
    %2064 = vmatpush1.msra.mxu0 0.0
    %2065 = vmatprep.subr.mxu0 0.0
    %2066 = vmatpush1.msra.mxu0 0.0
    %2067 = vmatprep.mubr.f32.mxu0 0.0
    %2068 = vmatmul.mubr.f32.gmra.mrb[0].mxu0 %v2001
    %v2069 = vpop.f32.mrb[0].mxu0
    %v2070 = vadd.f32 0.0, %v2069
    %v2071 = vpop.f32.mrb[0].mxu0
    %2072 = vdwg.mxu0
    %v2073 = vadd.f32 %v1993, %v2070
    %v2074 = vmul.f32 %v2073, %v108
    %v2075 = vtanh.pop %v2074
    %v2076 = vmul.f32 %v2075, %v108
    %v2077 = vadd.f32 %v2076, %v109
    %v2078 = vmul.f32 %v2077, %v1619
    %2080 = vrot.lane.b32.xlu0 %v2077, 64
    %v2081 = vpop.permute.xlu0 %2080
    %v2083 = vmul.f32 %v2077, %v2081
    %2085 = vrot.lane.b32.xlu0 %v2083, 32
    %v2086 = vpop.permute.xlu0 %2085
    %v2088 = vadd.f32 %v2078, %v2086
    %v2089 = vtanh.pop %v2088
    %2091 = vrot.lane.b32.xlu0 %v2089, 64
    %v2092 = vpop.permute.xlu0 %2091
    %v2094 = vmul.f32 %v2077, %v2092
    %v2095 = vld [vmem:[%s2] sm:$0xff]
    %v2096 = vld [vmem:[%s2 + $0x8] sm:$0xff]
    %v2097 = vld [vmem:[%s2 + $0x10] sm:$0xff]
    %v2098 = vld [vmem:[%s2 + $0x18] sm:$0xff]
    %v2099 = vld [vmem:[%s414] sm:$0x1]
    %v2101 = vlaneseq
    %v2102 = vshrl.u32 %v2101, 7
    %v2103 = vsub.s32 0, %v2102
    %v2104 = vrot.slane %v2099, %v2103
    %2106 = vmatprep.subr.mxu0 0.0
    %2107 = vmatpush1.msra.mxu0 %v2095
    %2108 = vmatprep.subr.mxu0 0.0
    %2109 = vmatpush1.msra.mxu0 %v2096
    %2110 = vmatprep.subr.mxu0 0.0
    %2111 = vmatpush1.msra.mxu0 %v2097
    %2112 = vmatprep.subr.mxu0 0.0
    %2113 = vmatpush1.msra.mxu0 %v2098
    %2114 = vmatprep.subr.mxu0 0.0
    %2115 = vmatpush1.msra.mxu0 0.0
    %2116 = vmatprep.subr.mxu0 0.0
    %2117 = vmatpush1.msra.mxu0 0.0
    %2118 = vmatprep.subr.mxu0 0.0
    %2119 = vmatpush1.msra.mxu0 0.0
    %2120 = vmatprep.subr.mxu0 0.0
    %2121 = vmatpush1.msra.mxu0 0.0
    %2122 = vmatprep.subr.mxu0 0.0
    %2123 = vmatpush1.msra.mxu0 0.0
    %2124 = vmatprep.subr.mxu0 0.0
    %2125 = vmatpush1.msra.mxu0 0.0
    %2126 = vmatprep.subr.mxu0 0.0
    %2127 = vmatpush1.msra.mxu0 0.0
    %2128 = vmatprep.subr.mxu0 0.0
    %2129 = vmatpush1.msra.mxu0 0.0
    %2130 = vmatprep.subr.mxu0 0.0
    %2131 = vmatpush1.msra.mxu0 0.0
    %2132 = vmatprep.subr.mxu0 0.0
    %2133 = vmatpush1.msra.mxu0 0.0
    %2134 = vmatprep.subr.mxu0 0.0
    %2135 = vmatpush1.msra.mxu0 0.0
    %2136 = vmatprep.subr.mxu0 0.0
    %2137 = vmatpush1.msra.mxu0 0.0
    %2138 = vmatprep.subr.mxu0 0.0
    %2139 = vmatpush1.msra.mxu0 0.0
    %2140 = vmatprep.subr.mxu0 0.0
    %2141 = vmatpush1.msra.mxu0 0.0
    %2142 = vmatprep.subr.mxu0 0.0
    %2143 = vmatpush1.msra.mxu0 0.0
    %2144 = vmatprep.subr.mxu0 0.0
    %2145 = vmatpush1.msra.mxu0 0.0
    %2146 = vmatprep.subr.mxu0 0.0
    %2147 = vmatpush1.msra.mxu0 0.0
    %2148 = vmatprep.subr.mxu0 0.0
    %2149 = vmatpush1.msra.mxu0 0.0
    %2150 = vmatprep.subr.mxu0 0.0
    %2151 = vmatpush1.msra.mxu0 0.0
    %2152 = vmatprep.subr.mxu0 0.0
    %2153 = vmatpush1.msra.mxu0 0.0
    %2154 = vmatprep.subr.mxu0 0.0
    %2155 = vmatpush1.msra.mxu0 0.0
    %2156 = vmatprep.subr.mxu0 0.0
    %2157 = vmatpush1.msra.mxu0 0.0
    %2158 = vmatprep.subr.mxu0 0.0
    %2159 = vmatpush1.msra.mxu0 0.0
    %2160 = vmatprep.subr.mxu0 0.0
    %2161 = vmatpush1.msra.mxu0 0.0
    %2162 = vmatprep.subr.mxu0 0.0
    %2163 = vmatpush1.msra.mxu0 0.0
    %2164 = vmatprep.subr.mxu0 0.0
    %2165 = vmatpush1.msra.mxu0 0.0
    %2166 = vmatprep.subr.mxu0 0.0
    %2167 = vmatpush1.msra.mxu0 0.0
    %2168 = vmatprep.subr.mxu0 0.0
    %2169 = vmatpush1.msra.mxu0 0.0
    %2170 = vmatprep.mubr.f32.mxu0 0.0
    %2171 = vmatmul.mubr.f32.gmra.mrb[0].mxu0 %v2001
    %v2172 = vpop.f32.mrb[0].mxu0
    %v2173 = vadd.f32 %v2104, %v2172
    %v2174 = vpop.f32.mrb[0].mxu0
    %2175 = vdwg.mxu0
    %v2176 = vld [vmem:[%s492] sm:$0xff]
    %v2177 = vld [vmem:[%s492 + $0x8] sm:$0xff]
    %v2178 = vld [vmem:[%s492 + $0x10] sm:$0xff]
    %v2179 = vld [vmem:[%s492 + $0x18] sm:$0xff]
    %2181 = vrot.lane.b32.xlu0 %v1807, 32
    %v2182 = vpop.permute.xlu0 %2181
    %v2183 = vsel %vm211, %v2182, 0
    %2185 = vmatprep.subr.mxu0 0.0
    %2186 = vmatpush1.msra.mxu0 %v2176
    %2187 = vmatprep.subr.mxu0 0.0
    %2188 = vmatpush1.msra.mxu0 %v2177
    %2189 = vmatprep.subr.mxu0 0.0
    %2190 = vmatpush1.msra.mxu0 %v2178
    %2191 = vmatprep.subr.mxu0 0.0
    %2192 = vmatpush1.msra.mxu0 %v2179
    %2193 = vmatprep.subr.mxu0 0.0
    %2194 = vmatpush1.msra.mxu0 0.0
    %2195 = vmatprep.subr.mxu0 0.0
    %2196 = vmatpush1.msra.mxu0 0.0
    %2197 = vmatprep.subr.mxu0 0.0
    %2198 = vmatpush1.msra.mxu0 0.0
    %2199 = vmatprep.subr.mxu0 0.0
    %2200 = vmatpush1.msra.mxu0 0.0
    %2201 = vmatprep.subr.mxu0 0.0
    %2202 = vmatpush1.msra.mxu0 0.0
    %2203 = vmatprep.subr.mxu0 0.0
    %2204 = vmatpush1.msra.mxu0 0.0
    %2205 = vmatprep.subr.mxu0 0.0
    %2206 = vmatpush1.msra.mxu0 0.0
    %2207 = vmatprep.subr.mxu0 0.0
    %2208 = vmatpush1.msra.mxu0 0.0
    %2209 = vmatprep.subr.mxu0 0.0
    %2210 = vmatpush1.msra.mxu0 0.0
    %2211 = vmatprep.subr.mxu0 0.0
    %2212 = vmatpush1.msra.mxu0 0.0
    %2213 = vmatprep.subr.mxu0 0.0
    %2214 = vmatpush1.msra.mxu0 0.0
    %2215 = vmatprep.subr.mxu0 0.0
    %2216 = vmatpush1.msra.mxu0 0.0
    %2217 = vmatprep.subr.mxu0 0.0
    %2218 = vmatpush1.msra.mxu0 0.0
    %2219 = vmatprep.subr.mxu0 0.0
    %2220 = vmatpush1.msra.mxu0 0.0
    %2221 = vmatprep.subr.mxu0 0.0
    %2222 = vmatpush1.msra.mxu0 0.0
    %2223 = vmatprep.subr.mxu0 0.0
    %2224 = vmatpush1.msra.mxu0 0.0
    %2225 = vmatprep.subr.mxu0 0.0
    %2226 = vmatpush1.msra.mxu0 0.0
    %2227 = vmatprep.subr.mxu0 0.0
    %2228 = vmatpush1.msra.mxu0 0.0
    %2229 = vmatprep.subr.mxu0 0.0
    %2230 = vmatpush1.msra.mxu0 0.0
    %2231 = vmatprep.subr.mxu0 0.0
    %2232 = vmatpush1.msra.mxu0 0.0
    %2233 = vmatprep.subr.mxu0 0.0
    %2234 = vmatpush1.msra.mxu0 0.0
    %2235 = vmatprep.subr.mxu0 0.0
    %2236 = vmatpush1.msra.mxu0 0.0
    %2237 = vmatprep.subr.mxu0 0.0
    %2238 = vmatpush1.msra.mxu0 0.0
    %2239 = vmatprep.subr.mxu0 0.0
    %2240 = vmatpush1.msra.mxu0 0.0
    %2241 = vmatprep.subr.mxu0 0.0
    %2242 = vmatpush1.msra.mxu0 0.0
    %2243 = vmatprep.subr.mxu0 0.0
    %2244 = vmatpush1.msra.mxu0 0.0
    %2245 = vmatprep.subr.mxu0 0.0
    %2246 = vmatpush1.msra.mxu0 0.0
    %2247 = vmatprep.subr.mxu0 0.0
    %2248 = vmatpush1.msra.mxu0 0.0
    %2249 = vmatprep.mubr.f32.mxu0 0.0
    %2250 = vmatmul.mubr.f32.gmra.mrb[0].mxu0 %v2183
    %v2251 = vpop.f32.mrb[0].mxu0
    %v2252 = vadd.f32 0.0, %v2251
    %v2253 = vpop.f32.mrb[0].mxu0
    %2254 = vdwg.mxu0
    %v2255 = vadd.f32 %v2173, %v2252
    %v2256 = vmul.f32 %v2255, %v108
    %v2257 = vtanh.pop %v2256
    %v2258 = vmul.f32 %v2257, %v108
    %v2259 = vadd.f32 %v2258, %v109
    %v2260 = vmul.f32 %v2259, %v1801
    %2262 = vrot.lane.b32.xlu0 %v2259, 64
    %v2263 = vpop.permute.xlu0 %2262
    %v2265 = vmul.f32 %v2259, %v2263
    %2267 = vrot.lane.b32.xlu0 %v2265, 32
    %v2268 = vpop.permute.xlu0 %2267
    %v2270 = vadd.f32 %v2260, %v2268
    %v2271 = vtanh.pop %v2270
    %2273 = vrot.lane.b32.xlu0 %v2271, 64
    %v2274 = vpop.permute.xlu0 %2273
    %v2276 = vmul.f32 %v2259, %v2274
    %v2277 = vld [vmem:[%s862] sm:$0xff]
    %v2278 = vld [vmem:[%s862 + $0x8] sm:$0xff]
    %v2279 = vld [vmem:[%s862 + $0x10] sm:$0xff]
    %v2280 = vld [vmem:[%s862 + $0x18] sm:$0xff]
    %v2281 = vld [vmem:[%s867] sm:$0x1]
    %v2283 = vlaneseq
    %v2284 = vshrl.u32 %v2283, 7
    %v2285 = vsub.s32 0, %v2284
    %v2286 = vrot.slane %v2281, %v2285
    %2288 = vmatprep.subr.mxu0 0.0
    %2289 = vmatpush1.msra.mxu0 %v2277
    %2290 = vmatprep.subr.mxu0 0.0
    %2291 = vmatpush1.msra.mxu0 %v2278
    %2292 = vmatprep.subr.mxu0 0.0
    %2293 = vmatpush1.msra.mxu0 %v2279
    %2294 = vmatprep.subr.mxu0 0.0
    %2295 = vmatpush1.msra.mxu0 %v2280
    %2296 = vmatprep.subr.mxu0 0.0
    %2297 = vmatpush1.msra.mxu0 0.0
    %2298 = vmatprep.subr.mxu0 0.0
    %2299 = vmatpush1.msra.mxu0 0.0
    %2300 = vmatprep.subr.mxu0 0.0
    %2301 = vmatpush1.msra.mxu0 0.0
    %2302 = vmatprep.subr.mxu0 0.0
    %2303 = vmatpush1.msra.mxu0 0.0
    %2304 = vmatprep.subr.mxu0 0.0
    %2305 = vmatpush1.msra.mxu0 0.0
    %2306 = vmatprep.subr.mxu0 0.0
    %2307 = vmatpush1.msra.mxu0 0.0
    %2308 = vmatprep.subr.mxu0 0.0
    %2309 = vmatpush1.msra.mxu0 0.0
    %2310 = vmatprep.subr.mxu0 0.0
    %2311 = vmatpush1.msra.mxu0 0.0
    %2312 = vmatprep.subr.mxu0 0.0
    %2313 = vmatpush1.msra.mxu0 0.0
    %2314 = vmatprep.subr.mxu0 0.0
    %2315 = vmatpush1.msra.mxu0 0.0
    %2316 = vmatprep.subr.mxu0 0.0
    %2317 = vmatpush1.msra.mxu0 0.0
    %2318 = vmatprep.subr.mxu0 0.0
    %2319 = vmatpush1.msra.mxu0 0.0
    %2320 = vmatprep.subr.mxu0 0.0
    %2321 = vmatpush1.msra.mxu0 0.0
    %2322 = vmatprep.subr.mxu0 0.0
    %2323 = vmatpush1.msra.mxu0 0.0
    %2324 = vmatprep.subr.mxu0 0.0
    %2325 = vmatpush1.msra.mxu0 0.0
    %2326 = vmatprep.subr.mxu0 0.0
    %2327 = vmatpush1.msra.mxu0 0.0
    %2328 = vmatprep.subr.mxu0 0.0
    %2329 = vmatpush1.msra.mxu0 0.0
    %2330 = vmatprep.subr.mxu0 0.0
    %2331 = vmatpush1.msra.mxu0 0.0
    %2332 = vmatprep.subr.mxu0 0.0
    %2333 = vmatpush1.msra.mxu0 0.0
    %2334 = vmatprep.subr.mxu0 0.0
    %2335 = vmatpush1.msra.mxu0 0.0
    %2336 = vmatprep.subr.mxu0 0.0
    %2337 = vmatpush1.msra.mxu0 0.0
    %2338 = vmatprep.subr.mxu0 0.0
    %2339 = vmatpush1.msra.mxu0 0.0
    %2340 = vmatprep.subr.mxu0 0.0
    %2341 = vmatpush1.msra.mxu0 0.0
    %2342 = vmatprep.subr.mxu0 0.0
    %2343 = vmatpush1.msra.mxu0 0.0
    %2344 = vmatprep.subr.mxu0 0.0
    %2345 = vmatpush1.msra.mxu0 0.0
    %2346 = vmatprep.subr.mxu0 0.0
    %2347 = vmatpush1.msra.mxu0 0.0
    %2348 = vmatprep.subr.mxu0 0.0
    %2349 = vmatpush1.msra.mxu0 0.0
    %2350 = vmatprep.subr.mxu0 0.0
    %2351 = vmatpush1.msra.mxu0 0.0
    %2352 = vmatprep.mubr.f32.mxu0 0.0
    %2353 = vmatmul.mubr.f32.gmra.mrb[0].mxu0 %v2183
    %v2354 = vpop.f32.mrb[0].mxu0
    %v2355 = vadd.f32 %v2286, %v2354
    %v2356 = vpop.f32.mrb[0].mxu0
    %2357 = vdwg.mxu0
    %v2358 = vld [vmem:[%s945] sm:$0xff]
    %v2359 = vld [vmem:[%s945 + $0x8] sm:$0xff]
    %v2360 = vld [vmem:[%s945 + $0x10] sm:$0xff]
    %v2361 = vld [vmem:[%s945 + $0x18] sm:$0xff]
    %v2362 = vsel %vm211, %v1989, 0
    %2364 = vmatprep.subr.mxu0 0.0
    %2365 = vmatpush1.msra.mxu0 %v2358
    %2366 = vmatprep.subr.mxu0 0.0
    %2367 = vmatpush1.msra.mxu0 %v2359
    %2368 = vmatprep.subr.mxu0 0.0
    %2369 = vmatpush1.msra.mxu0 %v2360
    %2370 = vmatprep.subr.mxu0 0.0
    %2371 = vmatpush1.msra.mxu0 %v2361
    %2372 = vmatprep.subr.mxu0 0.0
    %2373 = vmatpush1.msra.mxu0 0.0
    %2374 = vmatprep.subr.mxu0 0.0
    %2375 = vmatpush1.msra.mxu0 0.0
    %2376 = vmatprep.subr.mxu0 0.0
    %2377 = vmatpush1.msra.mxu0 0.0
    %2378 = vmatprep.subr.mxu0 0.0
    %2379 = vmatpush1.msra.mxu0 0.0
    %2380 = vmatprep.subr.mxu0 0.0
    %2381 = vmatpush1.msra.mxu0 0.0
    %2382 = vmatprep.subr.mxu0 0.0
    %2383 = vmatpush1.msra.mxu0 0.0
    %2384 = vmatprep.subr.mxu0 0.0
    %2385 = vmatpush1.msra.mxu0 0.0
    %2386 = vmatprep.subr.mxu0 0.0
    %2387 = vmatpush1.msra.mxu0 0.0
    %2388 = vmatprep.subr.mxu0 0.0
    %2389 = vmatpush1.msra.mxu0 0.0
    %2390 = vmatprep.subr.mxu0 0.0
    %2391 = vmatpush1.msra.mxu0 0.0
    %2392 = vmatprep.subr.mxu0 0.0
    %2393 = vmatpush1.msra.mxu0 0.0
    %2394 = vmatprep.subr.mxu0 0.0
    %2395 = vmatpush1.msra.mxu0 0.0
    %2396 = vmatprep.subr.mxu0 0.0
    %2397 = vmatpush1.msra.mxu0 0.0
    %2398 = vmatprep.subr.mxu0 0.0
    %2399 = vmatpush1.msra.mxu0 0.0
    %2400 = vmatprep.subr.mxu0 0.0
    %2401 = vmatpush1.msra.mxu0 0.0
    %2402 = vmatprep.subr.mxu0 0.0
    %2403 = vmatpush1.msra.mxu0 0.0
    %2404 = vmatprep.subr.mxu0 0.0
    %2405 = vmatpush1.msra.mxu0 0.0
    %2406 = vmatprep.subr.mxu0 0.0
    %2407 = vmatpush1.msra.mxu0 0.0
    %2408 = vmatprep.subr.mxu0 0.0
    %2409 = vmatpush1.msra.mxu0 0.0
    %2410 = vmatprep.subr.mxu0 0.0
    %2411 = vmatpush1.msra.mxu0 0.0
    %2412 = vmatprep.subr.mxu0 0.0
    %2413 = vmatpush1.msra.mxu0 0.0
    %2414 = vmatprep.subr.mxu0 0.0
    %2415 = vmatpush1.msra.mxu0 0.0
    %2416 = vmatprep.subr.mxu0 0.0
    %2417 = vmatpush1.msra.mxu0 0.0
    %2418 = vmatprep.subr.mxu0 0.0
    %2419 = vmatpush1.msra.mxu0 0.0
    %2420 = vmatprep.subr.mxu0 0.0
    %2421 = vmatpush1.msra.mxu0 0.0
    %2422 = vmatprep.subr.mxu0 0.0
    %2423 = vmatpush1.msra.mxu0 0.0
    %2424 = vmatprep.subr.mxu0 0.0
    %2425 = vmatpush1.msra.mxu0 0.0
    %2426 = vmatprep.subr.mxu0 0.0
    %2427 = vmatpush1.msra.mxu0 0.0
    %2428 = vmatprep.mubr.f32.mxu0 0.0
    %2429 = vmatmul.mubr.f32.gmra.mrb[0].mxu0 %v2362
    %v2430 = vpop.f32.mrb[0].mxu0
    %v2431 = vadd.f32 0.0, %v2430
    %v2432 = vpop.f32.mrb[0].mxu0
    %2433 = vdwg.mxu0
    %v2434 = vadd.f32 %v2355, %v2431
    %v2435 = vmul.f32 %v2434, %v108
    %v2436 = vtanh.pop %v2435
    %v2437 = vmul.f32 %v2436, %v108
    %v2438 = vadd.f32 %v2437, %v109
    %v2439 = vmul.f32 %v2438, %v1980
    %2441 = vrot.lane.b32.xlu0 %v2438, 64
    %v2442 = vpop.permute.xlu0 %2441
    %v2444 = vmul.f32 %v2438, %v2442
    %2446 = vrot.lane.b32.xlu0 %v2444, 32
    %v2447 = vpop.permute.xlu0 %2446
    %v2449 = vadd.f32 %v2439, %v2447
    %v2450 = vtanh.pop %v2449
    %2452 = vrot.lane.b32.xlu0 %v2450, 64
    %v2453 = vpop.permute.xlu0 %2452
    %v2455 = vmul.f32 %v2438, %v2453
    %2457 = vrot.lane.b32.xlu0 %v2455, 32
    %v2458 = vpop.permute.xlu0 %2457
    %2460 = vst.msk [vmem:[#allocation3 + $0x18] sm:$0xff] %vm211, %v2458
    %s2461 = scalar_lea.vmem [#allocation2], 48
    %v2462 = vld [vmem:[%s2461] sm:$0xff]
    %v2463 = vld [vmem:[#allocation7] sm:$0xff]
    %v2464 = vld [vmem:[#allocation7 + $0x8] sm:$0xff]
    %v2465 = vld [vmem:[#allocation7 + $0x10] sm:$0xff]
    %v2466 = vld [vmem:[#allocation7 + $0x18] sm:$0xff]
    %2468 = vrot.lane.b32.xlu0 %v2094, 32
    %v2469 = vpop.permute.xlu0 %2468
    %v2470 = vsel %vm211, %v2469, 0
    %2472 = vmatprep.subr.mxu0 0.0
    %2473 = vmatpush1.msra.mxu0 %v2463
    %2474 = vmatprep.subr.mxu0 0.0
    %2475 = vmatpush1.msra.mxu0 %v2464
    %2476 = vmatprep.subr.mxu0 0.0
    %2477 = vmatpush1.msra.mxu0 %v2465
    %2478 = vmatprep.subr.mxu0 0.0
    %2479 = vmatpush1.msra.mxu0 %v2466
    %2480 = vmatprep.subr.mxu0 0.0
    %2481 = vmatpush1.msra.mxu0 0.0
    %2482 = vmatprep.subr.mxu0 0.0
    %2483 = vmatpush1.msra.mxu0 0.0
    %2484 = vmatprep.subr.mxu0 0.0
    %2485 = vmatpush1.msra.mxu0 0.0
    %2486 = vmatprep.subr.mxu0 0.0
    %2487 = vmatpush1.msra.mxu0 0.0
    %2488 = vmatprep.subr.mxu0 0.0
    %2489 = vmatpush1.msra.mxu0 0.0
    %2490 = vmatprep.subr.mxu0 0.0
    %2491 = vmatpush1.msra.mxu0 0.0
    %2492 = vmatprep.subr.mxu0 0.0
    %2493 = vmatpush1.msra.mxu0 0.0
    %2494 = vmatprep.subr.mxu0 0.0
    %2495 = vmatpush1.msra.mxu0 0.0
    %2496 = vmatprep.subr.mxu0 0.0
    %2497 = vmatpush1.msra.mxu0 0.0
    %2498 = vmatprep.subr.mxu0 0.0
    %2499 = vmatpush1.msra.mxu0 0.0
    %2500 = vmatprep.subr.mxu0 0.0
    %2501 = vmatpush1.msra.mxu0 0.0
    %2502 = vmatprep.subr.mxu0 0.0
    %2503 = vmatpush1.msra.mxu0 0.0
    %2504 = vmatprep.subr.mxu0 0.0
    %2505 = vmatpush1.msra.mxu0 0.0
    %2506 = vmatprep.subr.mxu0 0.0
    %2507 = vmatpush1.msra.mxu0 0.0
    %2508 = vmatprep.subr.mxu0 0.0
    %2509 = vmatpush1.msra.mxu0 0.0
    %2510 = vmatprep.subr.mxu0 0.0
    %2511 = vmatpush1.msra.mxu0 0.0
    %2512 = vmatprep.subr.mxu0 0.0
    %2513 = vmatpush1.msra.mxu0 0.0
    %2514 = vmatprep.subr.mxu0 0.0
    %2515 = vmatpush1.msra.mxu0 0.0
    %2516 = vmatprep.subr.mxu0 0.0
    %2517 = vmatpush1.msra.mxu0 0.0
    %2518 = vmatprep.subr.mxu0 0.0
    %2519 = vmatpush1.msra.mxu0 0.0
    %2520 = vmatprep.subr.mxu0 0.0
    %2521 = vmatpush1.msra.mxu0 0.0
    %2522 = vmatprep.subr.mxu0 0.0
    %2523 = vmatpush1.msra.mxu0 0.0
    %2524 = vmatprep.subr.mxu0 0.0
    %2525 = vmatpush1.msra.mxu0 0.0
    %2526 = vmatprep.subr.mxu0 0.0
    %2527 = vmatpush1.msra.mxu0 0.0
    %2528 = vmatprep.subr.mxu0 0.0
    %2529 = vmatpush1.msra.mxu0 0.0
    %2530 = vmatprep.subr.mxu0 0.0
    %2531 = vmatpush1.msra.mxu0 0.0
    %2532 = vmatprep.subr.mxu0 0.0
    %2533 = vmatpush1.msra.mxu0 0.0
    %2534 = vmatprep.subr.mxu0 0.0
    %2535 = vmatpush1.msra.mxu0 0.0
    %2536 = vmatprep.mubr.f32.mxu0 0.0
    %2537 = vmatmul.mubr.f32.gmra.mrb[0].mxu0 %v2470
    %v2538 = vpop.f32.mrb[0].mxu0
    %v2539 = vadd.f32 0.0, %v2538
    %v2540 = vpop.f32.mrb[0].mxu0
    %2541 = vdwg.mxu0
    %v2542 = vadd.f32 %v2462, %v2539
    %v2543 = vmul.f32 %v2542, %v108
    %v2544 = vtanh.pop %v2543
    %v2545 = vmul.f32 %v2544, %v108
    %v2546 = vadd.f32 %v2545, %v109
    %v2547 = vmul.f32 %v2546, %v2088
    %2549 = vrot.lane.b32.xlu0 %v2546, 64
    %v2550 = vpop.permute.xlu0 %2549
    %v2552 = vmul.f32 %v2546, %v2550
    %2554 = vrot.lane.b32.xlu0 %v2552, 32
    %v2555 = vpop.permute.xlu0 %2554
    %v2557 = vadd.f32 %v2547, %v2555
    %v2558 = vtanh.pop %v2557
    %2560 = vrot.lane.b32.xlu0 %v2558, 64
    %v2561 = vpop.permute.xlu0 %2560
    %v2563 = vmul.f32 %v2546, %v2561
    %v2564 = vld [vmem:[%s2] sm:$0xff]
    %v2565 = vld [vmem:[%s2 + $0x8] sm:$0xff]
    %v2566 = vld [vmem:[%s2 + $0x10] sm:$0xff]
    %v2567 = vld [vmem:[%s2 + $0x18] sm:$0xff]
    %v2568 = vld [vmem:[%s414] sm:$0x1]
    %v2570 = vlaneseq
    %v2571 = vshrl.u32 %v2570, 7
    %v2572 = vsub.s32 0, %v2571
    %v2573 = vrot.slane %v2568, %v2572
    %2575 = vmatprep.subr.mxu0 0.0
    %2576 = vmatpush1.msra.mxu0 %v2564
    %2577 = vmatprep.subr.mxu0 0.0
    %2578 = vmatpush1.msra.mxu0 %v2565
    %2579 = vmatprep.subr.mxu0 0.0
    %2580 = vmatpush1.msra.mxu0 %v2566
    %2581 = vmatprep.subr.mxu0 0.0
    %2582 = vmatpush1.msra.mxu0 %v2567
    %2583 = vmatprep.subr.mxu0 0.0
    %2584 = vmatpush1.msra.mxu0 0.0
    %2585 = vmatprep.subr.mxu0 0.0
    %2586 = vmatpush1.msra.mxu0 0.0
    %2587 = vmatprep.subr.mxu0 0.0
    %2588 = vmatpush1.msra.mxu0 0.0
    %2589 = vmatprep.subr.mxu0 0.0
    %2590 = vmatpush1.msra.mxu0 0.0
    %2591 = vmatprep.subr.mxu0 0.0
    %2592 = vmatpush1.msra.mxu0 0.0
    %2593 = vmatprep.subr.mxu0 0.0
    %2594 = vmatpush1.msra.mxu0 0.0
    %2595 = vmatprep.subr.mxu0 0.0
    %2596 = vmatpush1.msra.mxu0 0.0
    %2597 = vmatprep.subr.mxu0 0.0
    %2598 = vmatpush1.msra.mxu0 0.0
    %2599 = vmatprep.subr.mxu0 0.0
    %2600 = vmatpush1.msra.mxu0 0.0
    %2601 = vmatprep.subr.mxu0 0.0
    %2602 = vmatpush1.msra.mxu0 0.0
    %2603 = vmatprep.subr.mxu0 0.0
    %2604 = vmatpush1.msra.mxu0 0.0
    %2605 = vmatprep.subr.mxu0 0.0
    %2606 = vmatpush1.msra.mxu0 0.0
    %2607 = vmatprep.subr.mxu0 0.0
    %2608 = vmatpush1.msra.mxu0 0.0
    %2609 = vmatprep.subr.mxu0 0.0
    %2610 = vmatpush1.msra.mxu0 0.0
    %2611 = vmatprep.subr.mxu0 0.0
    %2612 = vmatpush1.msra.mxu0 0.0
    %2613 = vmatprep.subr.mxu0 0.0
    %2614 = vmatpush1.msra.mxu0 0.0
    %2615 = vmatprep.subr.mxu0 0.0
    %2616 = vmatpush1.msra.mxu0 0.0
    %2617 = vmatprep.subr.mxu0 0.0
    %2618 = vmatpush1.msra.mxu0 0.0
    %2619 = vmatprep.subr.mxu0 0.0
    %2620 = vmatpush1.msra.mxu0 0.0
    %2621 = vmatprep.subr.mxu0 0.0
    %2622 = vmatpush1.msra.mxu0 0.0
    %2623 = vmatprep.subr.mxu0 0.0
    %2624 = vmatpush1.msra.mxu0 0.0
    %2625 = vmatprep.subr.mxu0 0.0
    %2626 = vmatpush1.msra.mxu0 0.0
    %2627 = vmatprep.subr.mxu0 0.0
    %2628 = vmatpush1.msra.mxu0 0.0
    %2629 = vmatprep.subr.mxu0 0.0
    %2630 = vmatpush1.msra.mxu0 0.0
    %2631 = vmatprep.subr.mxu0 0.0
    %2632 = vmatpush1.msra.mxu0 0.0
    %2633 = vmatprep.subr.mxu0 0.0
    %2634 = vmatpush1.msra.mxu0 0.0
    %2635 = vmatprep.subr.mxu0 0.0
    %2636 = vmatpush1.msra.mxu0 0.0
    %2637 = vmatprep.subr.mxu0 0.0
    %2638 = vmatpush1.msra.mxu0 0.0
    %2639 = vmatprep.mubr.f32.mxu0 0.0
    %2640 = vmatmul.mubr.f32.gmra.mrb[0].mxu0 %v2470
    %v2641 = vpop.f32.mrb[0].mxu0
    %v2642 = vadd.f32 %v2573, %v2641
    %v2643 = vpop.f32.mrb[0].mxu0
    %2644 = vdwg.mxu0
    %v2645 = vld [vmem:[%s492] sm:$0xff]
    %v2646 = vld [vmem:[%s492 + $0x8] sm:$0xff]
    %v2647 = vld [vmem:[%s492 + $0x10] sm:$0xff]
    %v2648 = vld [vmem:[%s492 + $0x18] sm:$0xff]
    %2650 = vrot.lane.b32.xlu0 %v2276, 32
    %v2651 = vpop.permute.xlu0 %2650
    %v2652 = vsel %vm211, %v2651, 0
    %2654 = vmatprep.subr.mxu0 0.0
    %2655 = vmatpush1.msra.mxu0 %v2645
    %2656 = vmatprep.subr.mxu0 0.0
    %2657 = vmatpush1.msra.mxu0 %v2646
    %2658 = vmatprep.subr.mxu0 0.0
    %2659 = vmatpush1.msra.mxu0 %v2647
    %2660 = vmatprep.subr.mxu0 0.0
    %2661 = vmatpush1.msra.mxu0 %v2648
    %2662 = vmatprep.subr.mxu0 0.0
    %2663 = vmatpush1.msra.mxu0 0.0
    %2664 = vmatprep.subr.mxu0 0.0
    %2665 = vmatpush1.msra.mxu0 0.0
    %2666 = vmatprep.subr.mxu0 0.0
    %2667 = vmatpush1.msra.mxu0 0.0
    %2668 = vmatprep.subr.mxu0 0.0
    %2669 = vmatpush1.msra.mxu0 0.0
    %2670 = vmatprep.subr.mxu0 0.0
    %2671 = vmatpush1.msra.mxu0 0.0
    %2672 = vmatprep.subr.mxu0 0.0
    %2673 = vmatpush1.msra.mxu0 0.0
    %2674 = vmatprep.subr.mxu0 0.0
    %2675 = vmatpush1.msra.mxu0 0.0
    %2676 = vmatprep.subr.mxu0 0.0
    %2677 = vmatpush1.msra.mxu0 0.0
    %2678 = vmatprep.subr.mxu0 0.0
    %2679 = vmatpush1.msra.mxu0 0.0
    %2680 = vmatprep.subr.mxu0 0.0
    %2681 = vmatpush1.msra.mxu0 0.0
    %2682 = vmatprep.subr.mxu0 0.0
    %2683 = vmatpush1.msra.mxu0 0.0
    %2684 = vmatprep.subr.mxu0 0.0
    %2685 = vmatpush1.msra.mxu0 0.0
    %2686 = vmatprep.subr.mxu0 0.0
    %2687 = vmatpush1.msra.mxu0 0.0
    %2688 = vmatprep.subr.mxu0 0.0
    %2689 = vmatpush1.msra.mxu0 0.0
    %2690 = vmatprep.subr.mxu0 0.0
    %2691 = vmatpush1.msra.mxu0 0.0
    %2692 = vmatprep.subr.mxu0 0.0
    %2693 = vmatpush1.msra.mxu0 0.0
    %2694 = vmatprep.subr.mxu0 0.0
    %2695 = vmatpush1.msra.mxu0 0.0
    %2696 = vmatprep.subr.mxu0 0.0
    %2697 = vmatpush1.msra.mxu0 0.0
    %2698 = vmatprep.subr.mxu0 0.0
    %2699 = vmatpush1.msra.mxu0 0.0
    %2700 = vmatprep.subr.mxu0 0.0
    %2701 = vmatpush1.msra.mxu0 0.0
    %2702 = vmatprep.subr.mxu0 0.0
    %2703 = vmatpush1.msra.mxu0 0.0
    %2704 = vmatprep.subr.mxu0 0.0
    %2705 = vmatpush1.msra.mxu0 0.0
    %2706 = vmatprep.subr.mxu0 0.0
    %2707 = vmatpush1.msra.mxu0 0.0
    %2708 = vmatprep.subr.mxu0 0.0
    %2709 = vmatpush1.msra.mxu0 0.0
    %2710 = vmatprep.subr.mxu0 0.0
    %2711 = vmatpush1.msra.mxu0 0.0
    %2712 = vmatprep.subr.mxu0 0.0
    %2713 = vmatpush1.msra.mxu0 0.0
    %2714 = vmatprep.subr.mxu0 0.0
    %2715 = vmatpush1.msra.mxu0 0.0
    %2716 = vmatprep.subr.mxu0 0.0
    %2717 = vmatpush1.msra.mxu0 0.0
    %2718 = vmatprep.mubr.f32.mxu0 0.0
    %2719 = vmatmul.mubr.f32.gmra.mrb[0].mxu0 %v2652
    %v2720 = vpop.f32.mrb[0].mxu0
    %v2721 = vadd.f32 0.0, %v2720
    %v2722 = vpop.f32.mrb[0].mxu0
    %2723 = vdwg.mxu0
    %v2724 = vadd.f32 %v2642, %v2721
    %v2725 = vmul.f32 %v2724, %v108
    %v2726 = vtanh.pop %v2725
    %v2727 = vmul.f32 %v2726, %v108
    %v2728 = vadd.f32 %v2727, %v109
    %v2729 = vmul.f32 %v2728, %v2270
    %2731 = vrot.lane.b32.xlu0 %v2728, 64
    %v2732 = vpop.permute.xlu0 %2731
    %v2734 = vmul.f32 %v2728, %v2732
    %2736 = vrot.lane.b32.xlu0 %v2734, 32
    %v2737 = vpop.permute.xlu0 %2736
    %v2739 = vadd.f32 %v2729, %v2737
    %v2740 = vtanh.pop %v2739
    %2742 = vrot.lane.b32.xlu0 %v2740, 64
    %v2743 = vpop.permute.xlu0 %2742
    %v2745 = vmul.f32 %v2728, %v2743
    %v2746 = vld [vmem:[%s862] sm:$0xff]
    %v2747 = vld [vmem:[%s862 + $0x8] sm:$0xff]
    %v2748 = vld [vmem:[%s862 + $0x10] sm:$0xff]
    %v2749 = vld [vmem:[%s862 + $0x18] sm:$0xff]
    %v2750 = vld [vmem:[%s867] sm:$0x1]
    %v2752 = vlaneseq
    %v2753 = vshrl.u32 %v2752, 7
    %v2754 = vsub.s32 0, %v2753
    %v2755 = vrot.slane %v2750, %v2754
    %2757 = vmatprep.subr.mxu0 0.0
    %2758 = vmatpush1.msra.mxu0 %v2746
    %2759 = vmatprep.subr.mxu0 0.0
    %2760 = vmatpush1.msra.mxu0 %v2747
    %2761 = vmatprep.subr.mxu0 0.0
    %2762 = vmatpush1.msra.mxu0 %v2748
    %2763 = vmatprep.subr.mxu0 0.0
    %2764 = vmatpush1.msra.mxu0 %v2749
    %2765 = vmatprep.subr.mxu0 0.0
    %2766 = vmatpush1.msra.mxu0 0.0
    %2767 = vmatprep.subr.mxu0 0.0
    %2768 = vmatpush1.msra.mxu0 0.0
    %2769 = vmatprep.subr.mxu0 0.0
    %2770 = vmatpush1.msra.mxu0 0.0
    %2771 = vmatprep.subr.mxu0 0.0
    %2772 = vmatpush1.msra.mxu0 0.0
    %2773 = vmatprep.subr.mxu0 0.0
    %2774 = vmatpush1.msra.mxu0 0.0
    %2775 = vmatprep.subr.mxu0 0.0
    %2776 = vmatpush1.msra.mxu0 0.0
    %2777 = vmatprep.subr.mxu0 0.0
    %2778 = vmatpush1.msra.mxu0 0.0
    %2779 = vmatprep.subr.mxu0 0.0
    %2780 = vmatpush1.msra.mxu0 0.0
    %2781 = vmatprep.subr.mxu0 0.0
    %2782 = vmatpush1.msra.mxu0 0.0
    %2783 = vmatprep.subr.mxu0 0.0
    %2784 = vmatpush1.msra.mxu0 0.0
    %2785 = vmatprep.subr.mxu0 0.0
    %2786 = vmatpush1.msra.mxu0 0.0
    %2787 = vmatprep.subr.mxu0 0.0
    %2788 = vmatpush1.msra.mxu0 0.0
    %2789 = vmatprep.subr.mxu0 0.0
    %2790 = vmatpush1.msra.mxu0 0.0
    %2791 = vmatprep.subr.mxu0 0.0
    %2792 = vmatpush1.msra.mxu0 0.0
    %2793 = vmatprep.subr.mxu0 0.0
    %2794 = vmatpush1.msra.mxu0 0.0
    %2795 = vmatprep.subr.mxu0 0.0
    %2796 = vmatpush1.msra.mxu0 0.0
    %2797 = vmatprep.subr.mxu0 0.0
    %2798 = vmatpush1.msra.mxu0 0.0
    %2799 = vmatprep.subr.mxu0 0.0
    %2800 = vmatpush1.msra.mxu0 0.0
    %2801 = vmatprep.subr.mxu0 0.0
    %2802 = vmatpush1.msra.mxu0 0.0
    %2803 = vmatprep.subr.mxu0 0.0
    %2804 = vmatpush1.msra.mxu0 0.0
    %2805 = vmatprep.subr.mxu0 0.0
    %2806 = vmatpush1.msra.mxu0 0.0
    %2807 = vmatprep.subr.mxu0 0.0
    %2808 = vmatpush1.msra.mxu0 0.0
    %2809 = vmatprep.subr.mxu0 0.0
    %2810 = vmatpush1.msra.mxu0 0.0
    %2811 = vmatprep.subr.mxu0 0.0
    %2812 = vmatpush1.msra.mxu0 0.0
    %2813 = vmatprep.subr.mxu0 0.0
    %2814 = vmatpush1.msra.mxu0 0.0
    %2815 = vmatprep.subr.mxu0 0.0
    %2816 = vmatpush1.msra.mxu0 0.0
    %2817 = vmatprep.subr.mxu0 0.0
    %2818 = vmatpush1.msra.mxu0 0.0
    %2819 = vmatprep.subr.mxu0 0.0
    %2820 = vmatpush1.msra.mxu0 0.0
    %2821 = vmatprep.mubr.f32.mxu0 0.0
    %2822 = vmatmul.mubr.f32.gmra.mrb[0].mxu0 %v2652
    %v2823 = vpop.f32.mrb[0].mxu0
    %v2824 = vadd.f32 %v2755, %v2823
    %v2825 = vpop.f32.mrb[0].mxu0
    %2826 = vdwg.mxu0
    %v2827 = vld [vmem:[%s945] sm:$0xff]
    %v2828 = vld [vmem:[%s945 + $0x8] sm:$0xff]
    %v2829 = vld [vmem:[%s945 + $0x10] sm:$0xff]
    %v2830 = vld [vmem:[%s945 + $0x18] sm:$0xff]
    %v2831 = vsel %vm211, %v2458, 0
    %2833 = vmatprep.subr.mxu0 0.0
    %2834 = vmatpush1.msra.mxu0 %v2827
    %2835 = vmatprep.subr.mxu0 0.0
    %2836 = vmatpush1.msra.mxu0 %v2828
    %2837 = vmatprep.subr.mxu0 0.0
    %2838 = vmatpush1.msra.mxu0 %v2829
    %2839 = vmatprep.subr.mxu0 0.0
    %2840 = vmatpush1.msra.mxu0 %v2830
    %2841 = vmatprep.subr.mxu0 0.0
    %2842 = vmatpush1.msra.mxu0 0.0
    %2843 = vmatprep.subr.mxu0 0.0
    %2844 = vmatpush1.msra.mxu0 0.0
    %2845 = vmatprep.subr.mxu0 0.0
    %2846 = vmatpush1.msra.mxu0 0.0
    %2847 = vmatprep.subr.mxu0 0.0
    %2848 = vmatpush1.msra.mxu0 0.0
    %2849 = vmatprep.subr.mxu0 0.0
    %2850 = vmatpush1.msra.mxu0 0.0
    %2851 = vmatprep.subr.mxu0 0.0
    %2852 = vmatpush1.msra.mxu0 0.0
    %2853 = vmatprep.subr.mxu0 0.0
    %2854 = vmatpush1.msra.mxu0 0.0
    %2855 = vmatprep.subr.mxu0 0.0
    %2856 = vmatpush1.msra.mxu0 0.0
    %2857 = vmatprep.subr.mxu0 0.0
    %2858 = vmatpush1.msra.mxu0 0.0
    %2859 = vmatprep.subr.mxu0 0.0
    %2860 = vmatpush1.msra.mxu0 0.0
    %2861 = vmatprep.subr.mxu0 0.0
    %2862 = vmatpush1.msra.mxu0 0.0
    %2863 = vmatprep.subr.mxu0 0.0
    %2864 = vmatpush1.msra.mxu0 0.0
    %2865 = vmatprep.subr.mxu0 0.0
    %2866 = vmatpush1.msra.mxu0 0.0
    %2867 = vmatprep.subr.mxu0 0.0
    %2868 = vmatpush1.msra.mxu0 0.0
    %2869 = vmatprep.subr.mxu0 0.0
    %2870 = vmatpush1.msra.mxu0 0.0
    %2871 = vmatprep.subr.mxu0 0.0
    %2872 = vmatpush1.msra.mxu0 0.0
    %2873 = vmatprep.subr.mxu0 0.0
    %2874 = vmatpush1.msra.mxu0 0.0
    %2875 = vmatprep.subr.mxu0 0.0
    %2876 = vmatpush1.msra.mxu0 0.0
    %2877 = vmatprep.subr.mxu0 0.0
    %2878 = vmatpush1.msra.mxu0 0.0
    %2879 = vmatprep.subr.mxu0 0.0
    %2880 = vmatpush1.msra.mxu0 0.0
    %2881 = vmatprep.subr.mxu0 0.0
    %2882 = vmatpush1.msra.mxu0 0.0
    %2883 = vmatprep.subr.mxu0 0.0
    %2884 = vmatpush1.msra.mxu0 0.0
    %2885 = vmatprep.subr.mxu0 0.0
    %2886 = vmatpush1.msra.mxu0 0.0
    %2887 = vmatprep.subr.mxu0 0.0
    %2888 = vmatpush1.msra.mxu0 0.0
    %2889 = vmatprep.subr.mxu0 0.0
    %2890 = vmatpush1.msra.mxu0 0.0
    %2891 = vmatprep.subr.mxu0 0.0
    %2892 = vmatpush1.msra.mxu0 0.0
    %2893 = vmatprep.subr.mxu0 0.0
    %2894 = vmatpush1.msra.mxu0 0.0
    %2895 = vmatprep.subr.mxu0 0.0
    %2896 = vmatpush1.msra.mxu0 0.0
    %2897 = vmatprep.mubr.f32.mxu0 0.0
    %2898 = vmatmul.mubr.f32.gmra.mrb[0].mxu0 %v2831
    %v2899 = vpop.f32.mrb[0].mxu0
    %v2900 = vadd.f32 0.0, %v2899
    %v2901 = vpop.f32.mrb[0].mxu0
    %2902 = vdwg.mxu0
    %v2903 = vadd.f32 %v2824, %v2900
    %v2904 = vmul.f32 %v2903, %v108
    %v2905 = vtanh.pop %v2904
    %v2906 = vmul.f32 %v2905, %v108
    %v2907 = vadd.f32 %v2906, %v109
    %v2908 = vmul.f32 %v2907, %v2449
    %2910 = vrot.lane.b32.xlu0 %v2907, 64
    %v2911 = vpop.permute.xlu0 %2910
    %v2913 = vmul.f32 %v2907, %v2911
    %2915 = vrot.lane.b32.xlu0 %v2913, 32
    %v2916 = vpop.permute.xlu0 %2915
    %v2918 = vadd.f32 %v2908, %v2916
    %v2919 = vtanh.pop %v2918
    %2921 = vrot.lane.b32.xlu0 %v2919, 64
    %v2922 = vpop.permute.xlu0 %2921
    %v2924 = vmul.f32 %v2907, %v2922
    %2926 = vrot.lane.b32.xlu0 %v2924, 32
    %v2927 = vpop.permute.xlu0 %2926
    %2929 = vst.msk [vmem:[#allocation3 + $0x20] sm:$0xff] %vm211, %v2927
    %s2930 = scalar_lea.vmem [#allocation2], 56
    %v2931 = vld [vmem:[%s2930] sm:$0xff]
    %v2932 = vld [vmem:[#allocation7] sm:$0xff]
    %v2933 = vld [vmem:[#allocation7 + $0x8] sm:$0xff]
    %v2934 = vld [vmem:[#allocation7 + $0x10] sm:$0xff]
    %v2935 = vld [vmem:[#allocation7 + $0x18] sm:$0xff]
    %2937 = vrot.lane.b32.xlu0 %v2563, 32
    %v2938 = vpop.permute.xlu0 %2937
    %v2939 = vsel %vm211, %v2938, 0
    %2941 = vmatprep.subr.mxu0 0.0
    %2942 = vmatpush1.msra.mxu0 %v2932
    %2943 = vmatprep.subr.mxu0 0.0
    %2944 = vmatpush1.msra.mxu0 %v2933
    %2945 = vmatprep.subr.mxu0 0.0
    %2946 = vmatpush1.msra.mxu0 %v2934
    %2947 = vmatprep.subr.mxu0 0.0
    %2948 = vmatpush1.msra.mxu0 %v2935
    %2949 = vmatprep.subr.mxu0 0.0
    %2950 = vmatpush1.msra.mxu0 0.0
    %2951 = vmatprep.subr.mxu0 0.0
    %2952 = vmatpush1.msra.mxu0 0.0
    %2953 = vmatprep.subr.mxu0 0.0
    %2954 = vmatpush1.msra.mxu0 0.0
    %2955 = vmatprep.subr.mxu0 0.0
    %2956 = vmatpush1.msra.mxu0 0.0
    %2957 = vmatprep.subr.mxu0 0.0
    %2958 = vmatpush1.msra.mxu0 0.0
    %2959 = vmatprep.subr.mxu0 0.0
    %2960 = vmatpush1.msra.mxu0 0.0
    %2961 = vmatprep.subr.mxu0 0.0
    %2962 = vmatpush1.msra.mxu0 0.0
    %2963 = vmatprep.subr.mxu0 0.0
    %2964 = vmatpush1.msra.mxu0 0.0
    %2965 = vmatprep.subr.mxu0 0.0
    %2966 = vmatpush1.msra.mxu0 0.0
    %2967 = vmatprep.subr.mxu0 0.0
    %2968 = vmatpush1.msra.mxu0 0.0
    %2969 = vmatprep.subr.mxu0 0.0
    %2970 = vmatpush1.msra.mxu0 0.0
    %2971 = vmatprep.subr.mxu0 0.0
    %2972 = vmatpush1.msra.mxu0 0.0
    %2973 = vmatprep.subr.mxu0 0.0
    %2974 = vmatpush1.msra.mxu0 0.0
    %2975 = vmatprep.subr.mxu0 0.0
    %2976 = vmatpush1.msra.mxu0 0.0
    %2977 = vmatprep.subr.mxu0 0.0
    %2978 = vmatpush1.msra.mxu0 0.0
    %2979 = vmatprep.subr.mxu0 0.0
    %2980 = vmatpush1.msra.mxu0 0.0
    %2981 = vmatprep.subr.mxu0 0.0
    %2982 = vmatpush1.msra.mxu0 0.0
    %2983 = vmatprep.subr.mxu0 0.0
    %2984 = vmatpush1.msra.mxu0 0.0
    %2985 = vmatprep.subr.mxu0 0.0
    %2986 = vmatpush1.msra.mxu0 0.0
    %2987 = vmatprep.subr.mxu0 0.0
    %2988 = vmatpush1.msra.mxu0 0.0
    %2989 = vmatprep.subr.mxu0 0.0
    %2990 = vmatpush1.msra.mxu0 0.0
    %2991 = vmatprep.subr.mxu0 0.0
    %2992 = vmatpush1.msra.mxu0 0.0
    %2993 = vmatprep.subr.mxu0 0.0
    %2994 = vmatpush1.msra.mxu0 0.0
    %2995 = vmatprep.subr.mxu0 0.0
    %2996 = vmatpush1.msra.mxu0 0.0
    %2997 = vmatprep.subr.mxu0 0.0
    %2998 = vmatpush1.msra.mxu0 0.0
    %2999 = vmatprep.subr.mxu0 0.0
    %3000 = vmatpush1.msra.mxu0 0.0
    %3001 = vmatprep.subr.mxu0 0.0
    %3002 = vmatpush1.msra.mxu0 0.0
    %3003 = vmatprep.subr.mxu0 0.0
    %3004 = vmatpush1.msra.mxu0 0.0
    %3005 = vmatprep.mubr.f32.mxu0 0.0
    %3006 = vmatmul.mubr.f32.gmra.mrb[0].mxu0 %v2939
    %v3007 = vpop.f32.mrb[0].mxu0
    %v3008 = vadd.f32 0.0, %v3007
    %v3009 = vpop.f32.mrb[0].mxu0
    %3010 = vdwg.mxu0
    %v3011 = vadd.f32 %v2931, %v3008
    %v3012 = vmul.f32 %v3011, %v108
    %v3013 = vtanh.pop %v3012
    %v3014 = vmul.f32 %v3013, %v108
    %v3015 = vadd.f32 %v3014, %v109
    %v3016 = vmul.f32 %v3015, %v2557
    %3018 = vrot.lane.b32.xlu0 %v3015, 64
    %v3019 = vpop.permute.xlu0 %3018
    %v3021 = vmul.f32 %v3015, %v3019
    %3023 = vrot.lane.b32.xlu0 %v3021, 32
    %v3024 = vpop.permute.xlu0 %3023
    %v3026 = vadd.f32 %v3016, %v3024
    %v3027 = vtanh.pop %v3026
    %3029 = vrot.lane.b32.xlu0 %v3027, 64
    %v3030 = vpop.permute.xlu0 %3029
    %v3032 = vmul.f32 %v3015, %v3030
    %v3033 = vld [vmem:[%s2] sm:$0xff]
    %v3034 = vld [vmem:[%s2 + $0x8] sm:$0xff]
    %v3035 = vld [vmem:[%s2 + $0x10] sm:$0xff]
    %v3036 = vld [vmem:[%s2 + $0x18] sm:$0xff]
    %v3037 = vld [vmem:[%s414] sm:$0x1]
    %v3039 = vlaneseq
    %v3040 = vshrl.u32 %v3039, 7
    %v3041 = vsub.s32 0, %v3040
    %v3042 = vrot.slane %v3037, %v3041
    %3044 = vmatprep.subr.mxu0 0.0
    %3045 = vmatpush1.msra.mxu0 %v3033
    %3046 = vmatprep.subr.mxu0 0.0
    %3047 = vmatpush1.msra.mxu0 %v3034
    %3048 = vmatprep.subr.mxu0 0.0
    %3049 = vmatpush1.msra.mxu0 %v3035
    %3050 = vmatprep.subr.mxu0 0.0
    %3051 = vmatpush1.msra.mxu0 %v3036
    %3052 = vmatprep.subr.mxu0 0.0
    %3053 = vmatpush1.msra.mxu0 0.0
    %3054 = vmatprep.subr.mxu0 0.0
    %3055 = vmatpush1.msra.mxu0 0.0
    %3056 = vmatprep.subr.mxu0 0.0
    %3057 = vmatpush1.msra.mxu0 0.0
    %3058 = vmatprep.subr.mxu0 0.0
    %3059 = vmatpush1.msra.mxu0 0.0
    %3060 = vmatprep.subr.mxu0 0.0
    %3061 = vmatpush1.msra.mxu0 0.0
    %3062 = vmatprep.subr.mxu0 0.0
    %3063 = vmatpush1.msra.mxu0 0.0
    %3064 = vmatprep.subr.mxu0 0.0
    %3065 = vmatpush1.msra.mxu0 0.0
    %3066 = vmatprep.subr.mxu0 0.0
    %3067 = vmatpush1.msra.mxu0 0.0
    %3068 = vmatprep.subr.mxu0 0.0
    %3069 = vmatpush1.msra.mxu0 0.0
    %3070 = vmatprep.subr.mxu0 0.0
    %3071 = vmatpush1.msra.mxu0 0.0
    %3072 = vmatprep.subr.mxu0 0.0
    %3073 = vmatpush1.msra.mxu0 0.0
    %3074 = vmatprep.subr.mxu0 0.0
    %3075 = vmatpush1.msra.mxu0 0.0
    %3076 = vmatprep.subr.mxu0 0.0
    %3077 = vmatpush1.msra.mxu0 0.0
    %3078 = vmatprep.subr.mxu0 0.0
    %3079 = vmatpush1.msra.mxu0 0.0
    %3080 = vmatprep.subr.mxu0 0.0
    %3081 = vmatpush1.msra.mxu0 0.0
    %3082 = vmatprep.subr.mxu0 0.0
    %3083 = vmatpush1.msra.mxu0 0.0
    %3084 = vmatprep.subr.mxu0 0.0
    %3085 = vmatpush1.msra.mxu0 0.0
    %3086 = vmatprep.subr.mxu0 0.0
    %3087 = vmatpush1.msra.mxu0 0.0
    %3088 = vmatprep.subr.mxu0 0.0
    %3089 = vmatpush1.msra.mxu0 0.0
    %3090 = vmatprep.subr.mxu0 0.0
    %3091 = vmatpush1.msra.mxu0 0.0
    %3092 = vmatprep.subr.mxu0 0.0
    %3093 = vmatpush1.msra.mxu0 0.0
    %3094 = vmatprep.subr.mxu0 0.0
    %3095 = vmatpush1.msra.mxu0 0.0
    %3096 = vmatprep.subr.mxu0 0.0
    %3097 = vmatpush1.msra.mxu0 0.0
    %3098 = vmatprep.subr.mxu0 0.0
    %3099 = vmatpush1.msra.mxu0 0.0
    %3100 = vmatprep.subr.mxu0 0.0
    %3101 = vmatpush1.msra.mxu0 0.0
    %3102 = vmatprep.subr.mxu0 0.0
    %3103 = vmatpush1.msra.mxu0 0.0
    %3104 = vmatprep.subr.mxu0 0.0
    %3105 = vmatpush1.msra.mxu0 0.0
    %3106 = vmatprep.subr.mxu0 0.0
    %3107 = vmatpush1.msra.mxu0 0.0
    %3108 = vmatprep.mubr.f32.mxu0 0.0
    %3109 = vmatmul.mubr.f32.gmra.mrb[0].mxu0 %v2939
    %v3110 = vpop.f32.mrb[0].mxu0
    %v3111 = vadd.f32 %v3042, %v3110
    %v3112 = vpop.f32.mrb[0].mxu0
    %3113 = vdwg.mxu0
    %v3114 = vld [vmem:[%s492] sm:$0xff]
    %v3115 = vld [vmem:[%s492 + $0x8] sm:$0xff]
    %v3116 = vld [vmem:[%s492 + $0x10] sm:$0xff]
    %v3117 = vld [vmem:[%s492 + $0x18] sm:$0xff]
    %3119 = vrot.lane.b32.xlu0 %v2745, 32
    %v3120 = vpop.permute.xlu0 %3119
    %v3121 = vsel %vm211, %v3120, 0
    %3123 = vmatprep.subr.mxu0 0.0
    %3124 = vmatpush1.msra.mxu0 %v3114
    %3125 = vmatprep.subr.mxu0 0.0
    %3126 = vmatpush1.msra.mxu0 %v3115
    %3127 = vmatprep.subr.mxu0 0.0
    %3128 = vmatpush1.msra.mxu0 %v3116
    %3129 = vmatprep.subr.mxu0 0.0
    %3130 = vmatpush1.msra.mxu0 %v3117
    %3131 = vmatprep.subr.mxu0 0.0
    %3132 = vmatpush1.msra.mxu0 0.0
    %3133 = vmatprep.subr.mxu0 0.0
    %3134 = vmatpush1.msra.mxu0 0.0
    %3135 = vmatprep.subr.mxu0 0.0
    %3136 = vmatpush1.msra.mxu0 0.0
    %3137 = vmatprep.subr.mxu0 0.0
    %3138 = vmatpush1.msra.mxu0 0.0
    %3139 = vmatprep.subr.mxu0 0.0
    %3140 = vmatpush1.msra.mxu0 0.0
    %3141 = vmatprep.subr.mxu0 0.0
    %3142 = vmatpush1.msra.mxu0 0.0
    %3143 = vmatprep.subr.mxu0 0.0
    %3144 = vmatpush1.msra.mxu0 0.0
    %3145 = vmatprep.subr.mxu0 0.0
    %3146 = vmatpush1.msra.mxu0 0.0
    %3147 = vmatprep.subr.mxu0 0.0
    %3148 = vmatpush1.msra.mxu0 0.0
    %3149 = vmatprep.subr.mxu0 0.0
    %3150 = vmatpush1.msra.mxu0 0.0
    %3151 = vmatprep.subr.mxu0 0.0
    %3152 = vmatpush1.msra.mxu0 0.0
    %3153 = vmatprep.subr.mxu0 0.0
    %3154 = vmatpush1.msra.mxu0 0.0
    %3155 = vmatprep.subr.mxu0 0.0
    %3156 = vmatpush1.msra.mxu0 0.0
    %3157 = vmatprep.subr.mxu0 0.0
    %3158 = vmatpush1.msra.mxu0 0.0
    %3159 = vmatprep.subr.mxu0 0.0
    %3160 = vmatpush1.msra.mxu0 0.0
    %3161 = vmatprep.subr.mxu0 0.0
    %3162 = vmatpush1.msra.mxu0 0.0
    %3163 = vmatprep.subr.mxu0 0.0
    %3164 = vmatpush1.msra.mxu0 0.0
    %3165 = vmatprep.subr.mxu0 0.0
    %3166 = vmatpush1.msra.mxu0 0.0
    %3167 = vmatprep.subr.mxu0 0.0
    %3168 = vmatpush1.msra.mxu0 0.0
    %3169 = vmatprep.subr.mxu0 0.0
    %3170 = vmatpush1.msra.mxu0 0.0
    %3171 = vmatprep.subr.mxu0 0.0
    %3172 = vmatpush1.msra.mxu0 0.0
    %3173 = vmatprep.subr.mxu0 0.0
    %3174 = vmatpush1.msra.mxu0 0.0
    %3175 = vmatprep.subr.mxu0 0.0
    %3176 = vmatpush1.msra.mxu0 0.0
    %3177 = vmatprep.subr.mxu0 0.0
    %3178 = vmatpush1.msra.mxu0 0.0
    %3179 = vmatprep.subr.mxu0 0.0
    %3180 = vmatpush1.msra.mxu0 0.0
    %3181 = vmatprep.subr.mxu0 0.0
    %3182 = vmatpush1.msra.mxu0 0.0
    %3183 = vmatprep.subr.mxu0 0.0
    %3184 = vmatpush1.msra.mxu0 0.0
    %3185 = vmatprep.subr.mxu0 0.0
    %3186 = vmatpush1.msra.mxu0 0.0
    %3187 = vmatprep.mubr.f32.mxu0 0.0
    %3188 = vmatmul.mubr.f32.gmra.mrb[0].mxu0 %v3121
    %v3189 = vpop.f32.mrb[0].mxu0
    %v3190 = vadd.f32 0.0, %v3189
    %v3191 = vpop.f32.mrb[0].mxu0
    %3192 = vdwg.mxu0
    %v3193 = vadd.f32 %v3111, %v3190
    %v3194 = vmul.f32 %v3193, %v108
    %v3195 = vtanh.pop %v3194
    %v3196 = vmul.f32 %v3195, %v108
    %v3197 = vadd.f32 %v3196, %v109
    %v3198 = vmul.f32 %v3197, %v2739
    %3200 = vrot.lane.b32.xlu0 %v3197, 64
    %v3201 = vpop.permute.xlu0 %3200
    %v3203 = vmul.f32 %v3197, %v3201
    %3205 = vrot.lane.b32.xlu0 %v3203, 32
    %v3206 = vpop.permute.xlu0 %3205
    %v3208 = vadd.f32 %v3198, %v3206
    %v3209 = vtanh.pop %v3208
    %3211 = vrot.lane.b32.xlu0 %v3209, 64
    %v3212 = vpop.permute.xlu0 %3211
    %v3214 = vmul.f32 %v3197, %v3212
    %v3215 = vld [vmem:[%s862] sm:$0xff]
    %v3216 = vld [vmem:[%s862 + $0x8] sm:$0xff]
    %v3217 = vld [vmem:[%s862 + $0x10] sm:$0xff]
    %v3218 = vld [vmem:[%s862 + $0x18] sm:$0xff]
    %v3219 = vld [vmem:[%s867] sm:$0x1]
    %v3221 = vlaneseq
    %v3222 = vshrl.u32 %v3221, 7
    %v3223 = vsub.s32 0, %v3222
    %v3224 = vrot.slane %v3219, %v3223
    %3226 = vmatprep.subr.mxu0 0.0
    %3227 = vmatpush1.msra.mxu0 %v3215
    %3228 = vmatprep.subr.mxu0 0.0
    %3229 = vmatpush1.msra.mxu0 %v3216
    %3230 = vmatprep.subr.mxu0 0.0
    %3231 = vmatpush1.msra.mxu0 %v3217
    %3232 = vmatprep.subr.mxu0 0.0
    %3233 = vmatpush1.msra.mxu0 %v3218
    %3234 = vmatprep.subr.mxu0 0.0
    %3235 = vmatpush1.msra.mxu0 0.0
    %3236 = vmatprep.subr.mxu0 0.0
    %3237 = vmatpush1.msra.mxu0 0.0
    %3238 = vmatprep.subr.mxu0 0.0
    %3239 = vmatpush1.msra.mxu0 0.0
    %3240 = vmatprep.subr.mxu0 0.0
    %3241 = vmatpush1.msra.mxu0 0.0
    %3242 = vmatprep.subr.mxu0 0.0
    %3243 = vmatpush1.msra.mxu0 0.0
    %3244 = vmatprep.subr.mxu0 0.0
    %3245 = vmatpush1.msra.mxu0 0.0
    %3246 = vmatprep.subr.mxu0 0.0
    %3247 = vmatpush1.msra.mxu0 0.0
    %3248 = vmatprep.subr.mxu0 0.0
    %3249 = vmatpush1.msra.mxu0 0.0
    %3250 = vmatprep.subr.mxu0 0.0
    %3251 = vmatpush1.msra.mxu0 0.0
    %3252 = vmatprep.subr.mxu0 0.0
    %3253 = vmatpush1.msra.mxu0 0.0
    %3254 = vmatprep.subr.mxu0 0.0
    %3255 = vmatpush1.msra.mxu0 0.0
    %3256 = vmatprep.subr.mxu0 0.0
    %3257 = vmatpush1.msra.mxu0 0.0
    %3258 = vmatprep.subr.mxu0 0.0
    %3259 = vmatpush1.msra.mxu0 0.0
    %3260 = vmatprep.subr.mxu0 0.0
    %3261 = vmatpush1.msra.mxu0 0.0
    %3262 = vmatprep.subr.mxu0 0.0
    %3263 = vmatpush1.msra.mxu0 0.0
    %3264 = vmatprep.subr.mxu0 0.0
    %3265 = vmatpush1.msra.mxu0 0.0
    %3266 = vmatprep.subr.mxu0 0.0
    %3267 = vmatpush1.msra.mxu0 0.0
    %3268 = vmatprep.subr.mxu0 0.0
    %3269 = vmatpush1.msra.mxu0 0.0
    %3270 = vmatprep.subr.mxu0 0.0
    %3271 = vmatpush1.msra.mxu0 0.0
    %3272 = vmatprep.subr.mxu0 0.0
    %3273 = vmatpush1.msra.mxu0 0.0
    %3274 = vmatprep.subr.mxu0 0.0
    %3275 = vmatpush1.msra.mxu0 0.0
    %3276 = vmatprep.subr.mxu0 0.0
    %3277 = vmatpush1.msra.mxu0 0.0
    %3278 = vmatprep.subr.mxu0 0.0
    %3279 = vmatpush1.msra.mxu0 0.0
    %3280 = vmatprep.subr.mxu0 0.0
    %3281 = vmatpush1.msra.mxu0 0.0
    %3282 = vmatprep.subr.mxu0 0.0
    %3283 = vmatpush1.msra.mxu0 0.0
    %3284 = vmatprep.subr.mxu0 0.0
    %3285 = vmatpush1.msra.mxu0 0.0
    %3286 = vmatprep.subr.mxu0 0.0
    %3287 = vmatpush1.msra.mxu0 0.0
    %3288 = vmatprep.subr.mxu0 0.0
    %3289 = vmatpush1.msra.mxu0 0.0
    %3290 = vmatprep.mubr.f32.mxu0 0.0
    %3291 = vmatmul.mubr.f32.gmra.mrb[0].mxu0 %v3121
    %v3292 = vpop.f32.mrb[0].mxu0
    %v3293 = vadd.f32 %v3224, %v3292
    %v3294 = vpop.f32.mrb[0].mxu0
    %3295 = vdwg.mxu0
    %v3296 = vld [vmem:[%s945] sm:$0xff]
    %v3297 = vld [vmem:[%s945 + $0x8] sm:$0xff]
    %v3298 = vld [vmem:[%s945 + $0x10] sm:$0xff]
    %v3299 = vld [vmem:[%s945 + $0x18] sm:$0xff]
    %v3300 = vsel %vm211, %v2927, 0
    %3302 = vmatprep.subr.mxu0 0.0
    %3303 = vmatpush1.msra.mxu0 %v3296
    %3304 = vmatprep.subr.mxu0 0.0
    %3305 = vmatpush1.msra.mxu0 %v3297
    %3306 = vmatprep.subr.mxu0 0.0
    %3307 = vmatpush1.msra.mxu0 %v3298
    %3308 = vmatprep.subr.mxu0 0.0
    %3309 = vmatpush1.msra.mxu0 %v3299
    %3310 = vmatprep.subr.mxu0 0.0
    %3311 = vmatpush1.msra.mxu0 0.0
    %3312 = vmatprep.subr.mxu0 0.0
    %3313 = vmatpush1.msra.mxu0 0.0
    %3314 = vmatprep.subr.mxu0 0.0
    %3315 = vmatpush1.msra.mxu0 0.0
    %3316 = vmatprep.subr.mxu0 0.0
    %3317 = vmatpush1.msra.mxu0 0.0
    %3318 = vmatprep.subr.mxu0 0.0
    %3319 = vmatpush1.msra.mxu0 0.0
    %3320 = vmatprep.subr.mxu0 0.0
    %3321 = vmatpush1.msra.mxu0 0.0
    %3322 = vmatprep.subr.mxu0 0.0
    %3323 = vmatpush1.msra.mxu0 0.0
    %3324 = vmatprep.subr.mxu0 0.0
    %3325 = vmatpush1.msra.mxu0 0.0
    %3326 = vmatprep.subr.mxu0 0.0
    %3327 = vmatpush1.msra.mxu0 0.0
    %3328 = vmatprep.subr.mxu0 0.0
    %3329 = vmatpush1.msra.mxu0 0.0
    %3330 = vmatprep.subr.mxu0 0.0
    %3331 = vmatpush1.msra.mxu0 0.0
    %3332 = vmatprep.subr.mxu0 0.0
    %3333 = vmatpush1.msra.mxu0 0.0
    %3334 = vmatprep.subr.mxu0 0.0
    %3335 = vmatpush1.msra.mxu0 0.0
    %3336 = vmatprep.subr.mxu0 0.0
    %3337 = vmatpush1.msra.mxu0 0.0
    %3338 = vmatprep.subr.mxu0 0.0
    %3339 = vmatpush1.msra.mxu0 0.0
    %3340 = vmatprep.subr.mxu0 0.0
    %3341 = vmatpush1.msra.mxu0 0.0
    %3342 = vmatprep.subr.mxu0 0.0
    %3343 = vmatpush1.msra.mxu0 0.0
    %3344 = vmatprep.subr.mxu0 0.0
    %3345 = vmatpush1.msra.mxu0 0.0
    %3346 = vmatprep.subr.mxu0 0.0
    %3347 = vmatpush1.msra.mxu0 0.0
    %3348 = vmatprep.subr.mxu0 0.0
    %3349 = vmatpush1.msra.mxu0 0.0
    %3350 = vmatprep.subr.mxu0 0.0
    %3351 = vmatpush1.msra.mxu0 0.0
    %3352 = vmatprep.subr.mxu0 0.0
    %3353 = vmatpush1.msra.mxu0 0.0
    %3354 = vmatprep.subr.mxu0 0.0
    %3355 = vmatpush1.msra.mxu0 0.0
    %3356 = vmatprep.subr.mxu0 0.0
    %3357 = vmatpush1.msra.mxu0 0.0
    %3358 = vmatprep.subr.mxu0 0.0
    %3359 = vmatpush1.msra.mxu0 0.0
    %3360 = vmatprep.subr.mxu0 0.0
    %3361 = vmatpush1.msra.mxu0 0.0
    %3362 = vmatprep.subr.mxu0 0.0
    %3363 = vmatpush1.msra.mxu0 0.0
    %3364 = vmatprep.subr.mxu0 0.0
    %3365 = vmatpush1.msra.mxu0 0.0
    %3366 = vmatprep.mubr.f32.mxu0 0.0
    %3367 = vmatmul.mubr.f32.gmra.mrb[0].mxu0 %v3300
    %v3368 = vpop.f32.mrb[0].mxu0
    %v3369 = vadd.f32 0.0, %v3368
    %v3370 = vpop.f32.mrb[0].mxu0
    %3371 = vdwg.mxu0
    %v3372 = vadd.f32 %v3293, %v3369
    %v3373 = vmul.f32 %v3372, %v108
    %v3374 = vtanh.pop %v3373
    %v3375 = vmul.f32 %v3374, %v108
    %v3376 = vadd.f32 %v3375, %v109
    %v3377 = vmul.f32 %v3376, %v2918
    %3379 = vrot.lane.b32.xlu0 %v3376, 64
    %v3380 = vpop.permute.xlu0 %3379
    %v3382 = vmul.f32 %v3376, %v3380
    %3384 = vrot.lane.b32.xlu0 %v3382, 32
    %v3385 = vpop.permute.xlu0 %3384
    %v3387 = vadd.f32 %v3377, %v3385
    %v3388 = vtanh.pop %v3387
    %3390 = vrot.lane.b32.xlu0 %v3388, 64
    %v3391 = vpop.permute.xlu0 %3390
    %v3393 = vmul.f32 %v3376, %v3391
    %3395 = vrot.lane.b32.xlu0 %v3393, 32
    %v3396 = vpop.permute.xlu0 %3395
    %3398 = vst.msk [vmem:[#allocation3 + $0x28] sm:$0xff] %vm211, %v3396
    %v3399 = vld [vmem:[%s2] sm:$0xff]
    %v3400 = vld [vmem:[%s2 + $0x8] sm:$0xff]
    %v3401 = vld [vmem:[%s2 + $0x10] sm:$0xff]
    %v3402 = vld [vmem:[%s2 + $0x18] sm:$0xff]
    %v3403 = vld [vmem:[%s414] sm:$0x1]
    %v3405 = vlaneseq
    %v3406 = vshrl.u32 %v3405, 7
    %v3407 = vsub.s32 0, %v3406
    %v3408 = vrot.slane %v3403, %v3407
    %3411 = vrot.lane.b32.xlu0 %v3032, 32
    %v3412 = vpop.permute.xlu0 %3411
    %v3413 = vsel %vm211, %v3412, 0
    %3415 = vmatprep.subr.mxu0 0.0
    %3416 = vmatpush1.msra.mxu0 %v3399
    %3417 = vmatprep.subr.mxu0 0.0
    %3418 = vmatpush1.msra.mxu0 %v3400
    %3419 = vmatprep.subr.mxu0 0.0
    %3420 = vmatpush1.msra.mxu0 %v3401
    %3421 = vmatprep.subr.mxu0 0.0
    %3422 = vmatpush1.msra.mxu0 %v3402
    %3423 = vmatprep.subr.mxu0 0.0
    %3424 = vmatpush1.msra.mxu0 0.0
    %3425 = vmatprep.subr.mxu0 0.0
    %3426 = vmatpush1.msra.mxu0 0.0
    %3427 = vmatprep.subr.mxu0 0.0
    %3428 = vmatpush1.msra.mxu0 0.0
    %3429 = vmatprep.subr.mxu0 0.0
    %3430 = vmatpush1.msra.mxu0 0.0
    %3431 = vmatprep.subr.mxu0 0.0
    %3432 = vmatpush1.msra.mxu0 0.0
    %3433 = vmatprep.subr.mxu0 0.0
    %3434 = vmatpush1.msra.mxu0 0.0
    %3435 = vmatprep.subr.mxu0 0.0
    %3436 = vmatpush1.msra.mxu0 0.0
    %3437 = vmatprep.subr.mxu0 0.0
    %3438 = vmatpush1.msra.mxu0 0.0
    %3439 = vmatprep.subr.mxu0 0.0
    %3440 = vmatpush1.msra.mxu0 0.0
    %3441 = vmatprep.subr.mxu0 0.0
    %3442 = vmatpush1.msra.mxu0 0.0
    %3443 = vmatprep.subr.mxu0 0.0
    %3444 = vmatpush1.msra.mxu0 0.0
    %3445 = vmatprep.subr.mxu0 0.0
    %3446 = vmatpush1.msra.mxu0 0.0
    %3447 = vmatprep.subr.mxu0 0.0
    %3448 = vmatpush1.msra.mxu0 0.0
    %3449 = vmatprep.subr.mxu0 0.0
    %3450 = vmatpush1.msra.mxu0 0.0
    %3451 = vmatprep.subr.mxu0 0.0
    %3452 = vmatpush1.msra.mxu0 0.0
    %3453 = vmatprep.subr.mxu0 0.0
    %3454 = vmatpush1.msra.mxu0 0.0
    %3455 = vmatprep.subr.mxu0 0.0
    %3456 = vmatpush1.msra.mxu0 0.0
    %3457 = vmatprep.subr.mxu0 0.0
    %3458 = vmatpush1.msra.mxu0 0.0
    %3459 = vmatprep.subr.mxu0 0.0
    %3460 = vmatpush1.msra.mxu0 0.0
    %3461 = vmatprep.subr.mxu0 0.0
    %3462 = vmatpush1.msra.mxu0 0.0
    %3463 = vmatprep.subr.mxu0 0.0
    %3464 = vmatpush1.msra.mxu0 0.0
    %3465 = vmatprep.subr.mxu0 0.0
    %3466 = vmatpush1.msra.mxu0 0.0
    %3467 = vmatprep.subr.mxu0 0.0
    %3468 = vmatpush1.msra.mxu0 0.0
    %3469 = vmatprep.subr.mxu0 0.0
    %3470 = vmatpush1.msra.mxu0 0.0
    %3471 = vmatprep.subr.mxu0 0.0
    %3472 = vmatpush1.msra.mxu0 0.0
    %3473 = vmatprep.subr.mxu0 0.0
    %3474 = vmatpush1.msra.mxu0 0.0
    %3475 = vmatprep.subr.mxu0 0.0
    %3476 = vmatpush1.msra.mxu0 0.0
    %3477 = vmatprep.subr.mxu0 0.0
    %3478 = vmatpush1.msra.mxu0 0.0
    %3479 = vmatprep.mubr.f32.mxu0 0.0
    %3480 = vmatmul.mubr.f32.gmra.mrb[0].mxu0 %v3413
    %v3481 = vpop.f32.mrb[0].mxu0
    %v3482 = vadd.f32 %v3408, %v3481
    %v3483 = vpop.f32.mrb[0].mxu0
    %3484 = vdwg.mxu0
    %v3485 = vld [vmem:[%s492] sm:$0xff]
    %v3486 = vld [vmem:[%s492 + $0x8] sm:$0xff]
    %v3487 = vld [vmem:[%s492 + $0x10] sm:$0xff]
    %v3488 = vld [vmem:[%s492 + $0x18] sm:$0xff]
    %3490 = vrot.lane.b32.xlu0 %v3214, 32
    %v3491 = vpop.permute.xlu0 %3490
    %v3492 = vsel %vm211, %v3491, 0
    %3494 = vmatprep.subr.mxu0 0.0
    %3495 = vmatpush1.msra.mxu0 %v3485
    %3496 = vmatprep.subr.mxu0 0.0
    %3497 = vmatpush1.msra.mxu0 %v3486
    %3498 = vmatprep.subr.mxu0 0.0
    %3499 = vmatpush1.msra.mxu0 %v3487
    %3500 = vmatprep.subr.mxu0 0.0
    %3501 = vmatpush1.msra.mxu0 %v3488
    %3502 = vmatprep.subr.mxu0 0.0
    %3503 = vmatpush1.msra.mxu0 0.0
    %3504 = vmatprep.subr.mxu0 0.0
    %3505 = vmatpush1.msra.mxu0 0.0
    %3506 = vmatprep.subr.mxu0 0.0
    %3507 = vmatpush1.msra.mxu0 0.0
    %3508 = vmatprep.subr.mxu0 0.0
    %3509 = vmatpush1.msra.mxu0 0.0
    %3510 = vmatprep.subr.mxu0 0.0
    %3511 = vmatpush1.msra.mxu0 0.0
    %3512 = vmatprep.subr.mxu0 0.0
    %3513 = vmatpush1.msra.mxu0 0.0
    %3514 = vmatprep.subr.mxu0 0.0
    %3515 = vmatpush1.msra.mxu0 0.0
    %3516 = vmatprep.subr.mxu0 0.0
    %3517 = vmatpush1.msra.mxu0 0.0
    %3518 = vmatprep.subr.mxu0 0.0
    %3519 = vmatpush1.msra.mxu0 0.0
    %3520 = vmatprep.subr.mxu0 0.0
    %3521 = vmatpush1.msra.mxu0 0.0
    %3522 = vmatprep.subr.mxu0 0.0
    %3523 = vmatpush1.msra.mxu0 0.0
    %3524 = vmatprep.subr.mxu0 0.0
    %3525 = vmatpush1.msra.mxu0 0.0
    %3526 = vmatprep.subr.mxu0 0.0
    %3527 = vmatpush1.msra.mxu0 0.0
    %3528 = vmatprep.subr.mxu0 0.0
    %3529 = vmatpush1.msra.mxu0 0.0
    %3530 = vmatprep.subr.mxu0 0.0
    %3531 = vmatpush1.msra.mxu0 0.0
    %3532 = vmatprep.subr.mxu0 0.0
    %3533 = vmatpush1.msra.mxu0 0.0
    %3534 = vmatprep.subr.mxu0 0.0
    %3535 = vmatpush1.msra.mxu0 0.0
    %3536 = vmatprep.subr.mxu0 0.0
    %3537 = vmatpush1.msra.mxu0 0.0
    %3538 = vmatprep.subr.mxu0 0.0
    %3539 = vmatpush1.msra.mxu0 0.0
    %3540 = vmatprep.subr.mxu0 0.0
    %3541 = vmatpush1.msra.mxu0 0.0
    %3542 = vmatprep.subr.mxu0 0.0
    %3543 = vmatpush1.msra.mxu0 0.0
    %3544 = vmatprep.subr.mxu0 0.0
    %3545 = vmatpush1.msra.mxu0 0.0
    %3546 = vmatprep.subr.mxu0 0.0
    %3547 = vmatpush1.msra.mxu0 0.0
    %3548 = vmatprep.subr.mxu0 0.0
    %3549 = vmatpush1.msra.mxu0 0.0
    %3550 = vmatprep.subr.mxu0 0.0
    %3551 = vmatpush1.msra.mxu0 0.0
    %3552 = vmatprep.subr.mxu0 0.0
    %3553 = vmatpush1.msra.mxu0 0.0
    %3554 = vmatprep.subr.mxu0 0.0
    %3555 = vmatpush1.msra.mxu0 0.0
    %3556 = vmatprep.subr.mxu0 0.0
    %3557 = vmatpush1.msra.mxu0 0.0
    %3558 = vmatprep.mubr.f32.mxu0 0.0
    %3559 = vmatmul.mubr.f32.gmra.mrb[0].mxu0 %v3492
    %v3560 = vpop.f32.mrb[0].mxu0
    %v3561 = vadd.f32 0.0, %v3560
    %v3562 = vpop.f32.mrb[0].mxu0
    %3563 = vdwg.mxu0
    %v3564 = vadd.f32 %v3482, %v3561
    %v3565 = vmul.f32 %v3564, %v108
    %v3566 = vtanh.pop %v3565
    %v3567 = vmul.f32 %v3566, %v108
    %v3568 = vadd.f32 %v3567, %v109
    %v3569 = vmul.f32 %v3568, %v3208
    %3571 = vrot.lane.b32.xlu0 %v3568, 64
    %v3572 = vpop.permute.xlu0 %3571
    %v3574 = vmul.f32 %v3568, %v3572
    %3576 = vrot.lane.b32.xlu0 %v3574, 32
    %v3577 = vpop.permute.xlu0 %3576
    %v3579 = vadd.f32 %v3569, %v3577
    %v3580 = vtanh.pop %v3579
    %3582 = vrot.lane.b32.xlu0 %v3580, 64
    %v3583 = vpop.permute.xlu0 %3582
    %v3585 = vmul.f32 %v3568, %v3583
    %v3586 = vld [vmem:[%s862] sm:$0xff]
    %v3587 = vld [vmem:[%s862 + $0x8] sm:$0xff]
    %v3588 = vld [vmem:[%s862 + $0x10] sm:$0xff]
    %v3589 = vld [vmem:[%s862 + $0x18] sm:$0xff]
    %v3590 = vld [vmem:[%s867] sm:$0x1]
    %v3592 = vlaneseq
    %v3593 = vshrl.u32 %v3592, 7
    %v3594 = vsub.s32 0, %v3593
    %v3595 = vrot.slane %v3590, %v3594
    %3597 = vmatprep.subr.mxu0 0.0
    %3598 = vmatpush1.msra.mxu0 %v3586
    %3599 = vmatprep.subr.mxu0 0.0
    %3600 = vmatpush1.msra.mxu0 %v3587
    %3601 = vmatprep.subr.mxu0 0.0
    %3602 = vmatpush1.msra.mxu0 %v3588
    %3603 = vmatprep.subr.mxu0 0.0
    %3604 = vmatpush1.msra.mxu0 %v3589
    %3605 = vmatprep.subr.mxu0 0.0
    %3606 = vmatpush1.msra.mxu0 0.0
    %3607 = vmatprep.subr.mxu0 0.0
    %3608 = vmatpush1.msra.mxu0 0.0
    %3609 = vmatprep.subr.mxu0 0.0
    %3610 = vmatpush1.msra.mxu0 0.0
    %3611 = vmatprep.subr.mxu0 0.0
    %3612 = vmatpush1.msra.mxu0 0.0
    %3613 = vmatprep.subr.mxu0 0.0
    %3614 = vmatpush1.msra.mxu0 0.0
    %3615 = vmatprep.subr.mxu0 0.0
    %3616 = vmatpush1.msra.mxu0 0.0
    %3617 = vmatprep.subr.mxu0 0.0
    %3618 = vmatpush1.msra.mxu0 0.0
    %3619 = vmatprep.subr.mxu0 0.0
    %3620 = vmatpush1.msra.mxu0 0.0
    %3621 = vmatprep.subr.mxu0 0.0
    %3622 = vmatpush1.msra.mxu0 0.0
    %3623 = vmatprep.subr.mxu0 0.0
    %3624 = vmatpush1.msra.mxu0 0.0
    %3625 = vmatprep.subr.mxu0 0.0
    %3626 = vmatpush1.msra.mxu0 0.0
    %3627 = vmatprep.subr.mxu0 0.0
    %3628 = vmatpush1.msra.mxu0 0.0
    %3629 = vmatprep.subr.mxu0 0.0
    %3630 = vmatpush1.msra.mxu0 0.0
    %3631 = vmatprep.subr.mxu0 0.0
    %3632 = vmatpush1.msra.mxu0 0.0
    %3633 = vmatprep.subr.mxu0 0.0
    %3634 = vmatpush1.msra.mxu0 0.0
    %3635 = vmatprep.subr.mxu0 0.0
    %3636 = vmatpush1.msra.mxu0 0.0
    %3637 = vmatprep.subr.mxu0 0.0
    %3638 = vmatpush1.msra.mxu0 0.0
    %3639 = vmatprep.subr.mxu0 0.0
    %3640 = vmatpush1.msra.mxu0 0.0
    %3641 = vmatprep.subr.mxu0 0.0
    %3642 = vmatpush1.msra.mxu0 0.0
    %3643 = vmatprep.subr.mxu0 0.0
    %3644 = vmatpush1.msra.mxu0 0.0
    %3645 = vmatprep.subr.mxu0 0.0
    %3646 = vmatpush1.msra.mxu0 0.0
    %3647 = vmatprep.subr.mxu0 0.0
    %3648 = vmatpush1.msra.mxu0 0.0
    %3649 = vmatprep.subr.mxu0 0.0
    %3650 = vmatpush1.msra.mxu0 0.0
    %3651 = vmatprep.subr.mxu0 0.0
    %3652 = vmatpush1.msra.mxu0 0.0
    %3653 = vmatprep.subr.mxu0 0.0
    %3654 = vmatpush1.msra.mxu0 0.0
    %3655 = vmatprep.subr.mxu0 0.0
    %3656 = vmatpush1.msra.mxu0 0.0
    %3657 = vmatprep.subr.mxu0 0.0
    %3658 = vmatpush1.msra.mxu0 0.0
    %3659 = vmatprep.subr.mxu0 0.0
    %3660 = vmatpush1.msra.mxu0 0.0
    %3661 = vmatprep.mubr.f32.mxu0 0.0
    %3662 = vmatmul.mubr.f32.gmra.mrb[0].mxu0 %v3492
    %v3663 = vpop.f32.mrb[0].mxu0
    %v3664 = vadd.f32 %v3595, %v3663
    %v3665 = vpop.f32.mrb[0].mxu0
    %3666 = vdwg.mxu0
    %v3667 = vld [vmem:[%s945] sm:$0xff]
    %v3668 = vld [vmem:[%s945 + $0x8] sm:$0xff]
    %v3669 = vld [vmem:[%s945 + $0x10] sm:$0xff]
    %v3670 = vld [vmem:[%s945 + $0x18] sm:$0xff]
    %v3671 = vsel %vm211, %v3396, 0
    %3673 = vmatprep.subr.mxu0 0.0
    %3674 = vmatpush1.msra.mxu0 %v3667
    %3675 = vmatprep.subr.mxu0 0.0
    %3676 = vmatpush1.msra.mxu0 %v3668
    %3677 = vmatprep.subr.mxu0 0.0
    %3678 = vmatpush1.msra.mxu0 %v3669
    %3679 = vmatprep.subr.mxu0 0.0
    %3680 = vmatpush1.msra.mxu0 %v3670
    %3681 = vmatprep.subr.mxu0 0.0
    %3682 = vmatpush1.msra.mxu0 0.0
    %3683 = vmatprep.subr.mxu0 0.0
    %3684 = vmatpush1.msra.mxu0 0.0
    %3685 = vmatprep.subr.mxu0 0.0
    %3686 = vmatpush1.msra.mxu0 0.0
    %3687 = vmatprep.subr.mxu0 0.0
    %3688 = vmatpush1.msra.mxu0 0.0
    %3689 = vmatprep.subr.mxu0 0.0
    %3690 = vmatpush1.msra.mxu0 0.0
    %3691 = vmatprep.subr.mxu0 0.0
    %3692 = vmatpush1.msra.mxu0 0.0
    %3693 = vmatprep.subr.mxu0 0.0
    %3694 = vmatpush1.msra.mxu0 0.0
    %3695 = vmatprep.subr.mxu0 0.0
    %3696 = vmatpush1.msra.mxu0 0.0
    %3697 = vmatprep.subr.mxu0 0.0
    %3698 = vmatpush1.msra.mxu0 0.0
    %3699 = vmatprep.subr.mxu0 0.0
    %3700 = vmatpush1.msra.mxu0 0.0
    %3701 = vmatprep.subr.mxu0 0.0
    %3702 = vmatpush1.msra.mxu0 0.0
    %3703 = vmatprep.subr.mxu0 0.0
    %3704 = vmatpush1.msra.mxu0 0.0
    %3705 = vmatprep.subr.mxu0 0.0
    %3706 = vmatpush1.msra.mxu0 0.0
    %3707 = vmatprep.subr.mxu0 0.0
    %3708 = vmatpush1.msra.mxu0 0.0
    %3709 = vmatprep.subr.mxu0 0.0
    %3710 = vmatpush1.msra.mxu0 0.0
    %3711 = vmatprep.subr.mxu0 0.0
    %3712 = vmatpush1.msra.mxu0 0.0
    %3713 = vmatprep.subr.mxu0 0.0
    %3714 = vmatpush1.msra.mxu0 0.0
    %3715 = vmatprep.subr.mxu0 0.0
    %3716 = vmatpush1.msra.mxu0 0.0
    %3717 = vmatprep.subr.mxu0 0.0
    %3718 = vmatpush1.msra.mxu0 0.0
    %3719 = vmatprep.subr.mxu0 0.0
    %3720 = vmatpush1.msra.mxu0 0.0
    %3721 = vmatprep.subr.mxu0 0.0
    %3722 = vmatpush1.msra.mxu0 0.0
    %3723 = vmatprep.subr.mxu0 0.0
    %3724 = vmatpush1.msra.mxu0 0.0
    %3725 = vmatprep.subr.mxu0 0.0
    %3726 = vmatpush1.msra.mxu0 0.0
    %3727 = vmatprep.subr.mxu0 0.0
    %3728 = vmatpush1.msra.mxu0 0.0
    %3729 = vmatprep.subr.mxu0 0.0
    %3730 = vmatpush1.msra.mxu0 0.0
    %3731 = vmatprep.subr.mxu0 0.0
    %3732 = vmatpush1.msra.mxu0 0.0
    %3733 = vmatprep.subr.mxu0 0.0
    %3734 = vmatpush1.msra.mxu0 0.0
    %3735 = vmatprep.subr.mxu0 0.0
    %3736 = vmatpush1.msra.mxu0 0.0
    %3737 = vmatprep.mubr.f32.mxu0 0.0
    %3738 = vmatmul.mubr.f32.gmra.mrb[0].mxu0 %v3671
    %v3739 = vpop.f32.mrb[0].mxu0
    %v3740 = vadd.f32 0.0, %v3739
    %v3741 = vpop.f32.mrb[0].mxu0
    %3742 = vdwg.mxu0
    %v3743 = vadd.f32 %v3664, %v3740
    %v3744 = vmul.f32 %v3743, %v108
    %v3745 = vtanh.pop %v3744
    %v3746 = vmul.f32 %v3745, %v108
    %v3747 = vadd.f32 %v3746, %v109
    %v3748 = vmul.f32 %v3747, %v3387
    %3750 = vrot.lane.b32.xlu0 %v3747, 64
    %v3751 = vpop.permute.xlu0 %3750
    %v3753 = vmul.f32 %v3747, %v3751
    %3755 = vrot.lane.b32.xlu0 %v3753, 32
    %v3756 = vpop.permute.xlu0 %3755
    %v3758 = vadd.f32 %v3748, %v3756
    %v3759 = vtanh.pop %v3758
    %3761 = vrot.lane.b32.xlu0 %v3759, 64
    %v3762 = vpop.permute.xlu0 %3761
    %v3764 = vmul.f32 %v3747, %v3762
    %3766 = vrot.lane.b32.xlu0 %v3764, 32
    %v3767 = vpop.permute.xlu0 %3766
    %3769 = vst.msk [vmem:[#allocation3 + $0x30] sm:$0xff] %vm211, %v3767
    %v3770 = vld [vmem:[%s862] sm:$0xff]
    %v3771 = vld [vmem:[%s862 + $0x8] sm:$0xff]
    %v3772 = vld [vmem:[%s862 + $0x10] sm:$0xff]
    %v3773 = vld [vmem:[%s862 + $0x18] sm:$0xff]
    %v3774 = vld [vmem:[%s867] sm:$0x1]
    %v3776 = vlaneseq
    %v3777 = vshrl.u32 %v3776, 7
    %v3778 = vsub.s32 0, %v3777
    %v3779 = vrot.slane %v3774, %v3778
    %3782 = vrot.lane.b32.xlu0 %v3585, 32
    %v3783 = vpop.permute.xlu0 %3782
    %v3784 = vsel %vm211, %v3783, 0
    %3786 = vmatprep.subr.mxu0 0.0
    %3787 = vmatpush1.msra.mxu0 %v3770
    %3788 = vmatprep.subr.mxu0 0.0
    %3789 = vmatpush1.msra.mxu0 %v3771
    %3790 = vmatprep.subr.mxu0 0.0
    %3791 = vmatpush1.msra.mxu0 %v3772
    %3792 = vmatprep.subr.mxu0 0.0
    %3793 = vmatpush1.msra.mxu0 %v3773
    %3794 = vmatprep.subr.mxu0 0.0
    %3795 = vmatpush1.msra.mxu0 0.0
    %3796 = vmatprep.subr.mxu0 0.0
    %3797 = vmatpush1.msra.mxu0 0.0
    %3798 = vmatprep.subr.mxu0 0.0
    %3799 = vmatpush1.msra.mxu0 0.0
    %3800 = vmatprep.subr.mxu0 0.0
    %3801 = vmatpush1.msra.mxu0 0.0
    %3802 = vmatprep.subr.mxu0 0.0
    %3803 = vmatpush1.msra.mxu0 0.0
    %3804 = vmatprep.subr.mxu0 0.0
    %3805 = vmatpush1.msra.mxu0 0.0
    %3806 = vmatprep.subr.mxu0 0.0
    %3807 = vmatpush1.msra.mxu0 0.0
    %3808 = vmatprep.subr.mxu0 0.0
    %3809 = vmatpush1.msra.mxu0 0.0
    %3810 = vmatprep.subr.mxu0 0.0
    %3811 = vmatpush1.msra.mxu0 0.0
    %3812 = vmatprep.subr.mxu0 0.0
    %3813 = vmatpush1.msra.mxu0 0.0
    %3814 = vmatprep.subr.mxu0 0.0
    %3815 = vmatpush1.msra.mxu0 0.0
    %3816 = vmatprep.subr.mxu0 0.0
    %3817 = vmatpush1.msra.mxu0 0.0
    %3818 = vmatprep.subr.mxu0 0.0
    %3819 = vmatpush1.msra.mxu0 0.0
    %3820 = vmatprep.subr.mxu0 0.0
    %3821 = vmatpush1.msra.mxu0 0.0
    %3822 = vmatprep.subr.mxu0 0.0
    %3823 = vmatpush1.msra.mxu0 0.0
    %3824 = vmatprep.subr.mxu0 0.0
    %3825 = vmatpush1.msra.mxu0 0.0
    %3826 = vmatprep.subr.mxu0 0.0
    %3827 = vmatpush1.msra.mxu0 0.0
    %3828 = vmatprep.subr.mxu0 0.0
    %3829 = vmatpush1.msra.mxu0 0.0
    %3830 = vmatprep.subr.mxu0 0.0
    %3831 = vmatpush1.msra.mxu0 0.0
    %3832 = vmatprep.subr.mxu0 0.0
    %3833 = vmatpush1.msra.mxu0 0.0
    %3834 = vmatprep.subr.mxu0 0.0
    %3835 = vmatpush1.msra.mxu0 0.0
    %3836 = vmatprep.subr.mxu0 0.0
    %3837 = vmatpush1.msra.mxu0 0.0
    %3838 = vmatprep.subr.mxu0 0.0
    %3839 = vmatpush1.msra.mxu0 0.0
    %3840 = vmatprep.subr.mxu0 0.0
    %3841 = vmatpush1.msra.mxu0 0.0
    %3842 = vmatprep.subr.mxu0 0.0
    %3843 = vmatpush1.msra.mxu0 0.0
    %3844 = vmatprep.subr.mxu0 0.0
    %3845 = vmatpush1.msra.mxu0 0.0
    %3846 = vmatprep.subr.mxu0 0.0
    %3847 = vmatpush1.msra.mxu0 0.0
    %3848 = vmatprep.subr.mxu0 0.0
    %3849 = vmatpush1.msra.mxu0 0.0
    %3850 = vmatprep.mubr.f32.mxu0 0.0
    %3851 = vmatmul.mubr.f32.gmra.mrb[0].mxu0 %v3784
    %v3852 = vpop.f32.mrb[0].mxu0
    %v3853 = vadd.f32 %v3779, %v3852
    %v3854 = vpop.f32.mrb[0].mxu0
    %3855 = vdwg.mxu0
    %v3856 = vld [vmem:[%s945] sm:$0xff]
    %v3857 = vld [vmem:[%s945 + $0x8] sm:$0xff]
    %v3858 = vld [vmem:[%s945 + $0x10] sm:$0xff]
    %v3859 = vld [vmem:[%s945 + $0x18] sm:$0xff]
    %v3860 = vsel %vm211, %v3767, 0
    %3862 = vmatprep.subr.mxu0 0.0
    %3863 = vmatpush1.msra.mxu0 %v3856
    %3864 = vmatprep.subr.mxu0 0.0
    %3865 = vmatpush1.msra.mxu0 %v3857
    %3866 = vmatprep.subr.mxu0 0.0
    %3867 = vmatpush1.msra.mxu0 %v3858
    %3868 = vmatprep.subr.mxu0 0.0
    %3869 = vmatpush1.msra.mxu0 %v3859
    %3870 = vmatprep.subr.mxu0 0.0
    %3871 = vmatpush1.msra.mxu0 0.0
    %3872 = vmatprep.subr.mxu0 0.0
    %3873 = vmatpush1.msra.mxu0 0.0
    %3874 = vmatprep.subr.mxu0 0.0
    %3875 = vmatpush1.msra.mxu0 0.0
    %3876 = vmatprep.subr.mxu0 0.0
    %3877 = vmatpush1.msra.mxu0 0.0
    %3878 = vmatprep.subr.mxu0 0.0
    %3879 = vmatpush1.msra.mxu0 0.0
    %3880 = vmatprep.subr.mxu0 0.0
    %3881 = vmatpush1.msra.mxu0 0.0
    %3882 = vmatprep.subr.mxu0 0.0
    %3883 = vmatpush1.msra.mxu0 0.0
    %3884 = vmatprep.subr.mxu0 0.0
    %3885 = vmatpush1.msra.mxu0 0.0
    %3886 = vmatprep.subr.mxu0 0.0
    %3887 = vmatpush1.msra.mxu0 0.0
    %3888 = vmatprep.subr.mxu0 0.0
    %3889 = vmatpush1.msra.mxu0 0.0
    %3890 = vmatprep.subr.mxu0 0.0
    %3891 = vmatpush1.msra.mxu0 0.0
    %3892 = vmatprep.subr.mxu0 0.0
    %3893 = vmatpush1.msra.mxu0 0.0
    %3894 = vmatprep.subr.mxu0 0.0
    %3895 = vmatpush1.msra.mxu0 0.0
    %3896 = vmatprep.subr.mxu0 0.0
    %3897 = vmatpush1.msra.mxu0 0.0
    %3898 = vmatprep.subr.mxu0 0.0
    %3899 = vmatpush1.msra.mxu0 0.0
    %3900 = vmatprep.subr.mxu0 0.0
    %3901 = vmatpush1.msra.mxu0 0.0
    %3902 = vmatprep.subr.mxu0 0.0
    %3903 = vmatpush1.msra.mxu0 0.0
    %3904 = vmatprep.subr.mxu0 0.0
    %3905 = vmatpush1.msra.mxu0 0.0
    %3906 = vmatprep.subr.mxu0 0.0
    %3907 = vmatpush1.msra.mxu0 0.0
    %3908 = vmatprep.subr.mxu0 0.0
    %3909 = vmatpush1.msra.mxu0 0.0
    %3910 = vmatprep.subr.mxu0 0.0
    %3911 = vmatpush1.msra.mxu0 0.0
    %3912 = vmatprep.subr.mxu0 0.0
    %3913 = vmatpush1.msra.mxu0 0.0
    %3914 = vmatprep.subr.mxu0 0.0
    %3915 = vmatpush1.msra.mxu0 0.0
    %3916 = vmatprep.subr.mxu0 0.0
    %3917 = vmatpush1.msra.mxu0 0.0
    %3918 = vmatprep.subr.mxu0 0.0
    %3919 = vmatpush1.msra.mxu0 0.0
    %3920 = vmatprep.subr.mxu0 0.0
    %3921 = vmatpush1.msra.mxu0 0.0
    %3922 = vmatprep.subr.mxu0 0.0
    %3923 = vmatpush1.msra.mxu0 0.0
    %3924 = vmatprep.subr.mxu0 0.0
    %3925 = vmatpush1.msra.mxu0 0.0
    %3926 = vmatprep.mubr.f32.mxu0 0.0
    %3927 = vmatmul.mubr.f32.gmra.mrb[0].mxu0 %v3860
    %v3928 = vpop.f32.mrb[0].mxu0
    %v3929 = vadd.f32 0.0, %v3928
    %v3930 = vpop.f32.mrb[0].mxu0
    %3931 = vdwg.mxu0
    %v3932 = vadd.f32 %v3853, %v3929
    %v3933 = vmul.f32 %v3932, %v108
    %v3934 = vtanh.pop %v3933
    %v3935 = vmul.f32 %v3934, %v108
    %v3936 = vadd.f32 %v3935, %v109
    %v3937 = vmul.f32 %v3936, %v3758
    %3939 = vrot.lane.b32.xlu0 %v3936, 64
    %v3940 = vpop.permute.xlu0 %3939
    %v3942 = vmul.f32 %v3936, %v3940
    %3944 = vrot.lane.b32.xlu0 %v3942, 32
    %v3945 = vpop.permute.xlu0 %3944
    %v3947 = vadd.f32 %v3937, %v3945
    %v3948 = vtanh.pop %v3947
    %3950 = vrot.lane.b32.xlu0 %v3948, 64
    %v3951 = vpop.permute.xlu0 %3950
    %v3953 = vmul.f32 %v3936, %v3951
    %3955 = vrot.lane.b32.xlu0 %v3953, 32
    %v3956 = vpop.permute.xlu0 %3955
    %3958 = vst.msk [vmem:[#allocation3 + $0x38] sm:$0xff] %vm211, %v3956
    %3960 = vst.msk [vmem:[#allocation14] sm:$0xff] %vm211, %v3412
    %3962 = vrot.lane.b32.xlu0 %v3026, 96
    %v3963 = vpop.permute.xlu0 %3962
    %3965 = vst.msk [vmem:[#allocation16] sm:$0xff] %vm211, %v3963
    %s3967 = scalar_lea.vmem [#allocation14], 8
    %3968 = vst.msk [vmem:[%s3967] sm:$0xff] %vm211, %v3783
    %3970 = vrot.lane.b32.xlu0 %v3579, 96
    %v3971 = vpop.permute.xlu0 %3970
    %s3973 = scalar_lea.vmem [#allocation16], 8
    %3974 = vst.msk [vmem:[%s3973] sm:$0xff] %vm211, %v3971
    %s3975 = scalar_lea.vmem [#allocation14], 16
    %3976 = vst.msk [vmem:[%s3975] sm:$0xff] %vm211, %v3956
    %3978 = vrot.lane.b32.xlu0 %v3947, 96
    %v3979 = vpop.permute.xlu0 %3978
    %s3981 = scalar_lea.vmem [#allocation16], 16
    %3982 = vst.msk [vmem:[%s3981] sm:$0xff] %vm211, %v3979
    %v3983 = vld [vmem:[#allocation3] sm:$0xff]
    %v3984 = vld [vmem:[#allocation3 + $0x8] sm:$0xff]
    %v3985 = vld [vmem:[#allocation3 + $0x10] sm:$0xff]
    %v3986 = vld [vmem:[#allocation3 + $0x18] sm:$0xff]
    %v3987 = vld [vmem:[#allocation3 + $0x20] sm:$0xff]
    %v3988 = vld [vmem:[#allocation3 + $0x28] sm:$0xff]
    %v3989 = vld [vmem:[#allocation3 + $0x30] sm:$0xff]
    %v3990 = vld [vmem:[#allocation3 + $0x38] sm:$0xff]
    %v3991 = vld [vmem:[#allocation12] sm:$0xff]
    %v3992 = vld [vmem:[#allocation12 + $0x8] sm:$0xff]
    %v3993 = vld [vmem:[#allocation12 + $0x10] sm:$0xff]
    %v3994 = vld [vmem:[#allocation12 + $0x18] sm:$0xff]
    %v3995 = vld [vmem:[#allocation12 + $0x20] sm:$0xff]
    %v3996 = vld [vmem:[#allocation12 + $0x28] sm:$0xff]
    %v3997 = vld [vmem:[#allocation12 + $0x30] sm:$0xff]
    %v3998 = vld [vmem:[#allocation12 + $0x38] sm:$0xff]
    %v3999 = vld [vmem:[%s8] sm:$0x3]
    %v4001 = vlaneseq
    %v4002 = vshrl.u32 %v4001, 7
    %v4003 = vsub.s32 0, %v4002
    %v4004 = vrot.slane %v3999, %v4003
    %v4005 = vlaneseq
    %v4006 = vshrl.u32 %v4005, 7
    %v4007 = vsub.s32 1, %v4006
    %v4008 = vrot.slane %v3999, %v4007
    %v4012 = vsel %vm211, %v3983, 0
    %v4015 = vsel %vm211, %v3984, 0
    %v4018 = vsel %vm211, %v3985, 0
    %v4021 = vsel %vm211, %v3986, 0
    %v4024 = vsel %vm211, %v3987, 0
    %v4027 = vsel %vm211, %v3988, 0
    %v4030 = vsel %vm211, %v3989, 0
    %v4033 = vsel %vm211, %v3990, 0
    %4035 = vmatprep.subr.mxu0 %v3992
    %4036 = vmatpush1.msra.mxu0 %v3991
    %4037 = vmatprep.subr.mxu0 %v3994
    %4038 = vmatpush1.msra.mxu0 %v3993
    %4039 = vmatprep.subr.mxu0 %v3996
    %4040 = vmatpush1.msra.mxu0 %v3995
    %4041 = vmatprep.subr.mxu0 %v3998
    %4042 = vmatpush1.msra.mxu0 %v3997
    %4043 = vmatprep.subr.mxu0 0.0
    %4044 = vmatpush1.msra.mxu0 0.0
    %4045 = vmatprep.subr.mxu0 0.0
    %4046 = vmatpush1.msra.mxu0 0.0
    %4047 = vmatprep.subr.mxu0 0.0
    %4048 = vmatpush1.msra.mxu0 0.0
    %4049 = vmatprep.subr.mxu0 0.0
    %4050 = vmatpush1.msra.mxu0 0.0
    %4051 = vmatprep.subr.mxu0 0.0
    %4052 = vmatpush1.msra.mxu0 0.0
    %4053 = vmatprep.subr.mxu0 0.0
    %4054 = vmatpush1.msra.mxu0 0.0
    %4055 = vmatprep.subr.mxu0 0.0
    %4056 = vmatpush1.msra.mxu0 0.0
    %4057 = vmatprep.subr.mxu0 0.0
    %4058 = vmatpush1.msra.mxu0 0.0
    %4059 = vmatprep.subr.mxu0 0.0
    %4060 = vmatpush1.msra.mxu0 0.0
    %4061 = vmatprep.subr.mxu0 0.0
    %4062 = vmatpush1.msra.mxu0 0.0
    %4063 = vmatprep.subr.mxu0 0.0
    %4064 = vmatpush1.msra.mxu0 0.0
    %4065 = vmatprep.subr.mxu0 0.0
    %4066 = vmatpush1.msra.mxu0 0.0
    %4067 = vmatprep.subr.mxu0 0.0
    %4068 = vmatpush1.msra.mxu0 0.0
    %4069 = vmatprep.subr.mxu0 0.0
    %4070 = vmatpush1.msra.mxu0 0.0
    %4071 = vmatprep.subr.mxu0 0.0
    %4072 = vmatpush1.msra.mxu0 0.0
    %4073 = vmatprep.subr.mxu0 0.0
    %4074 = vmatpush1.msra.mxu0 0.0
    %4075 = vmatprep.subr.mxu0 0.0
    %4076 = vmatpush1.msra.mxu0 0.0
    %4077 = vmatprep.subr.mxu0 0.0
    %4078 = vmatpush1.msra.mxu0 0.0
    %4079 = vmatprep.subr.mxu0 0.0
    %4080 = vmatpush1.msra.mxu0 0.0
    %4081 = vmatprep.subr.mxu0 0.0
    %4082 = vmatpush1.msra.mxu0 0.0
    %4083 = vmatprep.subr.mxu0 0.0
    %4084 = vmatpush1.msra.mxu0 0.0
    %4085 = vmatprep.subr.mxu0 0.0
    %4086 = vmatpush1.msra.mxu0 0.0
    %4087 = vmatprep.subr.mxu0 0.0
    %4088 = vmatpush1.msra.mxu0 0.0
    %4089 = vmatprep.subr.mxu0 0.0
    %4090 = vmatpush1.msra.mxu0 0.0
    %4091 = vmatprep.subr.mxu0 0.0
    %4092 = vmatpush1.msra.mxu0 0.0
    %4093 = vmatprep.subr.mxu0 0.0
    %4094 = vmatpush1.msra.mxu0 0.0
    %4095 = vmatprep.subr.mxu0 0.0
    %4096 = vmatpush1.msra.mxu0 0.0
    %4097 = vmatprep.subr.mxu0 0.0
    %4098 = vmatpush1.msra.mxu0 0.0
    %4099 = vmatprep.mubr.f32.mxu0 0.0
    %4100 = vmatmul.mubr.f32.gmra.mrb[0].mxu0 %v4012
    %v4101 = vpop.f32.mrb[0].mxu0
    %v4102 = vadd.f32 %v4004, %v4101
    %v4103 = vpop.f32.mrb[0].mxu0
    %v4104 = vadd.f32 %v4008, %v4103
    %4105 = vmatprep.mubr.f32.mxu0 0.0
    %4106 = vmatmul.mubr.f32.gmra.mrb[0].mxu0 %v4015
    %v4107 = vpop.f32.mrb[0].mxu0
    %v4108 = vadd.f32 %v4004, %v4107
    %v4109 = vpop.f32.mrb[0].mxu0
    %v4110 = vadd.f32 %v4008, %v4109
    %4111 = vmatprep.mubr.f32.mxu0 0.0
    %4112 = vmatmul.mubr.f32.gmra.mrb[0].mxu0 %v4018
    %v4113 = vpop.f32.mrb[0].mxu0
    %v4114 = vadd.f32 %v4004, %v4113
    %v4115 = vpop.f32.mrb[0].mxu0
    %v4116 = vadd.f32 %v4008, %v4115
    %4117 = vmatprep.mubr.f32.mxu0 0.0
    %4118 = vmatmul.mubr.f32.gmra.mrb[0].mxu0 %v4021
    %v4119 = vpop.f32.mrb[0].mxu0
    %v4120 = vadd.f32 %v4004, %v4119
    %v4121 = vpop.f32.mrb[0].mxu0
    %v4122 = vadd.f32 %v4008, %v4121
    %4123 = vmatprep.mubr.f32.mxu0 0.0
    %4124 = vmatmul.mubr.f32.gmra.mrb[0].mxu0 %v4024
    %v4125 = vpop.f32.mrb[0].mxu0
    %v4126 = vadd.f32 %v4004, %v4125
    %v4127 = vpop.f32.mrb[0].mxu0
    %v4128 = vadd.f32 %v4008, %v4127
    %4129 = vmatprep.mubr.f32.mxu0 0.0
    %4130 = vmatmul.mubr.f32.gmra.mrb[0].mxu0 %v4027
    %v4131 = vpop.f32.mrb[0].mxu0
    %v4132 = vadd.f32 %v4004, %v4131
    %v4133 = vpop.f32.mrb[0].mxu0
    %v4134 = vadd.f32 %v4008, %v4133
    %4135 = vmatprep.mubr.f32.mxu0 0.0
    %4136 = vmatmul.mubr.f32.gmra.mrb[0].mxu0 %v4030
    %v4137 = vpop.f32.mrb[0].mxu0
    %v4138 = vadd.f32 %v4004, %v4137
    %v4139 = vpop.f32.mrb[0].mxu0
    %v4140 = vadd.f32 %v4008, %v4139
    %4141 = vmatprep.mubr.f32.mxu0 0.0
    %4142 = vmatmul.mubr.f32.gmra.mrb[0].mxu0 %v4033
    %v4143 = vpop.f32.mrb[0].mxu0
    %v4144 = vadd.f32 %v4004, %v4143
    %v4145 = vpop.f32.mrb[0].mxu0
    %v4146 = vadd.f32 %v4008, %v4145
    %4147 = vdwg.mxu0
    %4148 = vst [vmem:[#allocation13] sm:$0xff] %v4102
    %4149 = vst [vmem:[#allocation13 + $0x8] sm:$0xff] %v4104
    %4150 = vst [vmem:[#allocation13 + $0x10] sm:$0xff] %v4108
    %4151 = vst [vmem:[#allocation13 + $0x18] sm:$0xff] %v4110
    %4152 = vst [vmem:[#allocation13 + $0x20] sm:$0xff] %v4114
    %4153 = vst [vmem:[#allocation13 + $0x28] sm:$0xff] %v4116
    %4154 = vst [vmem:[#allocation13 + $0x30] sm:$0xff] %v4120
    %4155 = vst [vmem:[#allocation13 + $0x38] sm:$0xff] %v4122
    %4156 = vst [vmem:[#allocation13 + $0x40] sm:$0xff] %v4126
    %4157 = vst [vmem:[#allocation13 + $0x48] sm:$0xff] %v4128
    %4158 = vst [vmem:[#allocation13 + $0x50] sm:$0xff] %v4132
    %4159 = vst [vmem:[#allocation13 + $0x58] sm:$0xff] %v4134
    %4160 = vst [vmem:[#allocation13 + $0x60] sm:$0xff] %v4138
    %4161 = vst [vmem:[#allocation13 + $0x68] sm:$0xff] %v4140
    %4162 = vst [vmem:[#allocation13 + $0x70] sm:$0xff] %v4144
    %4163 = vst [vmem:[#allocation13 + $0x78] sm:$0xff] %v4146
    // Predicated region
    $region58: #{tpu_custom_call.1} parent=1 // pred_check
      _
    $region59: #{tpu_custom_call.1} parent=1 // pred_check_branch
      %4165 = sbr.rel (0) target = $region61
    $region60: #{tpu_custom_call.1} parent=1 // pred_region
      %s4167 = ssub.s32 2048, 2048
      %4168 = vsyncadd [#allocation6], %s4167
      %s4169 = sshll.u32 [#allocation13], 4
      %s4170 = int_to_ptr.vmem [resolvable:$true] %s4169
      %4175 = dma.vmem_to_hbm [thread:$0]  %s4170, 2048, %s9, [#allocation6], 256, 256, 16
    $region61: #{tpu_custom_call.1} parent=1 // pred_fallthru
      _
    // Predicated region
    $region62: #{tpu_custom_call.1} parent=1 // pred_check
      _
    $region63: #{tpu_custom_call.1} parent=1 // pred_check_branch
      %4177 = sbr.rel (0) target = $region65
    $region64: #{tpu_custom_call.1} parent=1 // pred_region
      %s4179 = ssub.s32 384, 384
      %4180 = vsyncadd [#allocation15], %s4179
      %s4181 = sshll.u32 [#allocation14], 4
      %s4182 = int_to_ptr.vmem [resolvable:$true] %s4181
      %4187 = dma.vmem_to_hbm [thread:$0]  %s4182, 384, %s10, [#allocation15], 128, 128, 8
    $region65: #{tpu_custom_call.1} parent=1 // pred_fallthru
      _
    // Predicated region
    $region66: #{tpu_custom_call.1} parent=1 // pred_check
      _
    $region67: #{tpu_custom_call.1} parent=1 // pred_check_branch
      %4189 = sbr.rel (0) target = $region69
    $region68: #{tpu_custom_call.1} parent=1 // pred_region
      %s4191 = ssub.s32 384, 384
      %4192 = vsyncadd [#allocation15], %s4191
      %s4193 = sshll.u32 [#allocation16], 4
      %s4194 = int_to_ptr.vmem [resolvable:$true] %s4193
      %4199 = dma.vmem_to_hbm [thread:$0]  %s4194, 384, %s11, [#allocation15], 128, 128, 8
    $region69: #{tpu_custom_call.1} parent=1 // pred_fallthru
      _
    // Predicated region
    $region70: #{tpu_custom_call.1} parent=1 // pred_check
      _
    $region71: #{tpu_custom_call.1} parent=1 // pred_check_branch
      %4201 = sbr.rel (0) target = $region73
    $region72: #{tpu_custom_call.1} parent=1 // pred_region
      %4202 = dma.done [#allocation6], 2048
    $region73: #{tpu_custom_call.1} parent=1 // pred_fallthru
      _
    // Predicated region
    $region74: #{tpu_custom_call.1} parent=1 // pred_check
      _
    $region75: #{tpu_custom_call.1} parent=1 // pred_check_branch
      %4204 = sbr.rel (0) target = $region77
    $region76: #{tpu_custom_call.1} parent=1 // pred_region
      %4205 = dma.done [#allocation15], 384
    $region77: #{tpu_custom_call.1} parent=1 // pred_fallthru
      _
    // Predicated region
    $region78: #{tpu_custom_call.1} parent=1 // pred_check
      _
    $region79: #{tpu_custom_call.1} parent=1 // pred_check_branch
      %4207 = sbr.rel (0) target = $region81
    $region80: #{tpu_custom_call.1} parent=1 // pred_region
      %4208 = dma.done [#allocation15], 384
    $region81: #{tpu_custom_call.1} parent=1 // pred_fallthru
      _
    %4209 = vsyncpa [#allocation5], 1
    %4210 = vsyncpa [#allocation8], 1
    %4211 = vsyncpa [#allocation11], 1
    %4212 = vsyncpa [#allocation6], 1
    %4213 = vsyncpa [#allocation15], 1

</llo_original>
